<compile_context>
chip_gen: v7x
topology: tpu7x:2x2x1
jax: 0.10.0
libtpu: 0.0.40
codegen_flags: <defaults>
</compile_context>

<pallas_src>
import jax
import jax.numpy as jnp
from jax.experimental import pallas as pl
from jax.experimental.pallas import tpu as pltpu

EPS = 1e-5  # nn.InstanceNorm2d default


# ---------------------------------------------------------------------------
# Pallas kernels
# ---------------------------------------------------------------------------
def _conv3x3_bias(p_bf16, w_ref, b_ref):
    """3x3 conv of one padded row-tile as 9 shifted matmuls.

    p_bf16 : (TH+2, W+2, Cp) bf16 padded input tile (1-row/col halo)
    w_ref  : (3, 3, Cp, Cp)  bf16 weight, laid out [ky, kx, c_in, c_out]
    b_ref  : (1, Cp)         f32 bias
    returns: (TH*W, Cp)      f32 conv output (flattened rows)
    """
    th2, w2, cp = p_bf16.shape
    th, w = th2 - 2, w2 - 2
    acc = jnp.zeros((th * w, cp), jnp.float32)
    for dy in range(3):
        for dx in range(3):
            lhs = p_bf16[dy:dy + th, dx:dx + w, :].reshape(th * w, cp)
            acc = acc + jnp.dot(lhs, w_ref[dy, dx],
                                preferred_element_type=jnp.float32)
    return acc + b_ref[...]


def _write_conv_outputs(acc, y_ref, st_ref):
    """Store bf16 conv tile + per-tile per-channel (sum, sumsq) partials."""
    y_ref[...] = acc.astype(y_ref.dtype)
    s = jnp.sum(acc, axis=0, keepdims=True)          # (1, Cp)
    ss = jnp.sum(acc * acc, axis=0, keepdims=True)   # (1, Cp)
    st_ref[...] = jnp.concatenate([s, ss], axis=0)   # (2, Cp)


def _conv_stats_kernel(p_ref, w_ref, b_ref, y_ref, st_ref):
    """Stage-1: conv3x3 (+bias) on padded x tile; emit raw tile + stats."""
    acc = _conv3x3_bias(p_ref[...], w_ref, b_ref)
    _write_conv_outputs(acc, y_ref, st_ref)


def _conv_prenorm_stats_kernel(p_ref, w_ref, b_ref, mu_ref, inv_ref,
                               y_ref, st_ref):
    """Stage-2: fuse stage-1 InstanceNorm + ReLU (elementwise, commutes with
    reflect padding) into the conv, then conv3x3 (+bias); emit tile + stats."""
    p = p_ref[...].astype(jnp.float32)                       # (TH+2, W+2, Cp)
    p = jnp.maximum((p - mu_ref[...]) * inv_ref[...], 0.0)   # IN + ReLU (f32)
    acc = _conv3x3_bias(p.astype(jnp.bfloat16), w_ref, b_ref)
    _write_conv_outputs(acc, y_ref, st_ref)


def _norm_add_kernel(y_ref, mu_ref, inv_ref, x_ref, o_ref):
    """Finalize: stage-2 InstanceNorm + residual add (all f32)."""
    y = y_ref[...].astype(jnp.float32)                       # (TILE, Cp)
    z = (y - mu_ref[...]) * inv_ref[...]
    o_ref[...] = (x_ref[...] + z).astype(o_ref.dtype)


# ---------------------------------------------------------------------------
# Glue (plain JAX): reflect pad, row-tiling with halo, stats reduction
# ---------------------------------------------------------------------------
def _pick_row_tile(h, w, target):
    """Largest TH <= target dividing H with (TH*W) % 8 == 0; else whole image."""
    for th in range(min(h, max(1, int(target))), 0, -1):
        if h % th == 0 and (th * w) % 8 == 0:
            return th
    return h


def _halo_row_tiles(z_padded, th):
    """(N, H+2, W+2, Cp) -> (N, T, TH+2, W+2, Cp) overlapping row tiles.

    Only 2 halo rows per tile are duplicated (vs. 9x for im2col).
    # TODO(synk): a manual-DMA halo (memory_space=pl.ANY + make_async_copy)
    # would avoid even this small duplication.
    """
    n, hp2, wp2, cp = z_padded.shape
    h = hp2 - 2
    t = h // th
    if t == 1:
        return z_padded[:, None]
    tiles = [z_padded[:, i * th: i * th + th + 2] for i in range(t)]
    return jnp.stack(tiles, axis=1)


def _finish_stats(stats, hw):
    """(N, T, 2, Cp) partials -> per-image (mean, 1/std), each (N, 1, Cp) f32."""
    s = jnp.sum(stats, axis=1)                               # (N, 2, Cp)
    mean = s[:, 0] / hw
    var = jnp.maximum(s[:, 1] / hw - mean * mean, 0.0)
    inv = jax.lax.rsqrt(var + EPS)
    return mean[:, None, :], inv[:, None, :]


def _conv_pass(z_padded, w_mat, bias, mu_inv=None, *, th):
    """One conv stage: padded NHWC (bf16) -> raw conv output + per-tile stats."""
    n, hp2, wp2, cp = z_padded.shape
    h, w = hp2 - 2, wp2 - 2
    t = h // th
    tiles = _halo_row_tiles(z_padded, th)                    # (N,T,TH+2,W+2,Cp)

    in_specs = [
        pl.BlockSpec((None, None, th + 2, wp2, cp), lambda i, j: (i, j, 0, 0, 0)),
        pl.BlockSpec((3, 3, cp, cp), lambda i, j: (0, 0, 0, 0)),
        pl.BlockSpec((1, cp), lambda i, j: (0, 0)),
    ]
    args = [tiles, w_mat, bias]
    if mu_inv is None:
        kernel = _conv_stats_kernel
    else:
        kernel = _conv_prenorm_stats_kernel
        mu, inv = mu_inv
        in_specs += [pl.BlockSpec((None, 1, cp), lambda i, j: (i, 0, 0)),
                     pl.BlockSpec((None, 1, cp), lambda i, j: (i, 0, 0))]
        args += [mu, inv]

    y_raw, stats = pl.pallas_call(
        kernel,
        out_shape=(jax.ShapeDtypeStruct((n, h * w, cp), jnp.bfloat16),
                   jax.ShapeDtypeStruct((n, t, 2, cp), jnp.float32)),
        grid=(n, t),
        in_specs=in_specs,
        out_specs=(pl.BlockSpec((None, th * w, cp), lambda i, j: (i, j, 0)),
                   pl.BlockSpec((None, None, 2, cp), lambda i, j: (i, j, 0, 0))),
        compiler_params=pltpu.CompilerParams(
            dimension_semantics=("parallel", "parallel")),
    )(*args)
    return y_raw, stats


def _norm_add(y_raw, mu, inv, x_flat, tile):
    n, hw, cp = y_raw.shape
    t = hw // tile
    return pl.pallas_call(
        _norm_add_kernel,
        out_shape=jax.ShapeDtypeStruct((n, hw, cp), jnp.float32),
        grid=(n, t),
        in_specs=[
            pl.BlockSpec((None, tile, cp), lambda i, j: (i, j, 0)),
            pl.BlockSpec((None, 1, cp), lambda i, j: (i, 0, 0)),
            pl.BlockSpec((None, 1, cp), lambda i, j: (i, 0, 0)),
            pl.BlockSpec((None, tile, cp), lambda i, j: (i, j, 0)),
        ],
        out_specs=pl.BlockSpec((None, tile, cp), lambda i, j: (i, j, 0)),
        compiler_params=pltpu.CompilerParams(
            dimension_semantics=("parallel", "parallel")),
    )(y_raw, mu, inv, x_flat)


# ---------------------------------------------------------------------------
# Parameter preparation (hoisted out of the per-forward path)
# ---------------------------------------------------------------------------
def prepare_resnet_block_params(w1, b1, w2, b2):
    c = w1.shape[0]
    cp = ((c + 127) // 128) * 128     # lane-dense channel count (no-op if C%128==0)

    def prep_w(w):
        wm = jnp.transpose(w, (2, 3, 1, 0))        # (OIHW) -> (KH, KW, Cin, Cout)
        if cp != c:
            wm = jnp.pad(wm, ((0, 0), (0, 0), (0, cp - c), (0, cp - c)))
        return wm.astype(jnp.bfloat16)

    def prep_b(b):
        bp = b if cp == c else jnp.pad(b, (0, cp - c))
        return bp.reshape(1, cp).astype(jnp.float32)

    return prep_w(w1), prep_b(b1), prep_w(w2), prep_b(b2)


# ---------------------------------------------------------------------------
# Forward pass: out = x + conv_block(x)
# ---------------------------------------------------------------------------
def resnet_block_forward(x_nchw, params, *, row_tile=8):
    w1m, b1m, w2m, b2m = params
    n, c, h, w = x_nchw.shape
    cp = w1m.shape[-1]
    hw = h * w
    th = _pick_row_tile(h, w, row_tile)

    # NCHW -> NHWC (+ channel pad to lane-dense width).
    # TODO(synk): in a full network the NCHW<->NHWC transposes should be folded
    # into the producer/consumer instead of standalone XLA passes here.
    x_nhwc = jnp.transpose(x_nchw, (0, 2, 3, 1)).astype(jnp.float32)
    if cp != c:
        x_nhwc = jnp.pad(x_nhwc, ((0, 0), (0, 0), (0, 0), (0, cp - c)))

    # Stage 1: ReflectionPad2d(1) + Conv3x3(+bias); per-tile (sum, sumsq).
    xp = jnp.pad(x_nhwc, ((0, 0), (1, 1), (1, 1), (0, 0)),
                 mode="reflect").astype(jnp.bfloat16)
    y1_raw, st1 = _conv_pass(xp, w1m, b1m, th=th)
    mu1, inv1 = _finish_stats(st1, hw)

    # Stage 2: stage-1 InstanceNorm+ReLU fused into this conv kernel
    # (elementwise, commutes with reflect padding), Conv3x3(+bias), stats.
    y1p = jnp.pad(y1_raw.reshape(n, h, w, cp), ((0, 0), (1, 1), (1, 1), (0, 0)),
                  mode="reflect")
    y2_raw, st2 = _conv_pass(y1p, w2m, b2m, mu_inv=(mu1, inv1), th=th)
    mu2, inv2 = _finish_stats(st2, hw)

    # Finalize: stage-2 InstanceNorm + residual skip add (f32).
    out_flat = _norm_add(y2_raw, mu2, inv2, x_nhwc.reshape(n, hw, cp), th * w)
    out = out_flat.reshape(n, h, w, cp)[..., :c]
    return jnp.transpose(out, (0, 3, 1, 2))                  # NHWC -> NCHW
    # TODO(synk): use_dropout=False in this instantiation, so no Dropout(0.5).


# ---------------------------------------------------------------------------
# Pure-JAX reference (f32, for verification)
# ---------------------------------------------------------------------------
def _reference(x, w1, b1, w2, b2):
    def conv(z, wgt, b):
        zp = jnp.pad(z, ((0, 0), (0, 0), (1, 1), (1, 1)), mode="reflect")
        y = jax.lax.conv_general_dilated(
            zp, wgt, (1, 1), "VALID",
            dimension_numbers=("NCHW", "OIHW", "NCHW"))
        return y + b[None, :, None, None]

    def inorm(z):
        mu = z.mean(axis=(2, 3), keepdims=True)
        var = ((z - mu) ** 2).mean(axis=(2, 3), keepdims=True)
        return (z - mu) * jax.lax.rsqrt(var + EPS)

    y = jax.nn.relu(inorm(conv(x, w1, b1)))
    z = inorm(conv(y, w2, b2))
    return x + z


# ---------------------------------------------------------------------------
if __name__ == "__main__":
    N, C, H, W = 2, 4, 16, 16  # dim = 4

    key = jax.random.PRNGKey(0)
    kx, k1, k2, k3, k4 = jax.random.split(key, 5)
    x = jax.random.normal(kx, (N, C, H, W), jnp.float32)
    w1 = jax.random.normal(k1, (C, C, 3, 3), jnp.float32) * 0.1
    b1 = jax.random.normal(k2, (C,), jnp.float32) * 0.1
    w2 = jax.random.normal(k3, (C, C, 3, 3), jnp.float32) * 0.1
    b2 = jax.random.normal(k4, (C,), jnp.float32) * 0.1

    params = prepare_resnet_block_params(w1, b1, w2, b2)     # hoisted, done once
    fwd = jax.jit(lambda xx: resnet_block_forward(xx, params))

    out = fwd(x)
    jax.block_until_ready(out)

    ref = _reference(x, w1, b1, w2, b2)
    assert out.shape == (N, C, H, W)
    err = float(jnp.max(jnp.abs(out - ref)))
    # bf16 matmul operands -> loosened tolerance vs. the f32 reference.
    assert err < 5e-2, f"mismatch vs reference: max abs err {err}"

    print("KERNEL_OK")
</pallas_src>

<mosaic_0001>
module attributes {stable_mosaic.version = 11 : i64} {
  func.func @_conv_stats_kernel(%arg0: i32, %arg1: i32, %arg2: memref<1x1x10x18x128xbf16, #tpu.memory_space<vmem>>, %arg3: memref<3x3x128x128xbf16, #tpu.memory_space<vmem>>, %arg4: memref<1x128xf32, #tpu.memory_space<vmem>>, %arg5: memref<1x128x128xbf16, #tpu.memory_space<vmem>>, %arg6: memref<1x1x2x128xf32, #tpu.memory_space<vmem>>) attributes {dimension_semantics = [#tpu.dimension_semantics<parallel>, #tpu.dimension_semantics<parallel>], iteration_bounds = array<i64: 2, 2>, scalar_prefetch = 0 : i64, scratch_operands = 0 : i64, tpu.core_type = #tpu.core_type<tc>, window_params = [{transform_indices = @transform_0, window_bounds = array<i64: 1, 1, 10, 18, 128>}, {pipeline_mode = #tpu.pipeline_mode<synchronous>, transform_indices = @transform_1, window_bounds = array<i64: 3, 3, 128, 128>}, {pipeline_mode = #tpu.pipeline_mode<synchronous>, transform_indices = @transform_2, window_bounds = array<i64: 1, 128>}, {transform_indices = @transform_3, window_bounds = array<i64: 1, 128, 128>}, {transform_indices = @transform_4, window_bounds = array<i64: 1, 1, 2, 128>}]} {
    %c0 = arith.constant 0 : index
    %c0_0 = arith.constant 0 : index
    %c0_1 = arith.constant 0 : index
    %c0_2 = arith.constant 0 : index
    %c0_3 = arith.constant 0 : index
    %0 = vector.load %arg2[%c0, %c0_0, %c0_1, %c0_2, %c0_3] : memref<1x1x10x18x128xbf16, #tpu.memory_space<vmem>>, vector<1x1x10x18x128xbf16>
    %1 = vector.shape_cast %0 : vector<1x1x10x18x128xbf16> to vector<10x18x128xbf16>
    %cst = arith.constant 0.000000e+00 : f32
    %2 = vector.broadcast %cst : f32 to vector<128x128xf32>
    %3 = vector.extract_strided_slice %1 {offsets = [0, 0, 0], sizes = [8, 16, 128], strides = [1, 1, 1]} : vector<10x18x128xbf16> to vector<8x16x128xbf16>
    %4 = vector.shape_cast %3 : vector<8x16x128xbf16> to vector<128x128xbf16>
    %c0_4 = arith.constant 0 : index
    %c0_5 = arith.constant 0 : index
    %c0_6 = arith.constant 0 : index
    %c0_7 = arith.constant 0 : index
    %5 = vector.load %arg3[%c0_4, %c0_5, %c0_6, %c0_7] : memref<3x3x128x128xbf16, #tpu.memory_space<vmem>>, vector<1x1x128x128xbf16>
    %6 = vector.shape_cast %5 : vector<1x1x128x128xbf16> to vector<128x128xbf16>
    %cst_8 = arith.constant dense<0.000000e+00> : vector<128x128xf32>
    %7 = tpu.matmul %4, %6, %cst_8 {dimension_numbers = #tpu.dot_dimension_numbers<[1], [0], [0], [1], [0, 0, 1, 1], [], []>} : vector<128x128xbf16>, vector<128x128xbf16>, vector<128x128xf32> -> vector<128x128xf32>
    %8 = arith.addf %2, %7 : vector<128x128xf32>
    %9 = vector.extract_strided_slice %1 {offsets = [0, 1, 0], sizes = [8, 16, 128], strides = [1, 1, 1]} : vector<10x18x128xbf16> to vector<8x16x128xbf16>
    %10 = vector.shape_cast %9 : vector<8x16x128xbf16> to vector<128x128xbf16>
    %c0_9 = arith.constant 0 : index
    %c1 = arith.constant 1 : index
    %c0_10 = arith.constant 0 : index
    %c0_11 = arith.constant 0 : index
    %11 = vector.load %arg3[%c0_9, %c1, %c0_10, %c0_11] : memref<3x3x128x128xbf16, #tpu.memory_space<vmem>>, vector<1x1x128x128xbf16>
    %12 = vector.shape_cast %11 : vector<1x1x128x128xbf16> to vector<128x128xbf16>
    %cst_12 = arith.constant dense<0.000000e+00> : vector<128x128xf32>
    %13 = tpu.matmul %10, %12, %cst_12 {dimension_numbers = #tpu.dot_dimension_numbers<[1], [0], [0], [1], [0, 0, 1, 1], [], []>} : vector<128x128xbf16>, vector<128x128xbf16>, vector<128x128xf32> -> vector<128x128xf32>
    %14 = arith.addf %8, %13 : vector<128x128xf32>
    %15 = vector.extract_strided_slice %1 {offsets = [0, 2, 0], sizes = [8, 16, 128], strides = [1, 1, 1]} : vector<10x18x128xbf16> to vector<8x16x128xbf16>
    %16 = vector.shape_cast %15 : vector<8x16x128xbf16> to vector<128x128xbf16>
    %c0_13 = arith.constant 0 : index
    %c2 = arith.constant 2 : index
    %c0_14 = arith.constant 0 : index
    %c0_15 = arith.constant 0 : index
    %17 = vector.load %arg3[%c0_13, %c2, %c0_14, %c0_15] : memref<3x3x128x128xbf16, #tpu.memory_space<vmem>>, vector<1x1x128x128xbf16>
    %18 = vector.shape_cast %17 : vector<1x1x128x128xbf16> to vector<128x128xbf16>
    %cst_16 = arith.constant dense<0.000000e+00> : vector<128x128xf32>
    %19 = tpu.matmul %16, %18, %cst_16 {dimension_numbers = #tpu.dot_dimension_numbers<[1], [0], [0], [1], [0, 0, 1, 1], [], []>} : vector<128x128xbf16>, vector<128x128xbf16>, vector<128x128xf32> -> vector<128x128xf32>
    %20 = arith.addf %14, %19 : vector<128x128xf32>
    %21 = vector.extract_strided_slice %1 {offsets = [1, 0, 0], sizes = [8, 16, 128], strides = [1, 1, 1]} : vector<10x18x128xbf16> to vector<8x16x128xbf16>
    %22 = vector.shape_cast %21 : vector<8x16x128xbf16> to vector<128x128xbf16>
    %c1_17 = arith.constant 1 : index
    %c0_18 = arith.constant 0 : index
    %c0_19 = arith.constant 0 : index
    %c0_20 = arith.constant 0 : index
    %23 = vector.load %arg3[%c1_17, %c0_18, %c0_19, %c0_20] : memref<3x3x128x128xbf16, #tpu.memory_space<vmem>>, vector<1x1x128x128xbf16>
    %24 = vector.shape_cast %23 : vector<1x1x128x128xbf16> to vector<128x128xbf16>
    %cst_21 = arith.constant dense<0.000000e+00> : vector<128x128xf32>
    %25 = tpu.matmul %22, %24, %cst_21 {dimension_numbers = #tpu.dot_dimension_numbers<[1], [0], [0], [1], [0, 0, 1, 1], [], []>} : vector<128x128xbf16>, vector<128x128xbf16>, vector<128x128xf32> -> vector<128x128xf32>
    %26 = arith.addf %20, %25 : vector<128x128xf32>
    %27 = vector.extract_strided_slice %1 {offsets = [1, 1, 0], sizes = [8, 16, 128], strides = [1, 1, 1]} : vector<10x18x128xbf16> to vector<8x16x128xbf16>
    %28 = vector.shape_cast %27 : vector<8x16x128xbf16> to vector<128x128xbf16>
    %c1_22 = arith.constant 1 : index
    %c1_23 = arith.constant 1 : index
    %c0_24 = arith.constant 0 : index
    %c0_25 = arith.constant 0 : index
    %29 = vector.load %arg3[%c1_22, %c1_23, %c0_24, %c0_25] : memref<3x3x128x128xbf16, #tpu.memory_space<vmem>>, vector<1x1x128x128xbf16>
    %30 = vector.shape_cast %29 : vector<1x1x128x128xbf16> to vector<128x128xbf16>
    %cst_26 = arith.constant dense<0.000000e+00> : vector<128x128xf32>
    %31 = tpu.matmul %28, %30, %cst_26 {dimension_numbers = #tpu.dot_dimension_numbers<[1], [0], [0], [1], [0, 0, 1, 1], [], []>} : vector<128x128xbf16>, vector<128x128xbf16>, vector<128x128xf32> -> vector<128x128xf32>
    %32 = arith.addf %26, %31 : vector<128x128xf32>
    %33 = vector.extract_strided_slice %1 {offsets = [1, 2, 0], sizes = [8, 16, 128], strides = [1, 1, 1]} : vector<10x18x128xbf16> to vector<8x16x128xbf16>
    %34 = vector.shape_cast %33 : vector<8x16x128xbf16> to vector<128x128xbf16>
    %c1_27 = arith.constant 1 : index
    %c2_28 = arith.constant 2 : index
    %c0_29 = arith.constant 0 : index
    %c0_30 = arith.constant 0 : index
    %35 = vector.load %arg3[%c1_27, %c2_28, %c0_29, %c0_30] : memref<3x3x128x128xbf16, #tpu.memory_space<vmem>>, vector<1x1x128x128xbf16>
    %36 = vector.shape_cast %35 : vector<1x1x128x128xbf16> to vector<128x128xbf16>
    %cst_31 = arith.constant dense<0.000000e+00> : vector<128x128xf32>
    %37 = tpu.matmul %34, %36, %cst_31 {dimension_numbers = #tpu.dot_dimension_numbers<[1], [0], [0], [1], [0, 0, 1, 1], [], []>} : vector<128x128xbf16>, vector<128x128xbf16>, vector<128x128xf32> -> vector<128x128xf32>
    %38 = arith.addf %32, %37 : vector<128x128xf32>
    %39 = vector.extract_strided_slice %1 {offsets = [2, 0, 0], sizes = [8, 16, 128], strides = [1, 1, 1]} : vector<10x18x128xbf16> to vector<8x16x128xbf16>
    %40 = vector.shape_cast %39 : vector<8x16x128xbf16> to vector<128x128xbf16>
    %c2_32 = arith.constant 2 : index
    %c0_33 = arith.constant 0 : index
    %c0_34 = arith.constant 0 : index
    %c0_35 = arith.constant 0 : index
    %41 = vector.load %arg3[%c2_32, %c0_33, %c0_34, %c0_35] : memref<3x3x128x128xbf16, #tpu.memory_space<vmem>>, vector<1x1x128x128xbf16>
    %42 = vector.shape_cast %41 : vector<1x1x128x128xbf16> to vector<128x128xbf16>
    %cst_36 = arith.constant dense<0.000000e+00> : vector<128x128xf32>
    %43 = tpu.matmul %40, %42, %cst_36 {dimension_numbers = #tpu.dot_dimension_numbers<[1], [0], [0], [1], [0, 0, 1, 1], [], []>} : vector<128x128xbf16>, vector<128x128xbf16>, vector<128x128xf32> -> vector<128x128xf32>
    %44 = arith.addf %38, %43 : vector<128x128xf32>
    %45 = vector.extract_strided_slice %1 {offsets = [2, 1, 0], sizes = [8, 16, 128], strides = [1, 1, 1]} : vector<10x18x128xbf16> to vector<8x16x128xbf16>
    %46 = vector.shape_cast %45 : vector<8x16x128xbf16> to vector<128x128xbf16>
    %c2_37 = arith.constant 2 : index
    %c1_38 = arith.constant 1 : index
    %c0_39 = arith.constant 0 : index
    %c0_40 = arith.constant 0 : index
    %47 = vector.load %arg3[%c2_37, %c1_38, %c0_39, %c0_40] : memref<3x3x128x128xbf16, #tpu.memory_space<vmem>>, vector<1x1x128x128xbf16>
    %48 = vector.shape_cast %47 : vector<1x1x128x128xbf16> to vector<128x128xbf16>
    %cst_41 = arith.constant dense<0.000000e+00> : vector<128x128xf32>
    %49 = tpu.matmul %46, %48, %cst_41 {dimension_numbers = #tpu.dot_dimension_numbers<[1], [0], [0], [1], [0, 0, 1, 1], [], []>} : vector<128x128xbf16>, vector<128x128xbf16>, vector<128x128xf32> -> vector<128x128xf32>
    %50 = arith.addf %44, %49 : vector<128x128xf32>
    %51 = vector.extract_strided_slice %1 {offsets = [2, 2, 0], sizes = [8, 16, 128], strides = [1, 1, 1]} : vector<10x18x128xbf16> to vector<8x16x128xbf16>
    %52 = vector.shape_cast %51 : vector<8x16x128xbf16> to vector<128x128xbf16>
    %c2_42 = arith.constant 2 : index
    %c2_43 = arith.constant 2 : index
    %c0_44 = arith.constant 0 : index
    %c0_45 = arith.constant 0 : index
    %53 = vector.load %arg3[%c2_42, %c2_43, %c0_44, %c0_45] : memref<3x3x128x128xbf16, #tpu.memory_space<vmem>>, vector<1x1x128x128xbf16>
    %54 = vector.shape_cast %53 : vector<1x1x128x128xbf16> to vector<128x128xbf16>
    %cst_46 = arith.constant dense<0.000000e+00> : vector<128x128xf32>
    %55 = tpu.matmul %52, %54, %cst_46 {dimension_numbers = #tpu.dot_dimension_numbers<[1], [0], [0], [1], [0, 0, 1, 1], [], []>} : vector<128x128xbf16>, vector<128x128xbf16>, vector<128x128xf32> -> vector<128x128xf32>
    %56 = arith.addf %50, %55 : vector<128x128xf32>
    %c0_47 = arith.constant 0 : index
    %c0_48 = arith.constant 0 : index
    %57 = vector.load %arg4[%c0_47, %c0_48] : memref<1x128xf32, #tpu.memory_space<vmem>>, vector<1x128xf32>
    %58 = vector.broadcast %57 : vector<1x128xf32> to vector<128x128xf32>
    %59 = arith.addf %56, %58 : vector<128x128xf32>
    %60 = arith.truncf %59 : vector<128x128xf32> to vector<128x128xbf16>
    %c0_49 = arith.constant 0 : index
    %c0_50 = arith.constant 0 : index
    %c0_51 = arith.constant 0 : index
    %61 = vector.load %arg5[%c0_49, %c0_50, %c0_51] : memref<1x128x128xbf16, #tpu.memory_space<vmem>>, vector<1x128x128xbf16>
    %62 = vector.shape_cast %61 : vector<1x128x128xbf16> to vector<128x128xbf16>
    %63 = vector.shape_cast %60 : vector<128x128xbf16> to vector<1x128x128xbf16>
    tpu.vector_store %arg5[%c0_49, %c0_50, %c0_51], %63 {strides = array<i32>} : memref<1x128x128xbf16, #tpu.memory_space<vmem>>, vector<1x128x128xbf16>,
    %cst_52 = arith.constant dense<0.000000e+00> : vector<128xf32>
    %64 = vector.multi_reduction <add>, %59, %cst_52 [0] : vector<128x128xf32> to vector<128xf32>
    %65 = vector.shape_cast %64 : vector<128xf32> to vector<1x128xf32>
    %66 = arith.mulf %59, %59 : vector<128x128xf32>
    %cst_53 = arith.constant dense<0.000000e+00> : vector<128xf32>
    %67 = vector.multi_reduction <add>, %66, %cst_53 [0] : vector<128x128xf32> to vector<128xf32>
    %68 = vector.shape_cast %67 : vector<128xf32> to vector<1x128xf32>
    %69 = tpu.concatenate %65, %68 in 0 : vector<1x128xf32>, vector<1x128xf32> -> vector<2x128xf32>
    %c0_54 = arith.constant 0 : index
    %c0_55 = arith.constant 0 : index
    %c0_56 = arith.constant 0 : index
    %c0_57 = arith.constant 0 : index
    %70 = vector.load %arg6[%c0_54, %c0_55, %c0_56, %c0_57] : memref<1x1x2x128xf32, #tpu.memory_space<vmem>>, vector<1x1x2x128xf32>
    %71 = vector.shape_cast %70 : vector<1x1x2x128xf32> to vector<2x128xf32>
    %72 = vector.shape_cast %69 : vector<2x128xf32> to vector<1x1x2x128xf32>
    tpu.vector_store %arg6[%c0_54, %c0_55, %c0_56, %c0_57], %72 {strides = array<i32>} : memref<1x1x2x128xf32, #tpu.memory_space<vmem>>, vector<1x1x2x128xf32>,
    return
  }
  func.func @transform_0(%arg0: i32, %arg1: i32) -> (i32, i32, i32, i32, i32) {
    %c0_i32 = arith.constant 0 : i32
    %c0_i32_0 = arith.constant 0 : i32
    %c0_i32_1 = arith.constant 0 : i32
    %c0_i32_2 = arith.constant 0 : i32
    return %arg0, %arg1, %c0_i32, %c0_i32_0, %c0_i32_1 : i32, i32, i32, i32, i32
  }
  func.func @transform_1(%arg0: i32, %arg1: i32) -> (i32, i32, i32, i32) {
    %c0_i32 = arith.constant 0 : i32
    %c0_i32_0 = arith.constant 0 : i32
    %c0_i32_1 = arith.constant 0 : i32
    %c0_i32_2 = arith.constant 0 : i32
    %c0_i32_3 = arith.constant 0 : i32
    return %c0_i32, %c0_i32_0, %c0_i32_1, %c0_i32_2 : i32, i32, i32, i32
  }
  func.func @transform_2(%arg0: i32, %arg1: i32) -> (i32, i32) {
    %c0_i32 = arith.constant 0 : i32
    %c0_i32_0 = arith.constant 0 : i32
    %c0_i32_1 = arith.constant 0 : i32
    return %c0_i32, %c0_i32_0 : i32, i32
  }
  func.func @transform_3(%arg0: i32, %arg1: i32) -> (i32, i32, i32) {
    %c0_i32 = arith.constant 0 : i32
    %c0_i32_0 = arith.constant 0 : i32
    return %arg0, %arg1, %c0_i32 : i32, i32, i32
  }
  func.func @transform_4(%arg0: i32, %arg1: i32) -> (i32, i32, i32, i32) {
    %c0_i32 = arith.constant 0 : i32
    %c0_i32_0 = arith.constant 0 : i32
    %c0_i32_1 = arith.constant 0 : i32
    return %arg0, %arg1, %c0_i32, %c0_i32_0 : i32, i32, i32, i32
  }
}

module attributes {stable_mosaic.version = 11 : i64} {
  func.func @_conv_prenorm_stats_kernel(%arg0: i32, %arg1: i32, %arg2: memref<1x1x10x18x128xbf16, #tpu.memory_space<vmem>>, %arg3: memref<3x3x128x128xbf16, #tpu.memory_space<vmem>>, %arg4: memref<1x128xf32, #tpu.memory_space<vmem>>, %arg5: memref<1x1x128xf32, #tpu.memory_space<vmem>>, %arg6: memref<1x1x128xf32, #tpu.memory_space<vmem>>, %arg7: memref<1x128x128xbf16, #tpu.memory_space<vmem>>, %arg8: memref<1x1x2x128xf32, #tpu.memory_space<vmem>>) attributes {dimension_semantics = [#tpu.dimension_semantics<parallel>, #tpu.dimension_semantics<parallel>], iteration_bounds = array<i64: 2, 2>, scalar_prefetch = 0 : i64, scratch_operands = 0 : i64, tpu.core_type = #tpu.core_type<tc>, window_params = [{transform_indices = @transform_0, window_bounds = array<i64: 1, 1, 10, 18, 128>}, {pipeline_mode = #tpu.pipeline_mode<synchronous>, transform_indices = @transform_1, window_bounds = array<i64: 3, 3, 128, 128>}, {pipeline_mode = #tpu.pipeline_mode<synchronous>, transform_indices = @transform_2, window_bounds = array<i64: 1, 128>}, {transform_indices = @transform_3, window_bounds = array<i64: 1, 1, 128>}, {transform_indices = @transform_4, window_bounds = array<i64: 1, 1, 128>}, {transform_indices = @transform_5, window_bounds = array<i64: 1, 128, 128>}, {transform_indices = @transform_6, window_bounds = array<i64: 1, 1, 2, 128>}]} {
    %c0 = arith.constant 0 : index
    %c0_0 = arith.constant 0 : index
    %c0_1 = arith.constant 0 : index
    %c0_2 = arith.constant 0 : index
    %c0_3 = arith.constant 0 : index
    %0 = vector.load %arg2[%c0, %c0_0, %c0_1, %c0_2, %c0_3] : memref<1x1x10x18x128xbf16, #tpu.memory_space<vmem>>, vector<1x1x10x18x128xbf16>
    %1 = vector.shape_cast %0 : vector<1x1x10x18x128xbf16> to vector<10x18x128xbf16>
    %2 = arith.extf %1 : vector<10x18x128xbf16> to vector<10x18x128xf32>
    %c0_4 = arith.constant 0 : index
    %c0_5 = arith.constant 0 : index
    %c0_6 = arith.constant 0 : index
    %3 = vector.load %arg5[%c0_4, %c0_5, %c0_6] : memref<1x1x128xf32, #tpu.memory_space<vmem>>, vector<1x1x128xf32>
    %4 = vector.shape_cast %3 : vector<1x1x128xf32> to vector<1x128xf32>
    %5 = vector.shape_cast %4 : vector<1x128xf32> to vector<1x1x128xf32>
    %6 = vector.broadcast %5 : vector<1x1x128xf32> to vector<10x18x128xf32>
    %7 = arith.subf %2, %6 : vector<10x18x128xf32>
    %c0_7 = arith.constant 0 : index
    %c0_8 = arith.constant 0 : index
    %c0_9 = arith.constant 0 : index
    %8 = vector.load %arg6[%c0_7, %c0_8, %c0_9] : memref<1x1x128xf32, #tpu.memory_space<vmem>>, vector<1x1x128xf32>
    %9 = vector.shape_cast %8 : vector<1x1x128xf32> to vector<1x128xf32>
    %10 = vector.shape_cast %9 : vector<1x128xf32> to vector<1x1x128xf32>
    %11 = vector.broadcast %10 : vector<1x1x128xf32> to vector<10x18x128xf32>
    %12 = arith.mulf %7, %11 : vector<10x18x128xf32>
    %cst = arith.constant 0.000000e+00 : f32
    %13 = vector.broadcast %cst : f32 to vector<10x18x128xf32>
    %14 = arith.maximumf %12, %13 : vector<10x18x128xf32>
    %15 = arith.truncf %14 : vector<10x18x128xf32> to vector<10x18x128xbf16>
    %cst_10 = arith.constant 0.000000e+00 : f32
    %16 = vector.broadcast %cst_10 : f32 to vector<128x128xf32>
    %17 = vector.extract_strided_slice %15 {offsets = [0, 0, 0], sizes = [8, 16, 128], strides = [1, 1, 1]} : vector<10x18x128xbf16> to vector<8x16x128xbf16>
    %18 = vector.shape_cast %17 : vector<8x16x128xbf16> to vector<128x128xbf16>
    %c0_11 = arith.constant 0 : index
    %c0_12 = arith.constant 0 : index
    %c0_13 = arith.constant 0 : index
    %c0_14 = arith.constant 0 : index
    %19 = vector.load %arg3[%c0_11, %c0_12, %c0_13, %c0_14] : memref<3x3x128x128xbf16, #tpu.memory_space<vmem>>, vector<1x1x128x128xbf16>
    %20 = vector.shape_cast %19 : vector<1x1x128x128xbf16> to vector<128x128xbf16>
    %cst_15 = arith.constant dense<0.000000e+00> : vector<128x128xf32>
    %21 = tpu.matmul %18, %20, %cst_15 {dimension_numbers = #tpu.dot_dimension_numbers<[1], [0], [0], [1], [0, 0, 1, 1], [], []>} : vector<128x128xbf16>, vector<128x128xbf16>, vector<128x128xf32> -> vector<128x128xf32>
    %22 = arith.addf %16, %21 : vector<128x128xf32>
    %23 = vector.extract_strided_slice %15 {offsets = [0, 1, 0], sizes = [8, 16, 128], strides = [1, 1, 1]} : vector<10x18x128xbf16> to vector<8x16x128xbf16>
    %24 = vector.shape_cast %23 : vector<8x16x128xbf16> to vector<128x128xbf16>
    %c0_16 = arith.constant 0 : index
    %c1 = arith.constant 1 : index
    %c0_17 = arith.constant 0 : index
    %c0_18 = arith.constant 0 : index
    %25 = vector.load %arg3[%c0_16, %c1, %c0_17, %c0_18] : memref<3x3x128x128xbf16, #tpu.memory_space<vmem>>, vector<1x1x128x128xbf16>
    %26 = vector.shape_cast %25 : vector<1x1x128x128xbf16> to vector<128x128xbf16>
    %cst_19 = arith.constant dense<0.000000e+00> : vector<128x128xf32>
    %27 = tpu.matmul %24, %26, %cst_19 {dimension_numbers = #tpu.dot_dimension_numbers<[1], [0], [0], [1], [0, 0, 1, 1], [], []>} : vector<128x128xbf16>, vector<128x128xbf16>, vector<128x128xf32> -> vector<128x128xf32>
    %28 = arith.addf %22, %27 : vector<128x128xf32>
    %29 = vector.extract_strided_slice %15 {offsets = [0, 2, 0], sizes = [8, 16, 128], strides = [1, 1, 1]} : vector<10x18x128xbf16> to vector<8x16x128xbf16>
    %30 = vector.shape_cast %29 : vector<8x16x128xbf16> to vector<128x128xbf16>
    %c0_20 = arith.constant 0 : index
    %c2 = arith.constant 2 : index
    %c0_21 = arith.constant 0 : index
    %c0_22 = arith.constant 0 : index
    %31 = vector.load %arg3[%c0_20, %c2, %c0_21, %c0_22] : memref<3x3x128x128xbf16, #tpu.memory_space<vmem>>, vector<1x1x128x128xbf16>
    %32 = vector.shape_cast %31 : vector<1x1x128x128xbf16> to vector<128x128xbf16>
    %cst_23 = arith.constant dense<0.000000e+00> : vector<128x128xf32>
    %33 = tpu.matmul %30, %32, %cst_23 {dimension_numbers = #tpu.dot_dimension_numbers<[1], [0], [0], [1], [0, 0, 1, 1], [], []>} : vector<128x128xbf16>, vector<128x128xbf16>, vector<128x128xf32> -> vector<128x128xf32>
    %34 = arith.addf %28, %33 : vector<128x128xf32>
    %35 = vector.extract_strided_slice %15 {offsets = [1, 0, 0], sizes = [8, 16, 128], strides = [1, 1, 1]} : vector<10x18x128xbf16> to vector<8x16x128xbf16>
    %36 = vector.shape_cast %35 : vector<8x16x128xbf16> to vector<128x128xbf16>
    %c1_24 = arith.constant 1 : index
    %c0_25 = arith.constant 0 : index
    %c0_26 = arith.constant 0 : index
    %c0_27 = arith.constant 0 : index
    %37 = vector.load %arg3[%c1_24, %c0_25, %c0_26, %c0_27] : memref<3x3x128x128xbf16, #tpu.memory_space<vmem>>, vector<1x1x128x128xbf16>
    %38 = vector.shape_cast %37 : vector<1x1x128x128xbf16> to vector<128x128xbf16>
    %cst_28 = arith.constant dense<0.000000e+00> : vector<128x128xf32>
    %39 = tpu.matmul %36, %38, %cst_28 {dimension_numbers = #tpu.dot_dimension_numbers<[1], [0], [0], [1], [0, 0, 1, 1], [], []>} : vector<128x128xbf16>, vector<128x128xbf16>, vector<128x128xf32> -> vector<128x128xf32>
    %40 = arith.addf %34, %39 : vector<128x128xf32>
    %41 = vector.extract_strided_slice %15 {offsets = [1, 1, 0], sizes = [8, 16, 128], strides = [1, 1, 1]} : vector<10x18x128xbf16> to vector<8x16x128xbf16>
    %42 = vector.shape_cast %41 : vector<8x16x128xbf16> to vector<128x128xbf16>
    %c1_29 = arith.constant 1 : index
    %c1_30 = arith.constant 1 : index
    %c0_31 = arith.constant 0 : index
    %c0_32 = arith.constant 0 : index
    %43 = vector.load %arg3[%c1_29, %c1_30, %c0_31, %c0_32] : memref<3x3x128x128xbf16, #tpu.memory_space<vmem>>, vector<1x1x128x128xbf16>
    %44 = vector.shape_cast %43 : vector<1x1x128x128xbf16> to vector<128x128xbf16>
    %cst_33 = arith.constant dense<0.000000e+00> : vector<128x128xf32>
    %45 = tpu.matmul %42, %44, %cst_33 {dimension_numbers = #tpu.dot_dimension_numbers<[1], [0], [0], [1], [0, 0, 1, 1], [], []>} : vector<128x128xbf16>, vector<128x128xbf16>, vector<128x128xf32> -> vector<128x128xf32>
    %46 = arith.addf %40, %45 : vector<128x128xf32>
    %47 = vector.extract_strided_slice %15 {offsets = [1, 2, 0], sizes = [8, 16, 128], strides = [1, 1, 1]} : vector<10x18x128xbf16> to vector<8x16x128xbf16>
    %48 = vector.shape_cast %47 : vector<8x16x128xbf16> to vector<128x128xbf16>
    %c1_34 = arith.constant 1 : index
    %c2_35 = arith.constant 2 : index
    %c0_36 = arith.constant 0 : index
    %c0_37 = arith.constant 0 : index
    %49 = vector.load %arg3[%c1_34, %c2_35, %c0_36, %c0_37] : memref<3x3x128x128xbf16, #tpu.memory_space<vmem>>, vector<1x1x128x128xbf16>
    %50 = vector.shape_cast %49 : vector<1x1x128x128xbf16> to vector<128x128xbf16>
    %cst_38 = arith.constant dense<0.000000e+00> : vector<128x128xf32>
    %51 = tpu.matmul %48, %50, %cst_38 {dimension_numbers = #tpu.dot_dimension_numbers<[1], [0], [0], [1], [0, 0, 1, 1], [], []>} : vector<128x128xbf16>, vector<128x128xbf16>, vector<128x128xf32> -> vector<128x128xf32>
    %52 = arith.addf %46, %51 : vector<128x128xf32>
    %53 = vector.extract_strided_slice %15 {offsets = [2, 0, 0], sizes = [8, 16, 128], strides = [1, 1, 1]} : vector<10x18x128xbf16> to vector<8x16x128xbf16>
    %54 = vector.shape_cast %53 : vector<8x16x128xbf16> to vector<128x128xbf16>
    %c2_39 = arith.constant 2 : index
    %c0_40 = arith.constant 0 : index
    %c0_41 = arith.constant 0 : index
    %c0_42 = arith.constant 0 : index
    %55 = vector.load %arg3[%c2_39, %c0_40, %c0_41, %c0_42] : memref<3x3x128x128xbf16, #tpu.memory_space<vmem>>, vector<1x1x128x128xbf16>
    %56 = vector.shape_cast %55 : vector<1x1x128x128xbf16> to vector<128x128xbf16>
    %cst_43 = arith.constant dense<0.000000e+00> : vector<128x128xf32>
    %57 = tpu.matmul %54, %56, %cst_43 {dimension_numbers = #tpu.dot_dimension_numbers<[1], [0], [0], [1], [0, 0, 1, 1], [], []>} : vector<128x128xbf16>, vector<128x128xbf16>, vector<128x128xf32> -> vector<128x128xf32>
    %58 = arith.addf %52, %57 : vector<128x128xf32>
    %59 = vector.extract_strided_slice %15 {offsets = [2, 1, 0], sizes = [8, 16, 128], strides = [1, 1, 1]} : vector<10x18x128xbf16> to vector<8x16x128xbf16>
    %60 = vector.shape_cast %59 : vector<8x16x128xbf16> to vector<128x128xbf16>
    %c2_44 = arith.constant 2 : index
    %c1_45 = arith.constant 1 : index
    %c0_46 = arith.constant 0 : index
    %c0_47 = arith.constant 0 : index
    %61 = vector.load %arg3[%c2_44, %c1_45, %c0_46, %c0_47] : memref<3x3x128x128xbf16, #tpu.memory_space<vmem>>, vector<1x1x128x128xbf16>
    %62 = vector.shape_cast %61 : vector<1x1x128x128xbf16> to vector<128x128xbf16>
    %cst_48 = arith.constant dense<0.000000e+00> : vector<128x128xf32>
    %63 = tpu.matmul %60, %62, %cst_48 {dimension_numbers = #tpu.dot_dimension_numbers<[1], [0], [0], [1], [0, 0, 1, 1], [], []>} : vector<128x128xbf16>, vector<128x128xbf16>, vector<128x128xf32> -> vector<128x128xf32>
    %64 = arith.addf %58, %63 : vector<128x128xf32>
    %65 = vector.extract_strided_slice %15 {offsets = [2, 2, 0], sizes = [8, 16, 128], strides = [1, 1, 1]} : vector<10x18x128xbf16> to vector<8x16x128xbf16>
    %66 = vector.shape_cast %65 : vector<8x16x128xbf16> to vector<128x128xbf16>
    %c2_49 = arith.constant 2 : index
    %c2_50 = arith.constant 2 : index
    %c0_51 = arith.constant 0 : index
    %c0_52 = arith.constant 0 : index
    %67 = vector.load %arg3[%c2_49, %c2_50, %c0_51, %c0_52] : memref<3x3x128x128xbf16, #tpu.memory_space<vmem>>, vector<1x1x128x128xbf16>
    %68 = vector.shape_cast %67 : vector<1x1x128x128xbf16> to vector<128x128xbf16>
    %cst_53 = arith.constant dense<0.000000e+00> : vector<128x128xf32>
    %69 = tpu.matmul %66, %68, %cst_53 {dimension_numbers = #tpu.dot_dimension_numbers<[1], [0], [0], [1], [0, 0, 1, 1], [], []>} : vector<128x128xbf16>, vector<128x128xbf16>, vector<128x128xf32> -> vector<128x128xf32>
    %70 = arith.addf %64, %69 : vector<128x128xf32>
    %c0_54 = arith.constant 0 : index
    %c0_55 = arith.constant 0 : index
    %71 = vector.load %arg4[%c0_54, %c0_55] : memref<1x128xf32, #tpu.memory_space<vmem>>, vector<1x128xf32>
    %72 = vector.broadcast %71 : vector<1x128xf32> to vector<128x128xf32>
    %73 = arith.addf %70, %72 : vector<128x128xf32>
    %74 = arith.truncf %73 : vector<128x128xf32> to vector<128x128xbf16>
    %c0_56 = arith.constant 0 : index
    %c0_57 = arith.constant 0 : index
    %c0_58 = arith.constant 0 : index
    %75 = vector.load %arg7[%c0_56, %c0_57, %c0_58] : memref<1x128x128xbf16, #tpu.memory_space<vmem>>, vector<1x128x128xbf16>
    %76 = vector.shape_cast %75 : vector<1x128x128xbf16> to vector<128x128xbf16>
    %77 = vector.shape_cast %74 : vector<128x128xbf16> to vector<1x128x128xbf16>
    tpu.vector_store %arg7[%c0_56, %c0_57, %c0_58], %77 {strides = array<i32>} : memref<1x128x128xbf16, #tpu.memory_space<vmem>>, vector<1x128x128xbf16>,
    %cst_59 = arith.constant dense<0.000000e+00> : vector<128xf32>
    %78 = vector.multi_reduction <add>, %73, %cst_59 [0] : vector<128x128xf32> to vector<128xf32>
    %79 = vector.shape_cast %78 : vector<128xf32> to vector<1x128xf32>
    %80 = arith.mulf %73, %73 : vector<128x128xf32>
    %cst_60 = arith.constant dense<0.000000e+00> : vector<128xf32>
    %81 = vector.multi_reduction <add>, %80, %cst_60 [0] : vector<128x128xf32> to vector<128xf32>
    %82 = vector.shape_cast %81 : vector<128xf32> to vector<1x128xf32>
    %83 = tpu.concatenate %79, %82 in 0 : vector<1x128xf32>, vector<1x128xf32> -> vector<2x128xf32>
    %c0_61 = arith.constant 0 : index
    %c0_62 = arith.constant 0 : index
    %c0_63 = arith.constant 0 : index
    %c0_64 = arith.constant 0 : index
    %84 = vector.load %arg8[%c0_61, %c0_62, %c0_63, %c0_64] : memref<1x1x2x128xf32, #tpu.memory_space<vmem>>, vector<1x1x2x128xf32>
    %85 = vector.shape_cast %84 : vector<1x1x2x128xf32> to vector<2x128xf32>
    %86 = vector.shape_cast %83 : vector<2x128xf32> to vector<1x1x2x128xf32>
    tpu.vector_store %arg8[%c0_61, %c0_62, %c0_63, %c0_64], %86 {strides = array<i32>} : memref<1x1x2x128xf32, #tpu.memory_space<vmem>>, vector<1x1x2x128xf32>,
    return
  }
  func.func @transform_0(%arg0: i32, %arg1: i32) -> (i32, i32, i32, i32, i32) {
    %c0_i32 = arith.constant 0 : i32
    %c0_i32_0 = arith.constant 0 : i32
    %c0_i32_1 = arith.constant 0 : i32
    %c0_i32_2 = arith.constant 0 : i32
    return %arg0, %arg1, %c0_i32, %c0_i32_0, %c0_i32_1 : i32, i32, i32, i32, i32
  }
  func.func @transform_1(%arg0: i32, %arg1: i32) -> (i32, i32, i32, i32) {
    %c0_i32 = arith.constant 0 : i32
    %c0_i32_0 = arith.constant 0 : i32
    %c0_i32_1 = arith.constant 0 : i32
    %c0_i32_2 = arith.constant 0 : i32
    %c0_i32_3 = arith.constant 0 : i32
    return %c0_i32, %c0_i32_0, %c0_i32_1, %c0_i32_2 : i32, i32, i32, i32
  }
  func.func @transform_2(%arg0: i32, %arg1: i32) -> (i32, i32) {
    %c0_i32 = arith.constant 0 : i32
    %c0_i32_0 = arith.constant 0 : i32
    %c0_i32_1 = arith.constant 0 : i32
    return %c0_i32, %c0_i32_0 : i32, i32
  }
  func.func @transform_3(%arg0: i32, %arg1: i32) -> (i32, i32, i32) {
    %c0_i32 = arith.constant 0 : i32
    %c0_i32_0 = arith.constant 0 : i32
    %c0_i32_1 = arith.constant 0 : i32
    return %arg0, %c0_i32, %c0_i32_0 : i32, i32, i32
  }
  func.func @transform_4(%arg0: i32, %arg1: i32) -> (i32, i32, i32) {
    %c0_i32 = arith.constant 0 : i32
    %c0_i32_0 = arith.constant 0 : i32
    %c0_i32_1 = arith.constant 0 : i32
    return %arg0, %c0_i32, %c0_i32_0 : i32, i32, i32
  }
  func.func @transform_5(%arg0: i32, %arg1: i32) -> (i32, i32, i32) {
    %c0_i32 = arith.constant 0 : i32
    %c0_i32_0 = arith.constant 0 : i32
    return %arg0, %arg1, %c0_i32 : i32, i32, i32
  }
  func.func @transform_6(%arg0: i32, %arg1: i32) -> (i32, i32, i32, i32) {
    %c0_i32 = arith.constant 0 : i32
    %c0_i32_0 = arith.constant 0 : i32
    %c0_i32_1 = arith.constant 0 : i32
    return %arg0, %arg1, %c0_i32, %c0_i32_0 : i32, i32, i32, i32
  }
}

module attributes {stable_mosaic.version = 11 : i64} {
  func.func @_norm_add_kernel(%arg0: i32, %arg1: i32, %arg2: memref<1x128x128xbf16, #tpu.memory_space<vmem>>, %arg3: memref<1x1x128xf32, #tpu.memory_space<vmem>>, %arg4: memref<1x1x128xf32, #tpu.memory_space<vmem>>, %arg5: memref<1x128x128xf32, #tpu.memory_space<vmem>>, %arg6: memref<1x128x128xf32, #tpu.memory_space<vmem>>) attributes {dimension_semantics = [#tpu.dimension_semantics<parallel>, #tpu.dimension_semantics<parallel>], iteration_bounds = array<i64: 2, 2>, scalar_prefetch = 0 : i64, scratch_operands = 0 : i64, tpu.core_type = #tpu.core_type<tc>, window_params = [{transform_indices = @transform_0, window_bounds = array<i64: 1, 128, 128>}, {transform_indices = @transform_1, window_bounds = array<i64: 1, 1, 128>}, {transform_indices = @transform_2, window_bounds = array<i64: 1, 1, 128>}, {transform_indices = @transform_3, window_bounds = array<i64: 1, 128, 128>}, {transform_indices = @transform_4, window_bounds = array<i64: 1, 128, 128>}]} {
    %c0 = arith.constant 0 : index
    %c0_0 = arith.constant 0 : index
    %c0_1 = arith.constant 0 : index
    %0 = vector.load %arg2[%c0, %c0_0, %c0_1] : memref<1x128x128xbf16, #tpu.memory_space<vmem>>, vector<1x128x128xbf16>
    %1 = vector.shape_cast %0 : vector<1x128x128xbf16> to vector<128x128xbf16>
    %2 = arith.extf %1 : vector<128x128xbf16> to vector<128x128xf32>
    %c0_2 = arith.constant 0 : index
    %c0_3 = arith.constant 0 : index
    %c0_4 = arith.constant 0 : index
    %3 = vector.load %arg3[%c0_2, %c0_3, %c0_4] : memref<1x1x128xf32, #tpu.memory_space<vmem>>, vector<1x1x128xf32>
    %4 = vector.shape_cast %3 : vector<1x1x128xf32> to vector<1x128xf32>
    %5 = vector.broadcast %4 : vector<1x128xf32> to vector<128x128xf32>
    %6 = arith.subf %2, %5 : vector<128x128xf32>
    %c0_5 = arith.constant 0 : index
    %c0_6 = arith.constant 0 : index
    %c0_7 = arith.constant 0 : index
    %7 = vector.load %arg4[%c0_5, %c0_6, %c0_7] : memref<1x1x128xf32, #tpu.memory_space<vmem>>, vector<1x1x128xf32>
    %8 = vector.shape_cast %7 : vector<1x1x128xf32> to vector<1x128xf32>
    %9 = vector.broadcast %8 : vector<1x128xf32> to vector<128x128xf32>
    %10 = arith.mulf %6, %9 : vector<128x128xf32>
    %c0_8 = arith.constant 0 : index
    %c0_9 = arith.constant 0 : index
    %c0_10 = arith.constant 0 : index
    %11 = vector.load %arg5[%c0_8, %c0_9, %c0_10] : memref<1x128x128xf32, #tpu.memory_space<vmem>>, vector<1x128x128xf32>
    %12 = vector.shape_cast %11 : vector<1x128x128xf32> to vector<128x128xf32>
    %13 = arith.addf %12, %10 : vector<128x128xf32>
    %c0_11 = arith.constant 0 : index
    %c0_12 = arith.constant 0 : index
    %c0_13 = arith.constant 0 : index
    %14 = vector.load %arg6[%c0_11, %c0_12, %c0_13] : memref<1x128x128xf32, #tpu.memory_space<vmem>>, vector<1x128x128xf32>
    %15 = vector.shape_cast %14 : vector<1x128x128xf32> to vector<128x128xf32>
    %16 = vector.shape_cast %13 : vector<128x128xf32> to vector<1x128x128xf32>
    tpu.vector_store %arg6[%c0_11, %c0_12, %c0_13], %16 {strides = array<i32>} : memref<1x128x128xf32, #tpu.memory_space<vmem>>, vector<1x128x128xf32>,
    return
  }
  func.func @transform_0(%arg0: i32, %arg1: i32) -> (i32, i32, i32) {
    %c0_i32 = arith.constant 0 : i32
    %c0_i32_0 = arith.constant 0 : i32
    return %arg0, %arg1, %c0_i32 : i32, i32, i32
  }
  func.func @transform_1(%arg0: i32, %arg1: i32) -> (i32, i32, i32) {
    %c0_i32 = arith.constant 0 : i32
    %c0_i32_0 = arith.constant 0 : i32
    %c0_i32_1 = arith.constant 0 : i32
    return %arg0, %c0_i32, %c0_i32_0 : i32, i32, i32
  }
  func.func @transform_2(%arg0: i32, %arg1: i32) -> (i32, i32, i32) {
    %c0_i32 = arith.constant 0 : i32
    %c0_i32_0 = arith.constant 0 : i32
    %c0_i32_1 = arith.constant 0 : i32
    return %arg0, %c0_i32, %c0_i32_0 : i32, i32, i32
  }
  func.func @transform_3(%arg0: i32, %arg1: i32) -> (i32, i32, i32) {
    %c0_i32 = arith.constant 0 : i32
    %c0_i32_0 = arith.constant 0 : i32
    return %arg0, %arg1, %c0_i32 : i32, i32, i32
  }
  func.func @transform_4(%arg0: i32, %arg1: i32) -> (i32, i32, i32) {
    %c0_i32 = arith.constant 0 : i32
    %c0_i32_0 = arith.constant 0 : i32
    return %arg0, %arg1, %c0_i32 : i32, i32, i32
  }
}

</mosaic_0001>

<llo_original>
// kernel: _lambda_.5
$region0: #{_lambda_.5}
  #allocation0 [shape = 'u32[]', space=smem, size = 0x4, offset = 0x4, fixed_abs, tag = 'smem constant byte address 0x4 - core index']
  #allocation1 [shape = 'u32[144,128]{1,0:T(1,128)}', space=vmem, size = 0x12000, scoped, tag = 'internal scratch']
  %s0 = inlined_call_operand.vmem [shape: bf16[2,256,128], index: 0, kind: input, shape index: {}]
  %s1 = inlined_call_operand.vmem [shape: f32[2,1,128], index: 1, kind: input, shape index: {}]
  %s2 = inlined_call_operand.vmem [shape: f32[2,1,128], index: 2, kind: input, shape index: {}]
  %s3 = inlined_call_operand.vmem [shape: f32[2,256,128], index: 3, kind: input, shape index: {}]
  %s4 = inlined_call_operand.vmem [shape: f32[2,256,128], index: 4, kind: output, shape index: {}]
  %s5 = sld [smem:[#allocation0]]
  $region49: #{_lambda_.5} parent=0
    _
  %s7 = ssub.s32 1, %s5
  %s8 = scalar_select 0, %s7, %s5
  loop: start=0, step=1, limit=6
  $region2: #{_lambda_.5} parent=0 // loop_pre_header
    _
  $region3: #{_lambda_.5} parent=0 // loop_header
    %s10 = sphi 0, %s14
    %p11 = scmp.ge.s32.totalorder %s10, 6
    %s17 = sphi 0, %s29
    %s18 = sphi 0, %s25
    %s19 = sphi 0, %s17
    %s20 = sphi 0, %s18
    %s21 = sphi 0, %s19
    %s22 = sphi 0, %s20
    %s34 = sphi 0, %s36
    %s37 = sphi 0, %s34
    %s38 = sphi 0, %s37
    %s54 = sphi 0, %s38
    %s60 = sphi 0, %s62
    %s63 = sphi 0, %s60
    %s64 = sphi 0, %s63
    %s80 = sphi 0, %s64
    %s86 = sphi 0, %s88
    %s89 = sphi 0, %s86
    %s90 = sphi 0, %s89
    %s106 = sphi 0, %s90
    %s114 = sphi 0, %s116
    %s117 = sphi 0, %s114
    %s118 = sphi 0, %s117
    %s134 = sphi 0, %s118
    %s142 = sphi 0, %s144
    %s145 = sphi 0, %s142
    %s146 = sphi 0, %s145
    %s162 = sphi 0, %s146
  $region4: #{_lambda_.5} parent=0 // loop_header_branch
    %13 = sbr.rel (%p11) target = $region8
  $region5: #{_lambda_.5} parent=0 // loop_body
    %s15 = ssub.s32 %s10, 1
    %s16 = ssub.s32 %s10, 2
    %s23 = sadd.s32 1, %s18
    %p24 = scmp.ge.s32.totalorder %s23, 2
    %s25 = scalar_select %p24, 0, %s23
    %s26 = sadd.s32 1, %s17
    %s27 = scalar_select %p24, %s26, %s17
    %p28 = scmp.ge.s32.totalorder %s27, 2
    %s29 = scalar_select %p28, 0, %s27
    %s30 = ssub.s32 %s17, %s29
    %s31 = ssub.s32 %s18, %s25
    %s32 = sor.u32 %s30, %s31
    %p33 = scmp.eq.s32.totalorder %s32, 0
    %s35 = sadd.s32 %s34, 1
    %s36 = scalar_select %p33, %s34, %s35
    %p39 = pneg %p33
    %p40 = scmp.eq.s32.totalorder %s10, 3
    %p41 = por %p39, %p40
    %p42 = scmp.ne.s32.totalorder %s34, %s37
    %p43 = scmp.eq.s32.totalorder %s10, 0
    %p44 = por %p42, %p43
    %p45 = scmp.ne.s32.totalorder %s34, %s37
    %p46 = scmp.eq.s32.totalorder %s15, 3
    %p47 = por %p45, %p46
    %p48 = scmp.ne.s32.totalorder %s37, %s38
    %p49 = scmp.eq.s32.totalorder %s15, 0
    %p50 = por %p48, %p49
    %p51 = scmp.ne.s32.totalorder %s37, %s38
    %p52 = scmp.eq.s32.totalorder %s16, 3
    %p53 = por %p51, %p52
    %p55 = scmp.ne.s32.totalorder %s38, %s54
    %p56 = scmp.eq.s32.totalorder %s16, 0
    %p57 = por %p55, %p56
    %s58 = ssub.s32 %s17, %s29
    %p59 = scmp.eq.s32.totalorder %s58, 0
    %s61 = sadd.s32 %s60, 1
    %s62 = scalar_select %p59, %s60, %s61
    %p65 = pneg %p59
    %p66 = scmp.eq.s32.totalorder %s10, 3
    %p67 = por %p65, %p66
    %p68 = scmp.ne.s32.totalorder %s60, %s63
    %p69 = scmp.eq.s32.totalorder %s10, 0
    %p70 = por %p68, %p69
    %p71 = scmp.ne.s32.totalorder %s60, %s63
    %p72 = scmp.eq.s32.totalorder %s15, 3
    %p73 = por %p71, %p72
    %p74 = scmp.ne.s32.totalorder %s63, %s64
    %p75 = scmp.eq.s32.totalorder %s15, 0
    %p76 = por %p74, %p75
    %p77 = scmp.ne.s32.totalorder %s63, %s64
    %p78 = scmp.eq.s32.totalorder %s16, 3
    %p79 = por %p77, %p78
    %p81 = scmp.ne.s32.totalorder %s64, %s80
    %p82 = scmp.eq.s32.totalorder %s16, 0
    %p83 = por %p81, %p82
    %s84 = ssub.s32 %s17, %s29
    %p85 = scmp.eq.s32.totalorder %s84, 0
    %s87 = sadd.s32 %s86, 1
    %s88 = scalar_select %p85, %s86, %s87
    %p91 = pneg %p85
    %p92 = scmp.eq.s32.totalorder %s10, 3
    %p93 = por %p91, %p92
    %p94 = scmp.ne.s32.totalorder %s86, %s89
    %p95 = scmp.eq.s32.totalorder %s10, 0
    %p96 = por %p94, %p95
    %p97 = scmp.ne.s32.totalorder %s86, %s89
    %p98 = scmp.eq.s32.totalorder %s15, 3
    %p99 = por %p97, %p98
    %p100 = scmp.ne.s32.totalorder %s89, %s90
    %p101 = scmp.eq.s32.totalorder %s15, 0
    %p102 = por %p100, %p101
    %p103 = scmp.ne.s32.totalorder %s89, %s90
    %p104 = scmp.eq.s32.totalorder %s16, 3
    %p105 = por %p103, %p104
    %p107 = scmp.ne.s32.totalorder %s90, %s106
    %p108 = scmp.eq.s32.totalorder %s16, 0
    %p109 = por %p107, %p108
    %s110 = ssub.s32 %s17, %s29
    %s111 = ssub.s32 %s18, %s25
    %s112 = sor.u32 %s110, %s111
    %p113 = scmp.eq.s32.totalorder %s112, 0
    %s115 = sadd.s32 %s114, 1
    %s116 = scalar_select %p113, %s114, %s115
    %p119 = pneg %p113
    %p120 = scmp.eq.s32.totalorder %s10, 3
    %p121 = por %p119, %p120
    %p122 = scmp.ne.s32.totalorder %s114, %s117
    %p123 = scmp.eq.s32.totalorder %s10, 0
    %p124 = por %p122, %p123
    %p125 = scmp.ne.s32.totalorder %s114, %s117
    %p126 = scmp.eq.s32.totalorder %s15, 3
    %p127 = por %p125, %p126
    %p128 = scmp.ne.s32.totalorder %s117, %s118
    %p129 = scmp.eq.s32.totalorder %s15, 0
    %p130 = por %p128, %p129
    %p131 = scmp.ne.s32.totalorder %s117, %s118
    %p132 = scmp.eq.s32.totalorder %s16, 3
    %p133 = por %p131, %p132
    %p135 = scmp.ne.s32.totalorder %s118, %s134
    %p136 = scmp.eq.s32.totalorder %s16, 0
    %p137 = por %p135, %p136
    %s138 = ssub.s32 %s17, %s29
    %s139 = ssub.s32 %s18, %s25
    %s140 = sor.u32 %s138, %s139
    %p141 = scmp.eq.s32.totalorder %s140, 0
    %s143 = sadd.s32 %s142, 1
    %s144 = scalar_select %p141, %s142, %s143
    %p147 = pneg %p141
    %p148 = scmp.eq.s32.totalorder %s10, 3
    %p149 = por %p147, %p148
    %p150 = scmp.ne.s32.totalorder %s142, %s145
    %p151 = scmp.eq.s32.totalorder %s10, 0
    %p152 = por %p150, %p151
    %p153 = scmp.ne.s32.totalorder %s142, %s145
    %p154 = scmp.eq.s32.totalorder %s15, 3
    %p155 = por %p153, %p154
    %p156 = scmp.ne.s32.totalorder %s145, %s146
    %p157 = scmp.eq.s32.totalorder %s15, 0
    %p158 = por %p156, %p157
    %p159 = scmp.ne.s32.totalorder %s145, %s146
    %p160 = scmp.eq.s32.totalorder %s16, 3
    %p161 = por %p159, %p160
    %p163 = scmp.ne.s32.totalorder %s146, %s162
    %p164 = scmp.eq.s32.totalorder %s16, 0
    %p165 = por %p163, %p164
    %p166 = scmp.le.s32.totalorder 1, %s10
    %p167 = scmp.lt.s32.totalorder %s10, 5
    %p168 = pnand %p166, %p167
    %p169 = pneg %p168
    // Predicated region
    $region9: #{_lambda_.5} parent=5 // pred_check
      _
    $region10: #{_lambda_.5} parent=5 // pred_check_branch
      %171 = sbr.rel (%p168) target = $region12
    $region11: #{_lambda_.5} parent=5 // pred_region
      %s172 = ssub.s32 %s10, 1
    $region12: #{_lambda_.5} parent=5 // pred_fallthru
      _
    %p173 = scmp.lt.s32.totalorder %s10, 4
    // Predicated region
    $region13: #{_lambda_.5} parent=5 // pred_check
      %p174 = pneg %p173
    $region14: #{_lambda_.5} parent=5 // pred_check_branch
      %176 = sbr.rel (%p174) target = $region16
    $region15: #{_lambda_.5} parent=5 // pred_region
      // Predicated region
      $region17: #{_lambda_.5} parent=15 // pred_check
        %p177 = pneg %p44
      $region18: #{_lambda_.5} parent=15 // pred_check_branch
        %179 = sbr.rel (%p177) target = $region20
      $region19: #{_lambda_.5} parent=15 // pred_region
        %s180 = smul.u32 16, %s18
        %p181 = scmp.lt.s32.totalorder %s17, 1
        %s182 = scalar_select %p181, %s17, 1
        %p183 = scmp.lt.s32.totalorder %s180, 31
        %s184 = scalar_select %p183, %s180, 31
        %s185 = smul.addr %s182, 32
        %s186 = sadd.s32 %s184, %s185
        %s187 = smul.addr %s186, 4
        %s188 = scalar_lea.vmem %s0, %s187
        %s189 = smul.u32 16, %s18
      $region20: #{_lambda_.5} parent=15 // pred_fallthru
        _
      // Predicated region
      $region21: #{_lambda_.5} parent=15 // pred_check
        %p190 = pneg %p70
      $region22: #{_lambda_.5} parent=15 // pred_check_branch
        %192 = sbr.rel (%p190) target = $region24
      $region23: #{_lambda_.5} parent=15 // pred_region
        %p193 = scmp.lt.s32.totalorder %s17, 1
        %s194 = scalar_select %p193, %s17, 1
        %s195 = scalar_lea.vmem %s1, %s194
      $region24: #{_lambda_.5} parent=15 // pred_fallthru
        _
      // Predicated region
      $region25: #{_lambda_.5} parent=15 // pred_check
        %p196 = pneg %p96
      $region26: #{_lambda_.5} parent=15 // pred_check_branch
        %198 = sbr.rel (%p196) target = $region28
      $region27: #{_lambda_.5} parent=15 // pred_region
        %p199 = scmp.lt.s32.totalorder %s17, 1
        %s200 = scalar_select %p199, %s17, 1
        %s201 = scalar_lea.vmem %s2, %s200
      $region28: #{_lambda_.5} parent=15 // pred_fallthru
        _
      // Predicated region
      $region29: #{_lambda_.5} parent=15 // pred_check
        %p202 = pneg %p124
      $region30: #{_lambda_.5} parent=15 // pred_check_branch
        %204 = sbr.rel (%p202) target = $region32
      $region31: #{_lambda_.5} parent=15 // pred_region
        %s205 = smul.u32 16, %s18
        %p206 = scmp.lt.s32.totalorder %s17, 1
        %s207 = scalar_select %p206, %s17, 1
        %p208 = scmp.lt.s32.totalorder %s205, 31
        %s209 = scalar_select %p208, %s205, 31
        %s210 = smul.addr %s207, 32
        %s211 = sadd.s32 %s209, %s210
        %s212 = smul.addr %s211, 8
        %s213 = scalar_lea.vmem %s3, %s212
        %s214 = smul.u32 16, %s18
      $region32: #{_lambda_.5} parent=15 // pred_fallthru
        _
    $region16: #{_lambda_.5} parent=5 // pred_fallthru
      _
    %p215 = scmp.le.s32.totalorder 1, %s10
    %p216 = scmp.lt.s32.totalorder %s10, 5
    %p217 = pnand %p215, %p216
    %p218 = pneg %p217
    // Predicated region
    $region33: #{_lambda_.5} parent=5 // pred_check
      _
    $region34: #{_lambda_.5} parent=5 // pred_check_branch
      %220 = sbr.rel (%p217) target = $region36
    $region35: #{_lambda_.5} parent=5 // pred_region
      %s221 = ssub.s32 %s10, 1
      %s222 = smul.u32 16, %s20
      %p223 = scmp.lt.s32.totalorder %s19, 1
      %s224 = scalar_select %p223, %s19, 1
      %p225 = scmp.lt.s32.totalorder %s222, 31
      %s226 = scalar_select %p225, %s222, 31
      %s227 = smul.addr %s224, 32
      %s228 = sadd.s32 %s226, %s227
      %s229 = smul.addr %s228, 4
      %s230 = scalar_lea.vmem %s0, %s229
      %p231 = pneg %p50
      %p232 = pneg %p47
      %p233 = scmp.lt.s32.totalorder %s19, 1
      %s234 = scalar_select %p233, %s19, 1
      %s235 = scalar_lea.vmem %s1, %s234
      %p236 = pneg %p76
      %p237 = pneg %p73
      %p238 = scmp.lt.s32.totalorder %s19, 1
      %s239 = scalar_select %p238, %s19, 1
      %s240 = scalar_lea.vmem %s2, %s239
      %p241 = pneg %p102
      %p242 = pneg %p99
      %s243 = smul.u32 16, %s20
      %p244 = scmp.lt.s32.totalorder %s19, 1
      %s245 = scalar_select %p244, %s19, 1
      %p246 = scmp.lt.s32.totalorder %s243, 31
      %s247 = scalar_select %p246, %s243, 31
      %s248 = smul.addr %s245, 32
      %s249 = sadd.s32 %s247, %s248
      %s250 = smul.addr %s249, 8
      %s251 = scalar_lea.vmem %s3, %s250
      %p252 = pneg %p130
      %p253 = pneg %p127
      %p254 = pneg %p158
      %p255 = pneg %p155
      %s256 = smul.u32 16, %s20
      %p257 = scmp.lt.s32.totalorder %s19, 1
      %s258 = scalar_select %p257, %s19, 1
      %p259 = scmp.lt.s32.totalorder %s256, 31
      %s260 = scalar_select %p259, %s256, 31
      %s261 = smul.addr %s258, 32
      %s262 = sadd.s32 %s260, %s261
      %s263 = smul.addr %s262, 8
      %s264 = scalar_lea.vmem %s4, %s263
      %s265 = smul.u32 16, %s20
      %p266 = scmp.lt.s32.totalorder %s19, 1
      %s267 = scalar_select %p266, %s19, 1
      %p268 = scmp.lt.s32.totalorder %s265, 31
      %s269 = scalar_select %p268, %s265, 31
      %s270 = smul.addr %s267, 32
      %s271 = sadd.s32 %s269, %s270
      %s272 = smul.addr %s271, 4
      %s273 = scalar_lea.vmem %s0, %s272
      %s274 = smul.u32 16, %s20
      %p275 = scmp.lt.s32.totalorder %s19, 1
      %s276 = scalar_select %p275, %s19, 1
      %s277 = scalar_lea.vmem %s1, %s276
      %p278 = scmp.lt.s32.totalorder %s19, 1
      %s279 = scalar_select %p278, %s19, 1
      %s280 = scalar_lea.vmem %s2, %s279
      %s281 = smul.u32 16, %s20
      %p282 = scmp.lt.s32.totalorder %s19, 1
      %s283 = scalar_select %p282, %s19, 1
      %p284 = scmp.lt.s32.totalorder %s281, 31
      %s285 = scalar_select %p284, %s281, 31
      %s286 = smul.addr %s283, 32
      %s287 = sadd.s32 %s285, %s286
      %s288 = smul.addr %s287, 8
      %s289 = scalar_lea.vmem %s3, %s288
      %s290 = smul.u32 16, %s20
      %s291 = smul.u32 16, %s20
      %p292 = scmp.lt.s32.totalorder %s19, 1
      %s293 = scalar_select %p292, %s19, 1
      %p294 = scmp.lt.s32.totalorder %s291, 31
      %s295 = scalar_select %p294, %s291, 31
      %s296 = smul.addr %s293, 32
      %s297 = sadd.s32 %s295, %s296
      %s298 = smul.addr %s297, 8
      %s299 = scalar_lea.vmem %s4, %s298
      %s300 = smul.u32 16, %s20
      %v301 = vld [vmem:[%s273] sm:$0xf]
      %v302 = vld [vmem:[%s273 + $0x4] sm:$0xf]
      %v303 = vld [vmem:[%s273 + $0x8] sm:$0xf]
      %v304 = vld [vmem:[%s273 + $0xc] sm:$0xf]
      %v305 = vld [vmem:[%s273 + $0x10] sm:$0xf]
      %v306 = vld [vmem:[%s273 + $0x14] sm:$0xf]
      %v307 = vld [vmem:[%s273 + $0x18] sm:$0xf]
      %v308 = vld [vmem:[%s273 + $0x1c] sm:$0xf]
      %v309 = vld [vmem:[%s273 + $0x20] sm:$0xf]
      %v310 = vld [vmem:[%s273 + $0x24] sm:$0xf]
      %v311 = vld [vmem:[%s273 + $0x28] sm:$0xf]
      %v312 = vld [vmem:[%s273 + $0x2c] sm:$0xf]
      %v313 = vld [vmem:[%s273 + $0x30] sm:$0xf]
      %v314 = vld [vmem:[%s273 + $0x34] sm:$0xf]
      %v315 = vld [vmem:[%s273 + $0x38] sm:$0xf]
      %v316 = vld [vmem:[%s273 + $0x3c] sm:$0xf]
      %v317 = vunpack.c.l.bf16 %v301
      %v318 = vunpack.c.l.bf16 %v302
      %v319 = vunpack.c.l.bf16 %v303
      %v320 = vunpack.c.l.bf16 %v304
      %v321 = vunpack.c.l.bf16 %v305
      %v322 = vunpack.c.l.bf16 %v306
      %v323 = vunpack.c.l.bf16 %v307
      %v324 = vunpack.c.l.bf16 %v308
      %v325 = vunpack.c.l.bf16 %v309
      %v326 = vunpack.c.l.bf16 %v310
      %v327 = vunpack.c.l.bf16 %v311
      %v328 = vunpack.c.l.bf16 %v312
      %v329 = vunpack.c.l.bf16 %v313
      %v330 = vunpack.c.l.bf16 %v314
      %v331 = vunpack.c.l.bf16 %v315
      %v332 = vunpack.c.l.bf16 %v316
      %v333 = vld [vmem:[%s277] sm:$0x1]
      %v335 = vlaneseq
      %v336 = vshrl.u32 %v335, 7
      %v337 = vsub.s32 0, %v336
      %v338 = vrot.slane %v333, %v337
      %v340 = vsub.f32 %v317, %v338
      %v341 = vsub.f32 %v318, %v338
      %v342 = vsub.f32 %v319, %v338
      %v343 = vsub.f32 %v320, %v338
      %v344 = vsub.f32 %v321, %v338
      %v345 = vsub.f32 %v322, %v338
      %v346 = vsub.f32 %v323, %v338
      %v347 = vsub.f32 %v324, %v338
      %v348 = vsub.f32 %v325, %v338
      %v349 = vsub.f32 %v326, %v338
      %v350 = vsub.f32 %v327, %v338
      %v351 = vsub.f32 %v328, %v338
      %v352 = vsub.f32 %v329, %v338
      %v353 = vsub.f32 %v330, %v338
      %v354 = vsub.f32 %v331, %v338
      %v355 = vsub.f32 %v332, %v338
      %v356 = vld [vmem:[%s280] sm:$0x1]
      %v358 = vlaneseq
      %v359 = vshrl.u32 %v358, 7
      %v360 = vsub.s32 0, %v359
      %v361 = vrot.slane %v356, %v360
      %v363 = vmul.f32 %v340, %v361
      %v364 = vmul.f32 %v341, %v361
      %v365 = vmul.f32 %v342, %v361
      %v366 = vmul.f32 %v343, %v361
      %v367 = vmul.f32 %v344, %v361
      %v368 = vmul.f32 %v345, %v361
      %v369 = vmul.f32 %v346, %v361
      %v370 = vmul.f32 %v347, %v361
      %v371 = vmul.f32 %v348, %v361
      %v372 = vmul.f32 %v349, %v361
      %v373 = vmul.f32 %v350, %v361
      %v374 = vmul.f32 %v351, %v361
      %v375 = vmul.f32 %v352, %v361
      %v376 = vmul.f32 %v353, %v361
      %v377 = vmul.f32 %v354, %v361
      %v378 = vmul.f32 %v355, %v361
      %v379 = vld [vmem:[%s289] sm:$0xff]
      %v380 = vld [vmem:[%s289 + $0x8] sm:$0xff]
      %v381 = vld [vmem:[%s289 + $0x10] sm:$0xff]
      %v382 = vld [vmem:[%s289 + $0x18] sm:$0xff]
      %v383 = vld [vmem:[%s289 + $0x20] sm:$0xff]
      %v384 = vld [vmem:[%s289 + $0x28] sm:$0xff]
      %v385 = vld [vmem:[%s289 + $0x30] sm:$0xff]
      %v386 = vld [vmem:[%s289 + $0x38] sm:$0xff]
      %v387 = vld [vmem:[%s289 + $0x40] sm:$0xff]
      %v388 = vld [vmem:[%s289 + $0x48] sm:$0xff]
      %v389 = vld [vmem:[%s289 + $0x50] sm:$0xff]
      %v390 = vld [vmem:[%s289 + $0x58] sm:$0xff]
      %v391 = vld [vmem:[%s289 + $0x60] sm:$0xff]
      %v392 = vld [vmem:[%s289 + $0x68] sm:$0xff]
      %v393 = vld [vmem:[%s289 + $0x70] sm:$0xff]
      %v394 = vld [vmem:[%s289 + $0x78] sm:$0xff]
      %v395 = vadd.f32 %v379, %v363
      %v396 = vadd.f32 %v380, %v364
      %v397 = vadd.f32 %v381, %v365
      %v398 = vadd.f32 %v382, %v366
      %v399 = vadd.f32 %v383, %v367
      %v400 = vadd.f32 %v384, %v368
      %v401 = vadd.f32 %v385, %v369
      %v402 = vadd.f32 %v386, %v370
      %v403 = vadd.f32 %v387, %v371
      %v404 = vadd.f32 %v388, %v372
      %v405 = vadd.f32 %v389, %v373
      %v406 = vadd.f32 %v390, %v374
      %v407 = vadd.f32 %v391, %v375
      %v408 = vadd.f32 %v392, %v376
      %v409 = vadd.f32 %v393, %v377
      %v410 = vadd.f32 %v394, %v378
      %411 = vst [vmem:[%s299] sm:$0xff] %v395
      %412 = vst [vmem:[%s299 + $0x8] sm:$0xff] %v396
      %413 = vst [vmem:[%s299 + $0x10] sm:$0xff] %v397
      %414 = vst [vmem:[%s299 + $0x18] sm:$0xff] %v398
      %415 = vst [vmem:[%s299 + $0x20] sm:$0xff] %v399
      %416 = vst [vmem:[%s299 + $0x28] sm:$0xff] %v400
      %417 = vst [vmem:[%s299 + $0x30] sm:$0xff] %v401
      %418 = vst [vmem:[%s299 + $0x38] sm:$0xff] %v402
      %419 = vst [vmem:[%s299 + $0x40] sm:$0xff] %v403
      %420 = vst [vmem:[%s299 + $0x48] sm:$0xff] %v404
      %421 = vst [vmem:[%s299 + $0x50] sm:$0xff] %v405
      %422 = vst [vmem:[%s299 + $0x58] sm:$0xff] %v406
      %423 = vst [vmem:[%s299 + $0x60] sm:$0xff] %v407
      %424 = vst [vmem:[%s299 + $0x68] sm:$0xff] %v408
      %425 = vst [vmem:[%s299 + $0x70] sm:$0xff] %v409
      %426 = vst [vmem:[%s299 + $0x78] sm:$0xff] %v410
      %s427 = smul.u32 16, %s20
      %p428 = scmp.lt.s32.totalorder %s19, 1
      %s429 = scalar_select %p428, %s19, 1
      %p430 = scmp.lt.s32.totalorder %s427, 31
      %s431 = scalar_select %p430, %s427, 31
      %s432 = smul.addr %s429, 32
      %s433 = sadd.s32 %s431, %s432
      %s434 = smul.addr %s433, 8
      %s435 = scalar_lea.vmem %s4, %s434
      // Predicated region
      $region37: #{_lambda_.5} parent=35 // pred_check
        %p436 = pneg %p155
      $region38: #{_lambda_.5} parent=35 // pred_check_branch
        %438 = sbr.rel (%p436) target = $region40
      $region39: #{_lambda_.5} parent=35 // pred_region
        %s439 = smul.u32 16, %s20
      $region40: #{_lambda_.5} parent=35 // pred_fallthru
        _
    $region36: #{_lambda_.5} parent=5 // pred_fallthru
      _
    %p440 = scmp.le.s32.totalorder 2, %s10
    // Predicated region
    $region41: #{_lambda_.5} parent=5 // pred_check
      %p441 = pneg %p440
    $region42: #{_lambda_.5} parent=5 // pred_check_branch
      %443 = sbr.rel (%p441) target = $region44
    $region43: #{_lambda_.5} parent=5 // pred_region
      %s444 = ssub.s32 %s10, 2
      // Predicated region
      $region45: #{_lambda_.5} parent=43 // pred_check
        %p445 = pneg %p161
      $region46: #{_lambda_.5} parent=43 // pred_check_branch
        %447 = sbr.rel (%p445) target = $region48
      $region47: #{_lambda_.5} parent=43 // pred_region
        %s448 = smul.u32 16, %s22
        %p449 = scmp.lt.s32.totalorder %s21, 1
        %s450 = scalar_select %p449, %s21, 1
        %p451 = scmp.lt.s32.totalorder %s448, 31
        %s452 = scalar_select %p451, %s448, 31
        %s453 = smul.addr %s450, 32
        %s454 = sadd.s32 %s452, %s453
        %s455 = smul.addr %s454, 8
        %s456 = scalar_lea.vmem %s4, %s455
      $region48: #{_lambda_.5} parent=43 // pred_fallthru
        _
    $region44: #{_lambda_.5} parent=5 // pred_fallthru
      _
  $region6: #{_lambda_.5} parent=0 // loop_footer
    %s14 = sadd.s32 1, %s10
  $region7: #{_lambda_.5} parent=0 // loop_footer_branch
    %9 = sbr.rel target = $region3
  $region8: #{_lambda_.5} parent=0 // loop_exit
    _

// kernel: _lambda_.3
$region0: #{_lambda_.3}
  #allocation0 [shape = 'u32[]', space=smem, size = 0x4, offset = 0x4, fixed_abs, tag = 'smem constant byte address 0x4 - core index']
  #allocation1 [shape = 'u32[144,128]{1,0:T(1,128)}', space=vmem, size = 0x12000, scoped, tag = 'internal scratch']
  %s0 = inlined_call_operand.vmem [shape: bf16[2,2,10,18,128], index: 0, kind: input, shape index: {}]
  %s1 = inlined_call_operand.vmem [shape: bf16[3,3,128,128], index: 1, kind: input, shape index: {}]
  %s2 = inlined_call_operand.vmem [shape: f32[1,128], index: 2, kind: input, shape index: {}]
  %s3 = inlined_call_operand.vmem [shape: bf16[2,256,128], index: 3, kind: output, shape index: {0}]
  %s4 = inlined_call_operand.vmem [shape: f32[2,2,2,128], index: 4, kind: output, shape index: {1}]
  %5 = xla_tuple %s3, %s4
  %s6 = sld [smem:[#allocation0]]
  $region53: #{_lambda_.3} parent=0
    _
  %s8 = ssub.s32 1, %s6
  %s9 = scalar_select 0, %s8, %s6
  loop: start=0, step=1, limit=6
  $region2: #{_lambda_.3} parent=0 // loop_pre_header
    _
  $region3: #{_lambda_.3} parent=0 // loop_header
    %s11 = sphi 0, %s15
    %p12 = scmp.ge.s32.totalorder %s11, 6
    %s18 = sphi 0, %s30
    %s19 = sphi 0, %s26
    %s20 = sphi 0, %s18
    %s21 = sphi 0, %s19
    %s22 = sphi 0, %s20
    %s23 = sphi 0, %s21
    %s35 = sphi 0, %s37
    %s38 = sphi 0, %s35
    %s39 = sphi 0, %s38
    %s55 = sphi 0, %s39
    %s59 = sphi 0, %s59
    %s61 = sphi 0, %s59
    %s62 = sphi 0, %s61
    %s76 = sphi 0, %s62
    %s80 = sphi 0, %s80
    %s82 = sphi 0, %s80
    %s83 = sphi 0, %s82
    %s97 = sphi 0, %s83
    %s105 = sphi 0, %s107
    %s108 = sphi 0, %s105
    %s109 = sphi 0, %s108
    %s125 = sphi 0, %s109
    %s133 = sphi 0, %s135
    %s136 = sphi 0, %s133
    %s137 = sphi 0, %s136
    %s153 = sphi 0, %s137
  $region4: #{_lambda_.3} parent=0 // loop_header_branch
    %14 = sbr.rel (%p12) target = $region8
  $region5: #{_lambda_.3} parent=0 // loop_body
    %s16 = ssub.s32 %s11, 1
    %s17 = ssub.s32 %s11, 2
    %s24 = sadd.s32 1, %s19
    %p25 = scmp.ge.s32.totalorder %s24, 2
    %s26 = scalar_select %p25, 0, %s24
    %s27 = sadd.s32 1, %s18
    %s28 = scalar_select %p25, %s27, %s18
    %p29 = scmp.ge.s32.totalorder %s28, 2
    %s30 = scalar_select %p29, 0, %s28
    %s31 = ssub.s32 %s18, %s30
    %s32 = ssub.s32 %s19, %s26
    %s33 = sor.u32 %s31, %s32
    %p34 = scmp.eq.s32.totalorder %s33, 0
    %s36 = sadd.s32 %s35, 1
    %s37 = scalar_select %p34, %s35, %s36
    %p40 = pneg %p34
    %p41 = scmp.eq.s32.totalorder %s11, 3
    %p42 = por %p40, %p41
    %p43 = scmp.ne.s32.totalorder %s35, %s38
    %p44 = scmp.eq.s32.totalorder %s11, 0
    %p45 = por %p43, %p44
    %p46 = scmp.ne.s32.totalorder %s35, %s38
    %p47 = scmp.eq.s32.totalorder %s16, 3
    %p48 = por %p46, %p47
    %p49 = scmp.ne.s32.totalorder %s38, %s39
    %p50 = scmp.eq.s32.totalorder %s16, 0
    %p51 = por %p49, %p50
    %p52 = scmp.ne.s32.totalorder %s38, %s39
    %p53 = scmp.eq.s32.totalorder %s17, 3
    %p54 = por %p52, %p53
    %p56 = scmp.ne.s32.totalorder %s39, %s55
    %p57 = scmp.eq.s32.totalorder %s17, 0
    %p58 = por %p56, %p57
    %s60 = sadd.s32 %s59, 1
    %p63 = scmp.eq.s32.totalorder %s11, 3
    %p64 = scmp.ne.s32.totalorder %s59, %s61
    %p65 = scmp.eq.s32.totalorder %s11, 0
    %p66 = por %p64, %p65
    %p67 = scmp.ne.s32.totalorder %s59, %s61
    %p68 = scmp.eq.s32.totalorder %s16, 3
    %p69 = por %p67, %p68
    %p70 = scmp.ne.s32.totalorder %s61, %s62
    %p71 = scmp.eq.s32.totalorder %s16, 0
    %p72 = por %p70, %p71
    %p73 = scmp.ne.s32.totalorder %s61, %s62
    %p74 = scmp.eq.s32.totalorder %s17, 3
    %p75 = por %p73, %p74
    %p77 = scmp.ne.s32.totalorder %s62, %s76
    %p78 = scmp.eq.s32.totalorder %s17, 0
    %p79 = por %p77, %p78
    %s81 = sadd.s32 %s80, 1
    %p84 = scmp.eq.s32.totalorder %s11, 3
    %p85 = scmp.ne.s32.totalorder %s80, %s82
    %p86 = scmp.eq.s32.totalorder %s11, 0
    %p87 = por %p85, %p86
    %p88 = scmp.ne.s32.totalorder %s80, %s82
    %p89 = scmp.eq.s32.totalorder %s16, 3
    %p90 = por %p88, %p89
    %p91 = scmp.ne.s32.totalorder %s82, %s83
    %p92 = scmp.eq.s32.totalorder %s16, 0
    %p93 = por %p91, %p92
    %p94 = scmp.ne.s32.totalorder %s82, %s83
    %p95 = scmp.eq.s32.totalorder %s17, 3
    %p96 = por %p94, %p95
    %p98 = scmp.ne.s32.totalorder %s83, %s97
    %p99 = scmp.eq.s32.totalorder %s17, 0
    %p100 = por %p98, %p99
    %s101 = ssub.s32 %s18, %s30
    %s102 = ssub.s32 %s19, %s26
    %s103 = sor.u32 %s101, %s102
    %p104 = scmp.eq.s32.totalorder %s103, 0
    %s106 = sadd.s32 %s105, 1
    %s107 = scalar_select %p104, %s105, %s106
    %p110 = pneg %p104
    %p111 = scmp.eq.s32.totalorder %s11, 3
    %p112 = por %p110, %p111
    %p113 = scmp.ne.s32.totalorder %s105, %s108
    %p114 = scmp.eq.s32.totalorder %s11, 0
    %p115 = por %p113, %p114
    %p116 = scmp.ne.s32.totalorder %s105, %s108
    %p117 = scmp.eq.s32.totalorder %s16, 3
    %p118 = por %p116, %p117
    %p119 = scmp.ne.s32.totalorder %s108, %s109
    %p120 = scmp.eq.s32.totalorder %s16, 0
    %p121 = por %p119, %p120
    %p122 = scmp.ne.s32.totalorder %s108, %s109
    %p123 = scmp.eq.s32.totalorder %s17, 3
    %p124 = por %p122, %p123
    %p126 = scmp.ne.s32.totalorder %s109, %s125
    %p127 = scmp.eq.s32.totalorder %s17, 0
    %p128 = por %p126, %p127
    %s129 = ssub.s32 %s18, %s30
    %s130 = ssub.s32 %s19, %s26
    %s131 = sor.u32 %s129, %s130
    %p132 = scmp.eq.s32.totalorder %s131, 0
    %s134 = sadd.s32 %s133, 1
    %s135 = scalar_select %p132, %s133, %s134
    %p138 = pneg %p132
    %p139 = scmp.eq.s32.totalorder %s11, 3
    %p140 = por %p138, %p139
    %p141 = scmp.ne.s32.totalorder %s133, %s136
    %p142 = scmp.eq.s32.totalorder %s11, 0
    %p143 = por %p141, %p142
    %p144 = scmp.ne.s32.totalorder %s133, %s136
    %p145 = scmp.eq.s32.totalorder %s16, 3
    %p146 = por %p144, %p145
    %p147 = scmp.ne.s32.totalorder %s136, %s137
    %p148 = scmp.eq.s32.totalorder %s16, 0
    %p149 = por %p147, %p148
    %p150 = scmp.ne.s32.totalorder %s136, %s137
    %p151 = scmp.eq.s32.totalorder %s17, 3
    %p152 = por %p150, %p151
    %p154 = scmp.ne.s32.totalorder %s137, %s153
    %p155 = scmp.eq.s32.totalorder %s17, 0
    %p156 = por %p154, %p155
    %p157 = scmp.le.s32.totalorder 1, %s11
    %p158 = scmp.lt.s32.totalorder %s11, 5
    %p159 = pnand %p157, %p158
    %p160 = pneg %p159
    // Predicated region
    $region9: #{_lambda_.3} parent=5 // pred_check
      _
    $region10: #{_lambda_.3} parent=5 // pred_check_branch
      %162 = sbr.rel (%p159) target = $region12
    $region11: #{_lambda_.3} parent=5 // pred_region
      %s163 = ssub.s32 %s11, 1
      // Predicated region
      $region13: #{_lambda_.3} parent=11 // pred_check
        %p164 = pneg %p72
      $region14: #{_lambda_.3} parent=11 // pred_check_branch
        %166 = sbr.rel (%p164) target = $region16
      $region15: #{_lambda_.3} parent=11 // pred_region
        _
      $region16: #{_lambda_.3} parent=11 // pred_fallthru
        _
      // Predicated region
      $region17: #{_lambda_.3} parent=11 // pred_check
        %p167 = pneg %p93
      $region18: #{_lambda_.3} parent=11 // pred_check_branch
        %169 = sbr.rel (%p167) target = $region20
      $region19: #{_lambda_.3} parent=11 // pred_region
        _
      $region20: #{_lambda_.3} parent=11 // pred_fallthru
        _
    $region12: #{_lambda_.3} parent=5 // pred_fallthru
      _
    %p170 = scmp.lt.s32.totalorder %s11, 4
    // Predicated region
    $region21: #{_lambda_.3} parent=5 // pred_check
      %p171 = pneg %p170
    $region22: #{_lambda_.3} parent=5 // pred_check_branch
      %173 = sbr.rel (%p171) target = $region24
    $region23: #{_lambda_.3} parent=5 // pred_region
      // Predicated region
      $region25: #{_lambda_.3} parent=23 // pred_check
        %p174 = pneg %p45
      $region26: #{_lambda_.3} parent=23 // pred_check_branch
        %176 = sbr.rel (%p174) target = $region28
      $region27: #{_lambda_.3} parent=23 // pred_region
        %p177 = scmp.lt.s32.totalorder %s18, 1
        %s178 = scalar_select %p177, %s18, 1
        %p179 = scmp.lt.s32.totalorder %s19, 1
        %s180 = scalar_select %p179, %s19, 1
        %s181 = smul.addr %s180, 30
        %s182 = smul.addr %s178, 60
        %s183 = sadd.s32 %s181, %s182
        %s184 = smul.addr %s183, 4
        %s185 = scalar_lea.vmem %s0, %s184
      $region28: #{_lambda_.3} parent=23 // pred_fallthru
        _
    $region24: #{_lambda_.3} parent=5 // pred_fallthru
      _
    %p186 = scmp.le.s32.totalorder 1, %s11
    %p187 = scmp.lt.s32.totalorder %s11, 5
    %p188 = pnand %p186, %p187
    %p189 = pneg %p188
    // Predicated region
    $region29: #{_lambda_.3} parent=5 // pred_check
      _
    $region30: #{_lambda_.3} parent=5 // pred_check_branch
      %191 = sbr.rel (%p188) target = $region32
    $region31: #{_lambda_.3} parent=5 // pred_region
      %s192 = ssub.s32 %s11, 1
      %p193 = scmp.lt.s32.totalorder %s20, 1
      %s194 = scalar_select %p193, %s20, 1
      %p195 = scmp.lt.s32.totalorder %s21, 1
      %s196 = scalar_select %p195, %s21, 1
      %s197 = smul.addr %s196, 30
      %s198 = smul.addr %s194, 60
      %s199 = sadd.s32 %s197, %s198
      %s200 = smul.addr %s199, 4
      %s201 = scalar_lea.vmem %s0, %s200
      %p202 = pneg %p51
      %p203 = pneg %p48
      %p204 = pneg %p72
      %p205 = pneg %p69
      %p206 = pneg %p93
      %p207 = pneg %p90
      %p208 = pneg %p121
      %p209 = pneg %p118
      %s210 = smul.u32 16, %s21
      %p211 = scmp.lt.s32.totalorder %s20, 1
      %s212 = scalar_select %p211, %s20, 1
      %p213 = scmp.lt.s32.totalorder %s210, 31
      %s214 = scalar_select %p213, %s210, 31
      %s215 = smul.addr %s212, 32
      %s216 = sadd.s32 %s214, %s215
      %s217 = smul.addr %s216, 4
      %s218 = scalar_lea.vmem %s3, %s217
      %p219 = pneg %p149
      %p220 = pneg %p146
      %p221 = scmp.lt.s32.totalorder %s20, 1
      %s222 = scalar_select %p221, %s20, 1
      %p223 = scmp.lt.s32.totalorder %s21, 1
      %s224 = scalar_select %p223, %s21, 1
      %s225 = smul.addr %s222, 2
      %s226 = sadd.s32 %s224, %s225
      %s227 = smul.addr %s226, 2
      %s228 = scalar_lea.vmem %s4, %s227
      %p229 = scmp.lt.s32.totalorder %s20, 1
      %s230 = scalar_select %p229, %s20, 1
      %p231 = scmp.lt.s32.totalorder %s21, 1
      %s232 = scalar_select %p231, %s21, 1
      %s233 = smul.addr %s232, 30
      %s234 = smul.addr %s230, 60
      %s235 = sadd.s32 %s233, %s234
      %s236 = smul.addr %s235, 4
      %s237 = scalar_lea.vmem %s0, %s236
      %s238 = smul.u32 16, %s21
      %p239 = scmp.lt.s32.totalorder %s20, 1
      %s240 = scalar_select %p239, %s20, 1
      %p241 = scmp.lt.s32.totalorder %s238, 31
      %s242 = scalar_select %p241, %s238, 31
      %s243 = smul.addr %s240, 32
      %s244 = sadd.s32 %s242, %s243
      %s245 = smul.addr %s244, 4
      %s246 = scalar_lea.vmem %s3, %s245
      %s247 = smul.u32 16, %s21
      %p248 = scmp.lt.s32.totalorder %s20, 1
      %s249 = scalar_select %p248, %s20, 1
      %p250 = scmp.lt.s32.totalorder %s21, 1
      %s251 = scalar_select %p250, %s21, 1
      %s252 = smul.addr %s249, 2
      %s253 = sadd.s32 %s251, %s252
      %s254 = smul.addr %s253, 2
      %s255 = scalar_lea.vmem %s4, %s254
      %v257 = vld [vmem:[%s237] sm:$0xf]
      %v258 = vld [vmem:[%s237 + $0x4] sm:$0xf]
      %v259 = vld [vmem:[%s237 + $0x8] sm:$0x1]
      %v260 = vld [vmem:[%s237 + $0xc] sm:$0xf]
      %v261 = vld [vmem:[%s237 + $0x10] sm:$0xf]
      %v262 = vld [vmem:[%s237 + $0x14] sm:$0x1]
      %v263 = vld [vmem:[%s237 + $0x18] sm:$0xf]
      %v264 = vld [vmem:[%s237 + $0x1c] sm:$0xf]
      %v265 = vld [vmem:[%s237 + $0x20] sm:$0x1]
      %v266 = vld [vmem:[%s237 + $0x24] sm:$0xf]
      %v267 = vld [vmem:[%s237 + $0x28] sm:$0xf]
      %v268 = vld [vmem:[%s237 + $0x2c] sm:$0x1]
      %v269 = vld [vmem:[%s237 + $0x30] sm:$0xf]
      %v270 = vld [vmem:[%s237 + $0x34] sm:$0xf]
      %v271 = vld [vmem:[%s237 + $0x38] sm:$0x1]
      %v272 = vld [vmem:[%s237 + $0x3c] sm:$0xf]
      %v273 = vld [vmem:[%s237 + $0x40] sm:$0xf]
      %v274 = vld [vmem:[%s237 + $0x44] sm:$0x1]
      %v275 = vld [vmem:[%s237 + $0x48] sm:$0xf]
      %v276 = vld [vmem:[%s237 + $0x4c] sm:$0xf]
      %v277 = vld [vmem:[%s237 + $0x50] sm:$0x1]
      %v278 = vld [vmem:[%s237 + $0x54] sm:$0xf]
      %v279 = vld [vmem:[%s237 + $0x58] sm:$0xf]
      %v280 = vld [vmem:[%s237 + $0x5c] sm:$0x1]
      %v281 = vld [vmem:[%s237 + $0x60] sm:$0xf]
      %v282 = vld [vmem:[%s237 + $0x64] sm:$0xf]
      %v283 = vld [vmem:[%s237 + $0x68] sm:$0x1]
      %v284 = vld [vmem:[%s237 + $0x6c] sm:$0xf]
      %v285 = vld [vmem:[%s237 + $0x70] sm:$0xf]
      %v286 = vld [vmem:[%s237 + $0x74] sm:$0x1]
      %v287 = vld [vmem:[%s1] sm:$0xf]
      %v288 = vld [vmem:[%s1 + $0x4] sm:$0xf]
      %v289 = vld [vmem:[%s1 + $0x8] sm:$0xf]
      %v290 = vld [vmem:[%s1 + $0xc] sm:$0xf]
      %v291 = vld [vmem:[%s1 + $0x10] sm:$0xf]
      %v292 = vld [vmem:[%s1 + $0x14] sm:$0xf]
      %v293 = vld [vmem:[%s1 + $0x18] sm:$0xf]
      %v294 = vld [vmem:[%s1 + $0x1c] sm:$0xf]
      %v295 = vld [vmem:[%s1 + $0x20] sm:$0xf]
      %v296 = vld [vmem:[%s1 + $0x24] sm:$0xf]
      %v297 = vld [vmem:[%s1 + $0x28] sm:$0xf]
      %v298 = vld [vmem:[%s1 + $0x2c] sm:$0xf]
      %v299 = vld [vmem:[%s1 + $0x30] sm:$0xf]
      %v300 = vld [vmem:[%s1 + $0x34] sm:$0xf]
      %v301 = vld [vmem:[%s1 + $0x38] sm:$0xf]
      %v302 = vld [vmem:[%s1 + $0x3c] sm:$0xf]
      %vm303 = vsmask.f32 3328
      %vm304 = vsmask.f32 7440
      %vm305 = vmor %vm303, %vm304
      %v307 = vshrl.u32 %v257, 16
      %v309 = vrot.slane %v307, 4
      %v310 = vshll.u32 %v257, 16
      %v312 = vrot.slane %v310, 5
      %v313 = vor.u32 %v309, %v312
      %v314 = vrot.slane %v313, 4
      %v316 = vshll.u32 %v258, 16
      %v318 = vrot.slane %v316, 5
      %v319 = vsel %vm305, %v314, %v318
      %v320 = vshrl.u32 %v258, 16
      %v322 = vrot.slane %v320, 4
      %v323 = vor.u32 %v322, %v318
      %v324 = vrot.slane %v323, 4
      %v326 = vshll.u32 %v259, 16
      %v328 = vrot.slane %v326, 5
      %v329 = vsel %vm305, %v324, %v328
      %v331 = vshrl.u32 %v260, 16
      %v333 = vrot.slane %v331, 4
      %v334 = vshll.u32 %v260, 16
      %v336 = vrot.slane %v334, 5
      %v337 = vor.u32 %v333, %v336
      %v338 = vrot.slane %v337, 4
      %v340 = vshll.u32 %v261, 16
      %v342 = vrot.slane %v340, 5
      %v343 = vsel %vm305, %v338, %v342
      %v344 = vshrl.u32 %v261, 16
      %v346 = vrot.slane %v344, 4
      %v347 = vor.u32 %v346, %v342
      %v348 = vrot.slane %v347, 4
      %v350 = vshll.u32 %v262, 16
      %v352 = vrot.slane %v350, 5
      %v353 = vsel %vm305, %v348, %v352
      %v355 = vshrl.u32 %v263, 16
      %v357 = vrot.slane %v355, 4
      %v358 = vshll.u32 %v263, 16
      %v360 = vrot.slane %v358, 5
      %v361 = vor.u32 %v357, %v360
      %v362 = vrot.slane %v361, 4
      %v364 = vshll.u32 %v264, 16
      %v366 = vrot.slane %v364, 5
      %v367 = vsel %vm305, %v362, %v366
      %v368 = vshrl.u32 %v264, 16
      %v370 = vrot.slane %v368, 4
      %v371 = vor.u32 %v370, %v366
      %v372 = vrot.slane %v371, 4
      %v374 = vshll.u32 %v265, 16
      %v376 = vrot.slane %v374, 5
      %v377 = vsel %vm305, %v372, %v376
      %v379 = vshrl.u32 %v266, 16
      %v381 = vrot.slane %v379, 4
      %v382 = vshll.u32 %v266, 16
      %v384 = vrot.slane %v382, 5
      %v385 = vor.u32 %v381, %v384
      %v386 = vrot.slane %v385, 4
      %v388 = vshll.u32 %v267, 16
      %v390 = vrot.slane %v388, 5
      %v391 = vsel %vm305, %v386, %v390
      %v392 = vshrl.u32 %v267, 16
      %v394 = vrot.slane %v392, 4
      %v395 = vor.u32 %v394, %v390
      %v396 = vrot.slane %v395, 4
      %v398 = vshll.u32 %v268, 16
      %v400 = vrot.slane %v398, 5
      %v401 = vsel %vm305, %v396, %v400
      %v403 = vshrl.u32 %v269, 16
      %v405 = vrot.slane %v403, 4
      %v406 = vshll.u32 %v269, 16
      %v408 = vrot.slane %v406, 5
      %v409 = vor.u32 %v405, %v408
      %v410 = vrot.slane %v409, 4
      %v412 = vshll.u32 %v270, 16
      %v414 = vrot.slane %v412, 5
      %v415 = vsel %vm305, %v410, %v414
      %v416 = vshrl.u32 %v270, 16
      %v418 = vrot.slane %v416, 4
      %v419 = vor.u32 %v418, %v414
      %v420 = vrot.slane %v419, 4
      %v422 = vshll.u32 %v271, 16
      %v424 = vrot.slane %v422, 5
      %v425 = vsel %vm305, %v420, %v424
      %v427 = vshrl.u32 %v272, 16
      %v429 = vrot.slane %v427, 4
      %v430 = vshll.u32 %v272, 16
      %v432 = vrot.slane %v430, 5
      %v433 = vor.u32 %v429, %v432
      %v434 = vrot.slane %v433, 4
      %v436 = vshll.u32 %v273, 16
      %v438 = vrot.slane %v436, 5
      %v439 = vsel %vm305, %v434, %v438
      %v440 = vshrl.u32 %v273, 16
      %v442 = vrot.slane %v440, 4
      %v443 = vor.u32 %v442, %v438
      %v444 = vrot.slane %v443, 4
      %v446 = vshll.u32 %v274, 16
      %v448 = vrot.slane %v446, 5
      %v449 = vsel %vm305, %v444, %v448
      %v451 = vshrl.u32 %v275, 16
      %v453 = vrot.slane %v451, 4
      %v454 = vshll.u32 %v275, 16
      %v456 = vrot.slane %v454, 5
      %v457 = vor.u32 %v453, %v456
      %v458 = vrot.slane %v457, 4
      %v460 = vshll.u32 %v276, 16
      %v462 = vrot.slane %v460, 5
      %v463 = vsel %vm305, %v458, %v462
      %v464 = vshrl.u32 %v276, 16
      %v466 = vrot.slane %v464, 4
      %v467 = vor.u32 %v466, %v462
      %v468 = vrot.slane %v467, 4
      %v470 = vshll.u32 %v277, 16
      %v472 = vrot.slane %v470, 5
      %v473 = vsel %vm305, %v468, %v472
      %v475 = vshrl.u32 %v278, 16
      %v477 = vrot.slane %v475, 4
      %v478 = vshll.u32 %v278, 16
      %v480 = vrot.slane %v478, 5
      %v481 = vor.u32 %v477, %v480
      %v482 = vrot.slane %v481, 4
      %v484 = vshll.u32 %v279, 16
      %v486 = vrot.slane %v484, 5
      %v487 = vsel %vm305, %v482, %v486
      %v488 = vshrl.u32 %v279, 16
      %v490 = vrot.slane %v488, 4
      %v491 = vor.u32 %v490, %v486
      %v492 = vrot.slane %v491, 4
      %v494 = vshll.u32 %v280, 16
      %v496 = vrot.slane %v494, 5
      %v497 = vsel %vm305, %v492, %v496
      %s498 = scalar_lea.vmem %s1, 64
      %v499 = vld [vmem:[%s498] sm:$0xf]
      %v500 = vld [vmem:[%s498 + $0x4] sm:$0xf]
      %v501 = vld [vmem:[%s498 + $0x8] sm:$0xf]
      %v502 = vld [vmem:[%s498 + $0xc] sm:$0xf]
      %v503 = vld [vmem:[%s498 + $0x10] sm:$0xf]
      %v504 = vld [vmem:[%s498 + $0x14] sm:$0xf]
      %v505 = vld [vmem:[%s498 + $0x18] sm:$0xf]
      %v506 = vld [vmem:[%s498 + $0x1c] sm:$0xf]
      %v507 = vld [vmem:[%s498 + $0x20] sm:$0xf]
      %v508 = vld [vmem:[%s498 + $0x24] sm:$0xf]
      %v509 = vld [vmem:[%s498 + $0x28] sm:$0xf]
      %v510 = vld [vmem:[%s498 + $0x2c] sm:$0xf]
      %v511 = vld [vmem:[%s498 + $0x30] sm:$0xf]
      %v512 = vld [vmem:[%s498 + $0x34] sm:$0xf]
      %v513 = vld [vmem:[%s498 + $0x38] sm:$0xf]
      %v514 = vld [vmem:[%s498 + $0x3c] sm:$0xf]
      %v515 = vunpack.c.l.b16 %v319
      %v516 = vunpack.c.l.b16 %v329
      %v517 = vunpack.c.l.b16 %v343
      %v518 = vunpack.c.l.b16 %v353
      %v519 = vunpack.c.l.b16 %v367
      %v520 = vunpack.c.l.b16 %v377
      %v521 = vunpack.c.l.b16 %v391
      %v522 = vunpack.c.l.b16 %v401
      %v523 = vunpack.c.l.b16 %v415
      %v524 = vunpack.c.l.b16 %v425
      %v525 = vunpack.c.l.b16 %v439
      %v526 = vunpack.c.l.b16 %v449
      %v527 = vunpack.c.l.b16 %v463
      %v528 = vunpack.c.l.b16 %v473
      %v529 = vunpack.c.l.b16 %v487
      %v530 = vunpack.c.l.b16 %v497
      %v531 = vpack.c.b16 %v516, %v515
      %v532 = vpack.c.b16 %v518, %v517
      %v533 = vpack.c.b16 %v520, %v519
      %v534 = vpack.c.b16 %v522, %v521
      %v535 = vpack.c.b16 %v524, %v523
      %v536 = vpack.c.b16 %v526, %v525
      %v537 = vpack.c.b16 %v528, %v527
      %v538 = vpack.c.b16 %v530, %v529
      %v563 = vunpack.c.l.b16 %v499
      %v564 = vunpack.c.l.b16 %v500
      %v565 = vunpack.c.l.b16 %v501
      %v566 = vunpack.c.l.b16 %v502
      %v567 = vunpack.c.l.b16 %v503
      %v568 = vunpack.c.l.b16 %v504
      %v569 = vunpack.c.l.b16 %v505
      %v570 = vunpack.c.l.b16 %v506
      %v571 = vunpack.c.l.b16 %v507
      %v572 = vunpack.c.l.b16 %v508
      %v573 = vunpack.c.l.b16 %v509
      %v574 = vunpack.c.l.b16 %v510
      %v575 = vunpack.c.l.b16 %v511
      %v576 = vunpack.c.l.b16 %v512
      %v577 = vunpack.c.l.b16 %v513
      %v578 = vunpack.c.l.b16 %v514
      %v579 = vpack.c.b16 %v564, %v563
      %v580 = vpack.c.b16 %v566, %v565
      %v581 = vpack.c.b16 %v568, %v567
      %v582 = vpack.c.b16 %v570, %v569
      %v583 = vpack.c.b16 %v572, %v571
      %v584 = vpack.c.b16 %v574, %v573
      %v585 = vpack.c.b16 %v576, %v575
      %v586 = vpack.c.b16 %v578, %v577
      %595 = vmatprep.subr.bf16.mxu0 0
      %596 = vmatpush1.bf16.msra.mxu0 %v579
      %597 = vmatprep.subr.bf16.mxu0 0
      %598 = vmatpush1.bf16.msra.mxu0 %v580
      %599 = vmatprep.subr.bf16.mxu0 0
      %600 = vmatpush1.bf16.msra.mxu0 %v581
      %601 = vmatprep.subr.bf16.mxu0 0
      %602 = vmatpush1.bf16.msra.mxu0 %v582
      %603 = vmatprep.subr.bf16.mxu0 0
      %604 = vmatpush1.bf16.msra.mxu0 %v583
      %605 = vmatprep.subr.bf16.mxu0 0
      %606 = vmatpush1.bf16.msra.mxu0 %v584
      %607 = vmatprep.subr.bf16.mxu0 0
      %608 = vmatpush1.bf16.msra.mxu0 %v585
      %609 = vmatprep.subr.bf16.mxu0 0
      %610 = vmatpush1.bf16.msra.mxu0 %v586
      %611 = vmatprep.subr.bf16.mxu0 0
      %612 = vmatpush1.bf16.msra.mxu0 0
      %613 = vmatprep.subr.bf16.mxu0 0
      %614 = vmatpush1.bf16.msra.mxu0 0
      %615 = vmatprep.subr.bf16.mxu0 0
      %616 = vmatpush1.bf16.msra.mxu0 0
      %617 = vmatprep.subr.bf16.mxu0 0
      %618 = vmatpush1.bf16.msra.mxu0 0
      %619 = vmatprep.subr.bf16.mxu0 0
      %620 = vmatpush1.bf16.msra.mxu0 0
      %621 = vmatprep.subr.bf16.mxu0 0
      %622 = vmatpush1.bf16.msra.mxu0 0
      %623 = vmatprep.subr.bf16.mxu0 0
      %624 = vmatpush1.bf16.msra.mxu0 0
      %625 = vmatprep.subr.bf16.mxu0 0
      %626 = vmatpush1.bf16.msra.mxu0 0
      %627 = vmatprep.mubr.bf16.mxu0 0
      %628 = vmatmul.mubr.bf16.gmra.mrb[0].mxu0 %v531
      %v629 = vpop.f32.mrb[0].mxu0
      %v630 = vadd.f32 0.0, %v629
      %v631 = vpop.f32.mrb[0].mxu0
      %v632 = vpop.f32.mrb[0].mxu0
      %v633 = vadd.f32 0.0, %v632
      %v634 = vpop.f32.mrb[0].mxu0
      %635 = vmatprep.mubr.bf16.mxu0 0
      %636 = vmatmul.mubr.bf16.gmra.mrb[0].mxu0 %v532
      %v637 = vpop.f32.mrb[0].mxu0
      %v638 = vadd.f32 0.0, %v637
      %v639 = vpop.f32.mrb[0].mxu0
      %v640 = vpop.f32.mrb[0].mxu0
      %v641 = vadd.f32 0.0, %v640
      %v642 = vpop.f32.mrb[0].mxu0
      %643 = vmatprep.mubr.bf16.mxu0 0
      %644 = vmatmul.mubr.bf16.gmra.mrb[0].mxu0 %v533
      %v645 = vpop.f32.mrb[0].mxu0
      %v646 = vadd.f32 0.0, %v645
      %v647 = vpop.f32.mrb[0].mxu0
      %v648 = vpop.f32.mrb[0].mxu0
      %v649 = vadd.f32 0.0, %v648
      %v650 = vpop.f32.mrb[0].mxu0
      %651 = vmatprep.mubr.bf16.mxu0 0
      %652 = vmatmul.mubr.bf16.gmra.mrb[0].mxu0 %v534
      %v653 = vpop.f32.mrb[0].mxu0
      %v654 = vadd.f32 0.0, %v653
      %v655 = vpop.f32.mrb[0].mxu0
      %v656 = vpop.f32.mrb[0].mxu0
      %v657 = vadd.f32 0.0, %v656
      %v658 = vpop.f32.mrb[0].mxu0
      %659 = vmatprep.mubr.bf16.mxu0 0
      %660 = vmatmul.mubr.bf16.gmra.mrb[0].mxu0 %v535
      %v661 = vpop.f32.mrb[0].mxu0
      %v662 = vadd.f32 0.0, %v661
      %v663 = vpop.f32.mrb[0].mxu0
      %v664 = vpop.f32.mrb[0].mxu0
      %v665 = vadd.f32 0.0, %v664
      %v666 = vpop.f32.mrb[0].mxu0
      %667 = vmatprep.mubr.bf16.mxu0 0
      %668 = vmatmul.mubr.bf16.gmra.mrb[0].mxu0 %v536
      %v669 = vpop.f32.mrb[0].mxu0
      %v670 = vadd.f32 0.0, %v669
      %v671 = vpop.f32.mrb[0].mxu0
      %v672 = vpop.f32.mrb[0].mxu0
      %v673 = vadd.f32 0.0, %v672
      %v674 = vpop.f32.mrb[0].mxu0
      %675 = vmatprep.mubr.bf16.mxu0 0
      %676 = vmatmul.mubr.bf16.gmra.mrb[0].mxu0 %v537
      %v677 = vpop.f32.mrb[0].mxu0
      %v678 = vadd.f32 0.0, %v677
      %v679 = vpop.f32.mrb[0].mxu0
      %v680 = vpop.f32.mrb[0].mxu0
      %v681 = vadd.f32 0.0, %v680
      %v682 = vpop.f32.mrb[0].mxu0
      %683 = vmatprep.mubr.bf16.mxu0 0
      %684 = vmatmul.mubr.bf16.gmra.mrb[0].mxu0 %v538
      %v685 = vpop.f32.mrb[0].mxu0
      %v686 = vadd.f32 0.0, %v685
      %v687 = vpop.f32.mrb[0].mxu0
      %v688 = vpop.f32.mrb[0].mxu0
      %v689 = vadd.f32 0.0, %v688
      %v690 = vpop.f32.mrb[0].mxu0
      %691 = vdwg.mxu0
      %v708 = vunpack.c.l.b16 %v257
      %v709 = vunpack.c.l.b16 %v258
      %v710 = vunpack.c.l.b16 %v260
      %v711 = vunpack.c.l.b16 %v261
      %v712 = vunpack.c.l.b16 %v263
      %v713 = vunpack.c.l.b16 %v264
      %v714 = vunpack.c.l.b16 %v266
      %v715 = vunpack.c.l.b16 %v267
      %v716 = vunpack.c.l.b16 %v269
      %v717 = vunpack.c.l.b16 %v270
      %v718 = vunpack.c.l.b16 %v272
      %v719 = vunpack.c.l.b16 %v273
      %v720 = vunpack.c.l.b16 %v275
      %v721 = vunpack.c.l.b16 %v276
      %v722 = vunpack.c.l.b16 %v278
      %v723 = vunpack.c.l.b16 %v279
      %v724 = vpack.c.b16 %v709, %v708
      %v725 = vpack.c.b16 %v711, %v710
      %v726 = vpack.c.b16 %v713, %v712
      %v727 = vpack.c.b16 %v715, %v714
      %v728 = vpack.c.b16 %v717, %v716
      %v729 = vpack.c.b16 %v719, %v718
      %v730 = vpack.c.b16 %v721, %v720
      %v731 = vpack.c.b16 %v723, %v722
      %v756 = vunpack.c.l.b16 %v287
      %v757 = vunpack.c.l.b16 %v288
      %v758 = vunpack.c.l.b16 %v289
      %v759 = vunpack.c.l.b16 %v290
      %v760 = vunpack.c.l.b16 %v291
      %v761 = vunpack.c.l.b16 %v292
      %v762 = vunpack.c.l.b16 %v293
      %v763 = vunpack.c.l.b16 %v294
      %v764 = vunpack.c.l.b16 %v295
      %v765 = vunpack.c.l.b16 %v296
      %v766 = vunpack.c.l.b16 %v297
      %v767 = vunpack.c.l.b16 %v298
      %v768 = vunpack.c.l.b16 %v299
      %v769 = vunpack.c.l.b16 %v300
      %v770 = vunpack.c.l.b16 %v301
      %v771 = vunpack.c.l.b16 %v302
      %v772 = vpack.c.b16 %v757, %v756
      %v773 = vpack.c.b16 %v759, %v758
      %v774 = vpack.c.b16 %v761, %v760
      %v775 = vpack.c.b16 %v763, %v762
      %v776 = vpack.c.b16 %v765, %v764
      %v777 = vpack.c.b16 %v767, %v766
      %v778 = vpack.c.b16 %v769, %v768
      %v779 = vpack.c.b16 %v771, %v770
      %788 = vmatprep.subr.bf16.mxu0 0
      %789 = vmatpush1.bf16.msra.mxu0 %v772
      %790 = vmatprep.subr.bf16.mxu0 0
      %791 = vmatpush1.bf16.msra.mxu0 %v773
      %792 = vmatprep.subr.bf16.mxu0 0
      %793 = vmatpush1.bf16.msra.mxu0 %v774
      %794 = vmatprep.subr.bf16.mxu0 0
      %795 = vmatpush1.bf16.msra.mxu0 %v775
      %796 = vmatprep.subr.bf16.mxu0 0
      %797 = vmatpush1.bf16.msra.mxu0 %v776
      %798 = vmatprep.subr.bf16.mxu0 0
      %799 = vmatpush1.bf16.msra.mxu0 %v777
      %800 = vmatprep.subr.bf16.mxu0 0
      %801 = vmatpush1.bf16.msra.mxu0 %v778
      %802 = vmatprep.subr.bf16.mxu0 0
      %803 = vmatpush1.bf16.msra.mxu0 %v779
      %804 = vmatprep.subr.bf16.mxu0 0
      %805 = vmatpush1.bf16.msra.mxu0 0
      %806 = vmatprep.subr.bf16.mxu0 0
      %807 = vmatpush1.bf16.msra.mxu0 0
      %808 = vmatprep.subr.bf16.mxu0 0
      %809 = vmatpush1.bf16.msra.mxu0 0
      %810 = vmatprep.subr.bf16.mxu0 0
      %811 = vmatpush1.bf16.msra.mxu0 0
      %812 = vmatprep.subr.bf16.mxu0 0
      %813 = vmatpush1.bf16.msra.mxu0 0
      %814 = vmatprep.subr.bf16.mxu0 0
      %815 = vmatpush1.bf16.msra.mxu0 0
      %816 = vmatprep.subr.bf16.mxu0 0
      %817 = vmatpush1.bf16.msra.mxu0 0
      %818 = vmatprep.subr.bf16.mxu0 0
      %819 = vmatpush1.bf16.msra.mxu0 0
      %820 = vmatprep.mubr.bf16.mxu0 0
      %821 = vmatmul.mubr.bf16.gmra.mrb[0].mxu0 %v724
      %v822 = vpop.f32.mrb[0].mxu0
      %v823 = vadd.f32 %v630, %v822
      %v824 = vpop.f32.mrb[0].mxu0
      %v825 = vpop.f32.mrb[0].mxu0
      %v826 = vadd.f32 %v633, %v825
      %v827 = vpop.f32.mrb[0].mxu0
      %828 = vmatprep.mubr.bf16.mxu0 0
      %829 = vmatmul.mubr.bf16.gmra.mrb[0].mxu0 %v725
      %v830 = vpop.f32.mrb[0].mxu0
      %v831 = vadd.f32 %v638, %v830
      %v832 = vpop.f32.mrb[0].mxu0
      %v833 = vpop.f32.mrb[0].mxu0
      %v834 = vadd.f32 %v641, %v833
      %v835 = vpop.f32.mrb[0].mxu0
      %836 = vmatprep.mubr.bf16.mxu0 0
      %837 = vmatmul.mubr.bf16.gmra.mrb[0].mxu0 %v726
      %v838 = vpop.f32.mrb[0].mxu0
      %v839 = vadd.f32 %v646, %v838
      %v840 = vpop.f32.mrb[0].mxu0
      %v841 = vpop.f32.mrb[0].mxu0
      %v842 = vadd.f32 %v649, %v841
      %v843 = vpop.f32.mrb[0].mxu0
      %844 = vmatprep.mubr.bf16.mxu0 0
      %845 = vmatmul.mubr.bf16.gmra.mrb[0].mxu0 %v727
      %v846 = vpop.f32.mrb[0].mxu0
      %v847 = vadd.f32 %v654, %v846
      %v848 = vpop.f32.mrb[0].mxu0
      %v849 = vpop.f32.mrb[0].mxu0
      %v850 = vadd.f32 %v657, %v849
      %v851 = vpop.f32.mrb[0].mxu0
      %852 = vmatprep.mubr.bf16.mxu0 0
      %853 = vmatmul.mubr.bf16.gmra.mrb[0].mxu0 %v728
      %v854 = vpop.f32.mrb[0].mxu0
      %v855 = vadd.f32 %v662, %v854
      %v856 = vpop.f32.mrb[0].mxu0
      %v857 = vpop.f32.mrb[0].mxu0
      %v858 = vadd.f32 %v665, %v857
      %v859 = vpop.f32.mrb[0].mxu0
      %860 = vmatprep.mubr.bf16.mxu0 0
      %861 = vmatmul.mubr.bf16.gmra.mrb[0].mxu0 %v729
      %v862 = vpop.f32.mrb[0].mxu0
      %v863 = vadd.f32 %v670, %v862
      %v864 = vpop.f32.mrb[0].mxu0
      %v865 = vpop.f32.mrb[0].mxu0
      %v866 = vadd.f32 %v673, %v865
      %v867 = vpop.f32.mrb[0].mxu0
      %868 = vmatprep.mubr.bf16.mxu0 0
      %869 = vmatmul.mubr.bf16.gmra.mrb[0].mxu0 %v730
      %v870 = vpop.f32.mrb[0].mxu0
      %v871 = vadd.f32 %v678, %v870
      %v872 = vpop.f32.mrb[0].mxu0
      %v873 = vpop.f32.mrb[0].mxu0
      %v874 = vadd.f32 %v681, %v873
      %v875 = vpop.f32.mrb[0].mxu0
      %876 = vmatprep.mubr.bf16.mxu0 0
      %877 = vmatmul.mubr.bf16.gmra.mrb[0].mxu0 %v731
      %v878 = vpop.f32.mrb[0].mxu0
      %v879 = vadd.f32 %v686, %v878
      %v880 = vpop.f32.mrb[0].mxu0
      %v881 = vpop.f32.mrb[0].mxu0
      %v882 = vadd.f32 %v689, %v881
      %v883 = vpop.f32.mrb[0].mxu0
      %884 = vdwg.mxu0
      %vm893 = vcmask 1042432
      %vm894 = vcmask 1046532
      %vm895 = vmor %vm893, %vm894
      %v896 = vrot.slane %v257, 5
      %v897 = vrot.slane %v896, 4
      %v898 = vrot.slane %v258, 5
      %v899 = vsel %vm895, %v897, %v898
      %v900 = vrot.slane %v898, 4
      %v901 = vrot.slane %v259, 5
      %v902 = vsel %vm895, %v900, %v901
      %v903 = vrot.slane %v260, 5
      %v904 = vrot.slane %v903, 4
      %v905 = vrot.slane %v261, 5
      %v906 = vsel %vm895, %v904, %v905
      %v907 = vrot.slane %v905, 4
      %v908 = vrot.slane %v262, 5
      %v909 = vsel %vm895, %v907, %v908
      %v910 = vrot.slane %v263, 5
      %v911 = vrot.slane %v910, 4
      %v912 = vrot.slane %v264, 5
      %v913 = vsel %vm895, %v911, %v912
      %v914 = vrot.slane %v912, 4
      %v915 = vrot.slane %v265, 5
      %v916 = vsel %vm895, %v914, %v915
      %v917 = vrot.slane %v266, 5
      %v918 = vrot.slane %v917, 4
      %v919 = vrot.slane %v267, 5
      %v920 = vsel %vm895, %v918, %v919
      %v921 = vrot.slane %v919, 4
      %v922 = vrot.slane %v268, 5
      %v923 = vsel %vm895, %v921, %v922
      %v924 = vrot.slane %v269, 5
      %v925 = vrot.slane %v924, 4
      %v926 = vrot.slane %v270, 5
      %v927 = vsel %vm895, %v925, %v926
      %v928 = vrot.slane %v926, 4
      %v929 = vrot.slane %v271, 5
      %v930 = vsel %vm895, %v928, %v929
      %v931 = vrot.slane %v272, 5
      %v932 = vrot.slane %v931, 4
      %v933 = vrot.slane %v273, 5
      %v934 = vsel %vm895, %v932, %v933
      %v935 = vrot.slane %v933, 4
      %v936 = vrot.slane %v274, 5
      %v937 = vsel %vm895, %v935, %v936
      %v938 = vrot.slane %v275, 5
      %v939 = vrot.slane %v938, 4
      %v940 = vrot.slane %v276, 5
      %v941 = vsel %vm895, %v939, %v940
      %v942 = vrot.slane %v940, 4
      %v943 = vrot.slane %v277, 5
      %v944 = vsel %vm895, %v942, %v943
      %v945 = vrot.slane %v278, 5
      %v946 = vrot.slane %v945, 4
      %v947 = vrot.slane %v279, 5
      %v948 = vsel %vm895, %v946, %v947
      %v949 = vrot.slane %v947, 4
      %v950 = vrot.slane %v280, 5
      %v951 = vsel %vm895, %v949, %v950
      %s952 = scalar_lea.vmem %s1, 128
      %v953 = vld [vmem:[%s952] sm:$0xf]
      %v954 = vld [vmem:[%s952 + $0x4] sm:$0xf]
      %v955 = vld [vmem:[%s952 + $0x8] sm:$0xf]
      %v956 = vld [vmem:[%s952 + $0xc] sm:$0xf]
      %v957 = vld [vmem:[%s952 + $0x10] sm:$0xf]
      %v958 = vld [vmem:[%s952 + $0x14] sm:$0xf]
      %v959 = vld [vmem:[%s952 + $0x18] sm:$0xf]
      %v960 = vld [vmem:[%s952 + $0x1c] sm:$0xf]
      %v961 = vld [vmem:[%s952 + $0x20] sm:$0xf]
      %v962 = vld [vmem:[%s952 + $0x24] sm:$0xf]
      %v963 = vld [vmem:[%s952 + $0x28] sm:$0xf]
      %v964 = vld [vmem:[%s952 + $0x2c] sm:$0xf]
      %v965 = vld [vmem:[%s952 + $0x30] sm:$0xf]
      %v966 = vld [vmem:[%s952 + $0x34] sm:$0xf]
      %v967 = vld [vmem:[%s952 + $0x38] sm:$0xf]
      %v968 = vld [vmem:[%s952 + $0x3c] sm:$0xf]
      %v969 = vunpack.c.l.b16 %v899
      %v970 = vunpack.c.l.b16 %v902
      %v971 = vunpack.c.l.b16 %v906
      %v972 = vunpack.c.l.b16 %v909
      %v973 = vunpack.c.l.b16 %v913
      %v974 = vunpack.c.l.b16 %v916
      %v975 = vunpack.c.l.b16 %v920
      %v976 = vunpack.c.l.b16 %v923
      %v977 = vunpack.c.l.b16 %v927
      %v978 = vunpack.c.l.b16 %v930
      %v979 = vunpack.c.l.b16 %v934
      %v980 = vunpack.c.l.b16 %v937
      %v981 = vunpack.c.l.b16 %v941
      %v982 = vunpack.c.l.b16 %v944
      %v983 = vunpack.c.l.b16 %v948
      %v984 = vunpack.c.l.b16 %v951
      %v985 = vpack.c.b16 %v970, %v969
      %v986 = vpack.c.b16 %v972, %v971
      %v987 = vpack.c.b16 %v974, %v973
      %v988 = vpack.c.b16 %v976, %v975
      %v989 = vpack.c.b16 %v978, %v977
      %v990 = vpack.c.b16 %v980, %v979
      %v991 = vpack.c.b16 %v982, %v981
      %v992 = vpack.c.b16 %v984, %v983
      %v1017 = vunpack.c.l.b16 %v953
      %v1018 = vunpack.c.l.b16 %v954
      %v1019 = vunpack.c.l.b16 %v955
      %v1020 = vunpack.c.l.b16 %v956
      %v1021 = vunpack.c.l.b16 %v957
      %v1022 = vunpack.c.l.b16 %v958
      %v1023 = vunpack.c.l.b16 %v959
      %v1024 = vunpack.c.l.b16 %v960
      %v1025 = vunpack.c.l.b16 %v961
      %v1026 = vunpack.c.l.b16 %v962
      %v1027 = vunpack.c.l.b16 %v963
      %v1028 = vunpack.c.l.b16 %v964
      %v1029 = vunpack.c.l.b16 %v965
      %v1030 = vunpack.c.l.b16 %v966
      %v1031 = vunpack.c.l.b16 %v967
      %v1032 = vunpack.c.l.b16 %v968
      %v1033 = vpack.c.b16 %v1018, %v1017
      %v1034 = vpack.c.b16 %v1020, %v1019
      %v1035 = vpack.c.b16 %v1022, %v1021
      %v1036 = vpack.c.b16 %v1024, %v1023
      %v1037 = vpack.c.b16 %v1026, %v1025
      %v1038 = vpack.c.b16 %v1028, %v1027
      %v1039 = vpack.c.b16 %v1030, %v1029
      %v1040 = vpack.c.b16 %v1032, %v1031
      %1049 = vmatprep.subr.bf16.mxu0 0
      %1050 = vmatpush1.bf16.msra.mxu0 %v1033
      %1051 = vmatprep.subr.bf16.mxu0 0
      %1052 = vmatpush1.bf16.msra.mxu0 %v1034
      %1053 = vmatprep.subr.bf16.mxu0 0
      %1054 = vmatpush1.bf16.msra.mxu0 %v1035
      %1055 = vmatprep.subr.bf16.mxu0 0
      %1056 = vmatpush1.bf16.msra.mxu0 %v1036
      %1057 = vmatprep.subr.bf16.mxu0 0
      %1058 = vmatpush1.bf16.msra.mxu0 %v1037
      %1059 = vmatprep.subr.bf16.mxu0 0
      %1060 = vmatpush1.bf16.msra.mxu0 %v1038
      %1061 = vmatprep.subr.bf16.mxu0 0
      %1062 = vmatpush1.bf16.msra.mxu0 %v1039
      %1063 = vmatprep.subr.bf16.mxu0 0
      %1064 = vmatpush1.bf16.msra.mxu0 %v1040
      %1065 = vmatprep.subr.bf16.mxu0 0
      %1066 = vmatpush1.bf16.msra.mxu0 0
      %1067 = vmatprep.subr.bf16.mxu0 0
      %1068 = vmatpush1.bf16.msra.mxu0 0
      %1069 = vmatprep.subr.bf16.mxu0 0
      %1070 = vmatpush1.bf16.msra.mxu0 0
      %1071 = vmatprep.subr.bf16.mxu0 0
      %1072 = vmatpush1.bf16.msra.mxu0 0
      %1073 = vmatprep.subr.bf16.mxu0 0
      %1074 = vmatpush1.bf16.msra.mxu0 0
      %1075 = vmatprep.subr.bf16.mxu0 0
      %1076 = vmatpush1.bf16.msra.mxu0 0
      %1077 = vmatprep.subr.bf16.mxu0 0
      %1078 = vmatpush1.bf16.msra.mxu0 0
      %1079 = vmatprep.subr.bf16.mxu0 0
      %1080 = vmatpush1.bf16.msra.mxu0 0
      %1081 = vmatprep.mubr.bf16.mxu0 0
      %1082 = vmatmul.mubr.bf16.gmra.mrb[0].mxu0 %v985
      %v1083 = vpop.f32.mrb[0].mxu0
      %v1084 = vadd.f32 0.0, %v1083
      %v1085 = vpop.f32.mrb[0].mxu0
      %v1086 = vpop.f32.mrb[0].mxu0
      %v1087 = vadd.f32 0.0, %v1086
      %v1088 = vpop.f32.mrb[0].mxu0
      %1089 = vmatprep.mubr.bf16.mxu0 0
      %1090 = vmatmul.mubr.bf16.gmra.mrb[0].mxu0 %v986
      %v1091 = vpop.f32.mrb[0].mxu0
      %v1092 = vadd.f32 0.0, %v1091
      %v1093 = vpop.f32.mrb[0].mxu0
      %v1094 = vpop.f32.mrb[0].mxu0
      %v1095 = vadd.f32 0.0, %v1094
      %v1096 = vpop.f32.mrb[0].mxu0
      %1097 = vmatprep.mubr.bf16.mxu0 0
      %1098 = vmatmul.mubr.bf16.gmra.mrb[0].mxu0 %v987
      %v1099 = vpop.f32.mrb[0].mxu0
      %v1100 = vadd.f32 0.0, %v1099
      %v1101 = vpop.f32.mrb[0].mxu0
      %v1102 = vpop.f32.mrb[0].mxu0
      %v1103 = vadd.f32 0.0, %v1102
      %v1104 = vpop.f32.mrb[0].mxu0
      %1105 = vmatprep.mubr.bf16.mxu0 0
      %1106 = vmatmul.mubr.bf16.gmra.mrb[0].mxu0 %v988
      %v1107 = vpop.f32.mrb[0].mxu0
      %v1108 = vadd.f32 0.0, %v1107
      %v1109 = vpop.f32.mrb[0].mxu0
      %v1110 = vpop.f32.mrb[0].mxu0
      %v1111 = vadd.f32 0.0, %v1110
      %v1112 = vpop.f32.mrb[0].mxu0
      %1113 = vmatprep.mubr.bf16.mxu0 0
      %1114 = vmatmul.mubr.bf16.gmra.mrb[0].mxu0 %v989
      %v1115 = vpop.f32.mrb[0].mxu0
      %v1116 = vadd.f32 0.0, %v1115
      %v1117 = vpop.f32.mrb[0].mxu0
      %v1118 = vpop.f32.mrb[0].mxu0
      %v1119 = vadd.f32 0.0, %v1118
      %v1120 = vpop.f32.mrb[0].mxu0
      %1121 = vmatprep.mubr.bf16.mxu0 0
      %1122 = vmatmul.mubr.bf16.gmra.mrb[0].mxu0 %v990
      %v1123 = vpop.f32.mrb[0].mxu0
      %v1124 = vadd.f32 0.0, %v1123
      %v1125 = vpop.f32.mrb[0].mxu0
      %v1126 = vpop.f32.mrb[0].mxu0
      %v1127 = vadd.f32 0.0, %v1126
      %v1128 = vpop.f32.mrb[0].mxu0
      %1129 = vmatprep.mubr.bf16.mxu0 0
      %1130 = vmatmul.mubr.bf16.gmra.mrb[0].mxu0 %v991
      %v1131 = vpop.f32.mrb[0].mxu0
      %v1132 = vadd.f32 0.0, %v1131
      %v1133 = vpop.f32.mrb[0].mxu0
      %v1134 = vpop.f32.mrb[0].mxu0
      %v1135 = vadd.f32 0.0, %v1134
      %v1136 = vpop.f32.mrb[0].mxu0
      %1137 = vmatprep.mubr.bf16.mxu0 0
      %1138 = vmatmul.mubr.bf16.gmra.mrb[0].mxu0 %v992
      %v1139 = vpop.f32.mrb[0].mxu0
      %v1140 = vadd.f32 0.0, %v1139
      %v1141 = vpop.f32.mrb[0].mxu0
      %v1142 = vpop.f32.mrb[0].mxu0
      %v1143 = vadd.f32 0.0, %v1142
      %v1144 = vpop.f32.mrb[0].mxu0
      %1145 = vdwg.mxu0
      %v1146 = vadd.f32 %v823, %v1084
      %v1147 = vadd.f32 %v826, %v1087
      %v1148 = vadd.f32 %v831, %v1092
      %v1149 = vadd.f32 %v834, %v1095
      %v1150 = vadd.f32 %v839, %v1100
      %v1151 = vadd.f32 %v842, %v1103
      %v1152 = vadd.f32 %v847, %v1108
      %v1153 = vadd.f32 %v850, %v1111
      %v1154 = vadd.f32 %v855, %v1116
      %v1155 = vadd.f32 %v858, %v1119
      %v1156 = vadd.f32 %v863, %v1124
      %v1157 = vadd.f32 %v866, %v1127
      %v1158 = vadd.f32 %v871, %v1132
      %v1159 = vadd.f32 %v874, %v1135
      %v1160 = vadd.f32 %v879, %v1140
      %v1161 = vadd.f32 %v882, %v1143
      %s1162 = scalar_lea.vmem %s1, 192
      %v1163 = vld [vmem:[%s1162] sm:$0xf]
      %v1164 = vld [vmem:[%s1162 + $0x4] sm:$0xf]
      %v1165 = vld [vmem:[%s1162 + $0x8] sm:$0xf]
      %v1166 = vld [vmem:[%s1162 + $0xc] sm:$0xf]
      %v1167 = vld [vmem:[%s1162 + $0x10] sm:$0xf]
      %v1168 = vld [vmem:[%s1162 + $0x14] sm:$0xf]
      %v1169 = vld [vmem:[%s1162 + $0x18] sm:$0xf]
      %v1170 = vld [vmem:[%s1162 + $0x1c] sm:$0xf]
      %v1171 = vld [vmem:[%s1162 + $0x20] sm:$0xf]
      %v1172 = vld [vmem:[%s1162 + $0x24] sm:$0xf]
      %v1173 = vld [vmem:[%s1162 + $0x28] sm:$0xf]
      %v1174 = vld [vmem:[%s1162 + $0x2c] sm:$0xf]
      %v1175 = vld [vmem:[%s1162 + $0x30] sm:$0xf]
      %v1176 = vld [vmem:[%s1162 + $0x34] sm:$0xf]
      %v1177 = vld [vmem:[%s1162 + $0x38] sm:$0xf]
      %v1178 = vld [vmem:[%s1162 + $0x3c] sm:$0xf]
      %v1181 = vunpack.c.l.b16 %v281
      %v1182 = vunpack.c.l.b16 %v282
      %v1183 = vpack.c.b16 %v1182, %v1181
      %v1201 = vunpack.c.l.b16 %v1163
      %v1202 = vunpack.c.l.b16 %v1164
      %v1203 = vunpack.c.l.b16 %v1165
      %v1204 = vunpack.c.l.b16 %v1166
      %v1205 = vunpack.c.l.b16 %v1167
      %v1206 = vunpack.c.l.b16 %v1168
      %v1207 = vunpack.c.l.b16 %v1169
      %v1208 = vunpack.c.l.b16 %v1170
      %v1209 = vunpack.c.l.b16 %v1171
      %v1210 = vunpack.c.l.b16 %v1172
      %v1211 = vunpack.c.l.b16 %v1173
      %v1212 = vunpack.c.l.b16 %v1174
      %v1213 = vunpack.c.l.b16 %v1175
      %v1214 = vunpack.c.l.b16 %v1176
      %v1215 = vunpack.c.l.b16 %v1177
      %v1216 = vunpack.c.l.b16 %v1178
      %v1217 = vpack.c.b16 %v1202, %v1201
      %v1218 = vpack.c.b16 %v1204, %v1203
      %v1219 = vpack.c.b16 %v1206, %v1205
      %v1220 = vpack.c.b16 %v1208, %v1207
      %v1221 = vpack.c.b16 %v1210, %v1209
      %v1222 = vpack.c.b16 %v1212, %v1211
      %v1223 = vpack.c.b16 %v1214, %v1213
      %v1224 = vpack.c.b16 %v1216, %v1215
      %1233 = vmatprep.subr.bf16.mxu0 0
      %1234 = vmatpush1.bf16.msra.mxu0 %v1217
      %1235 = vmatprep.subr.bf16.mxu0 0
      %1236 = vmatpush1.bf16.msra.mxu0 %v1218
      %1237 = vmatprep.subr.bf16.mxu0 0
      %1238 = vmatpush1.bf16.msra.mxu0 %v1219
      %1239 = vmatprep.subr.bf16.mxu0 0
      %1240 = vmatpush1.bf16.msra.mxu0 %v1220
      %1241 = vmatprep.subr.bf16.mxu0 0
      %1242 = vmatpush1.bf16.msra.mxu0 %v1221
      %1243 = vmatprep.subr.bf16.mxu0 0
      %1244 = vmatpush1.bf16.msra.mxu0 %v1222
      %1245 = vmatprep.subr.bf16.mxu0 0
      %1246 = vmatpush1.bf16.msra.mxu0 %v1223
      %1247 = vmatprep.subr.bf16.mxu0 0
      %1248 = vmatpush1.bf16.msra.mxu0 %v1224
      %1249 = vmatprep.subr.bf16.mxu0 0
      %1250 = vmatpush1.bf16.msra.mxu0 0
      %1251 = vmatprep.subr.bf16.mxu0 0
      %1252 = vmatpush1.bf16.msra.mxu0 0
      %1253 = vmatprep.subr.bf16.mxu0 0
      %1254 = vmatpush1.bf16.msra.mxu0 0
      %1255 = vmatprep.subr.bf16.mxu0 0
      %1256 = vmatpush1.bf16.msra.mxu0 0
      %1257 = vmatprep.subr.bf16.mxu0 0
      %1258 = vmatpush1.bf16.msra.mxu0 0
      %1259 = vmatprep.subr.bf16.mxu0 0
      %1260 = vmatpush1.bf16.msra.mxu0 0
      %1261 = vmatprep.subr.bf16.mxu0 0
      %1262 = vmatpush1.bf16.msra.mxu0 0
      %1263 = vmatprep.subr.bf16.mxu0 0
      %1264 = vmatpush1.bf16.msra.mxu0 0
      %1265 = vmatprep.mubr.bf16.mxu0 0
      %1266 = vmatmul.mubr.bf16.gmra.mrb[0].mxu0 %v725
      %v1267 = vpop.f32.mrb[0].mxu0
      %v1268 = vadd.f32 0.0, %v1267
      %v1269 = vpop.f32.mrb[0].mxu0
      %v1270 = vpop.f32.mrb[0].mxu0
      %v1271 = vadd.f32 0.0, %v1270
      %v1272 = vpop.f32.mrb[0].mxu0
      %1273 = vmatprep.mubr.bf16.mxu0 0
      %1274 = vmatmul.mubr.bf16.gmra.mrb[0].mxu0 %v726
      %v1275 = vpop.f32.mrb[0].mxu0
      %v1276 = vadd.f32 0.0, %v1275
      %v1277 = vpop.f32.mrb[0].mxu0
      %v1278 = vpop.f32.mrb[0].mxu0
      %v1279 = vadd.f32 0.0, %v1278
      %v1280 = vpop.f32.mrb[0].mxu0
      %1281 = vmatprep.mubr.bf16.mxu0 0
      %1282 = vmatmul.mubr.bf16.gmra.mrb[0].mxu0 %v727
      %v1283 = vpop.f32.mrb[0].mxu0
      %v1284 = vadd.f32 0.0, %v1283
      %v1285 = vpop.f32.mrb[0].mxu0
      %v1286 = vpop.f32.mrb[0].mxu0
      %v1287 = vadd.f32 0.0, %v1286
      %v1288 = vpop.f32.mrb[0].mxu0
      %1289 = vmatprep.mubr.bf16.mxu0 0
      %1290 = vmatmul.mubr.bf16.gmra.mrb[0].mxu0 %v728
      %v1291 = vpop.f32.mrb[0].mxu0
      %v1292 = vadd.f32 0.0, %v1291
      %v1293 = vpop.f32.mrb[0].mxu0
      %v1294 = vpop.f32.mrb[0].mxu0
      %v1295 = vadd.f32 0.0, %v1294
      %v1296 = vpop.f32.mrb[0].mxu0
      %1297 = vmatprep.mubr.bf16.mxu0 0
      %1298 = vmatmul.mubr.bf16.gmra.mrb[0].mxu0 %v729
      %v1299 = vpop.f32.mrb[0].mxu0
      %v1300 = vadd.f32 0.0, %v1299
      %v1301 = vpop.f32.mrb[0].mxu0
      %v1302 = vpop.f32.mrb[0].mxu0
      %v1303 = vadd.f32 0.0, %v1302
      %v1304 = vpop.f32.mrb[0].mxu0
      %1305 = vmatprep.mubr.bf16.mxu0 0
      %1306 = vmatmul.mubr.bf16.gmra.mrb[0].mxu0 %v730
      %v1307 = vpop.f32.mrb[0].mxu0
      %v1308 = vadd.f32 0.0, %v1307
      %v1309 = vpop.f32.mrb[0].mxu0
      %v1310 = vpop.f32.mrb[0].mxu0
      %v1311 = vadd.f32 0.0, %v1310
      %v1312 = vpop.f32.mrb[0].mxu0
      %1313 = vmatprep.mubr.bf16.mxu0 0
      %1314 = vmatmul.mubr.bf16.gmra.mrb[0].mxu0 %v731
      %v1315 = vpop.f32.mrb[0].mxu0
      %v1316 = vadd.f32 0.0, %v1315
      %v1317 = vpop.f32.mrb[0].mxu0
      %v1318 = vpop.f32.mrb[0].mxu0
      %v1319 = vadd.f32 0.0, %v1318
      %v1320 = vpop.f32.mrb[0].mxu0
      %1321 = vmatprep.mubr.bf16.mxu0 0
      %1322 = vmatmul.mubr.bf16.gmra.mrb[0].mxu0 %v1183
      %v1323 = vpop.f32.mrb[0].mxu0
      %v1324 = vadd.f32 0.0, %v1323
      %v1325 = vpop.f32.mrb[0].mxu0
      %v1326 = vpop.f32.mrb[0].mxu0
      %v1327 = vadd.f32 0.0, %v1326
      %v1328 = vpop.f32.mrb[0].mxu0
      %1329 = vdwg.mxu0
      %v1330 = vadd.f32 %v1146, %v1268
      %v1331 = vadd.f32 %v1147, %v1271
      %v1332 = vadd.f32 %v1148, %v1276
      %v1333 = vadd.f32 %v1149, %v1279
      %v1334 = vadd.f32 %v1150, %v1284
      %v1335 = vadd.f32 %v1151, %v1287
      %v1336 = vadd.f32 %v1152, %v1292
      %v1337 = vadd.f32 %v1153, %v1295
      %v1338 = vadd.f32 %v1154, %v1300
      %v1339 = vadd.f32 %v1155, %v1303
      %v1340 = vadd.f32 %v1156, %v1308
      %v1341 = vadd.f32 %v1157, %v1311
      %v1342 = vadd.f32 %v1158, %v1316
      %v1343 = vadd.f32 %v1159, %v1319
      %v1344 = vadd.f32 %v1160, %v1324
      %v1345 = vadd.f32 %v1161, %v1327
      %v1347 = vshrl.u32 %v281, 16
      %v1349 = vrot.slane %v1347, 4
      %v1350 = vshll.u32 %v281, 16
      %v1352 = vrot.slane %v1350, 5
      %v1353 = vor.u32 %v1349, %v1352
      %v1354 = vrot.slane %v1353, 4
      %v1356 = vshll.u32 %v282, 16
      %v1358 = vrot.slane %v1356, 5
      %v1359 = vsel %vm305, %v1354, %v1358
      %v1360 = vshrl.u32 %v282, 16
      %v1362 = vrot.slane %v1360, 4
      %v1363 = vor.u32 %v1362, %v1358
      %v1364 = vrot.slane %v1363, 4
      %v1366 = vshll.u32 %v283, 16
      %v1368 = vrot.slane %v1366, 5
      %v1369 = vsel %vm305, %v1364, %v1368
      %s1370 = scalar_lea.vmem %s1, 256
      %v1371 = vld [vmem:[%s1370] sm:$0xf]
      %v1372 = vld [vmem:[%s1370 + $0x4] sm:$0xf]
      %v1373 = vld [vmem:[%s1370 + $0x8] sm:$0xf]
      %v1374 = vld [vmem:[%s1370 + $0xc] sm:$0xf]
      %v1375 = vld [vmem:[%s1370 + $0x10] sm:$0xf]
      %v1376 = vld [vmem:[%s1370 + $0x14] sm:$0xf]
      %v1377 = vld [vmem:[%s1370 + $0x18] sm:$0xf]
      %v1378 = vld [vmem:[%s1370 + $0x1c] sm:$0xf]
      %v1379 = vld [vmem:[%s1370 + $0x20] sm:$0xf]
      %v1380 = vld [vmem:[%s1370 + $0x24] sm:$0xf]
      %v1381 = vld [vmem:[%s1370 + $0x28] sm:$0xf]
      %v1382 = vld [vmem:[%s1370 + $0x2c] sm:$0xf]
      %v1383 = vld [vmem:[%s1370 + $0x30] sm:$0xf]
      %v1384 = vld [vmem:[%s1370 + $0x34] sm:$0xf]
      %v1385 = vld [vmem:[%s1370 + $0x38] sm:$0xf]
      %v1386 = vld [vmem:[%s1370 + $0x3c] sm:$0xf]
      %v1387 = vunpack.c.l.b16 %v1359
      %v1388 = vunpack.c.l.b16 %v1369
      %v1389 = vpack.c.b16 %v1388, %v1387
      %v1407 = vunpack.c.l.b16 %v1371
      %v1408 = vunpack.c.l.b16 %v1372
      %v1409 = vunpack.c.l.b16 %v1373
      %v1410 = vunpack.c.l.b16 %v1374
      %v1411 = vunpack.c.l.b16 %v1375
      %v1412 = vunpack.c.l.b16 %v1376
      %v1413 = vunpack.c.l.b16 %v1377
      %v1414 = vunpack.c.l.b16 %v1378
      %v1415 = vunpack.c.l.b16 %v1379
      %v1416 = vunpack.c.l.b16 %v1380
      %v1417 = vunpack.c.l.b16 %v1381
      %v1418 = vunpack.c.l.b16 %v1382
      %v1419 = vunpack.c.l.b16 %v1383
      %v1420 = vunpack.c.l.b16 %v1384
      %v1421 = vunpack.c.l.b16 %v1385
      %v1422 = vunpack.c.l.b16 %v1386
      %v1423 = vpack.c.b16 %v1408, %v1407
      %v1424 = vpack.c.b16 %v1410, %v1409
      %v1425 = vpack.c.b16 %v1412, %v1411
      %v1426 = vpack.c.b16 %v1414, %v1413
      %v1427 = vpack.c.b16 %v1416, %v1415
      %v1428 = vpack.c.b16 %v1418, %v1417
      %v1429 = vpack.c.b16 %v1420, %v1419
      %v1430 = vpack.c.b16 %v1422, %v1421
      %1439 = vmatprep.subr.bf16.mxu0 0
      %1440 = vmatpush1.bf16.msra.mxu0 %v1423
      %1441 = vmatprep.subr.bf16.mxu0 0
      %1442 = vmatpush1.bf16.msra.mxu0 %v1424
      %1443 = vmatprep.subr.bf16.mxu0 0
      %1444 = vmatpush1.bf16.msra.mxu0 %v1425
      %1445 = vmatprep.subr.bf16.mxu0 0
      %1446 = vmatpush1.bf16.msra.mxu0 %v1426
      %1447 = vmatprep.subr.bf16.mxu0 0
      %1448 = vmatpush1.bf16.msra.mxu0 %v1427
      %1449 = vmatprep.subr.bf16.mxu0 0
      %1450 = vmatpush1.bf16.msra.mxu0 %v1428
      %1451 = vmatprep.subr.bf16.mxu0 0
      %1452 = vmatpush1.bf16.msra.mxu0 %v1429
      %1453 = vmatprep.subr.bf16.mxu0 0
      %1454 = vmatpush1.bf16.msra.mxu0 %v1430
      %1455 = vmatprep.subr.bf16.mxu0 0
      %1456 = vmatpush1.bf16.msra.mxu0 0
      %1457 = vmatprep.subr.bf16.mxu0 0
      %1458 = vmatpush1.bf16.msra.mxu0 0
      %1459 = vmatprep.subr.bf16.mxu0 0
      %1460 = vmatpush1.bf16.msra.mxu0 0
      %1461 = vmatprep.subr.bf16.mxu0 0
      %1462 = vmatpush1.bf16.msra.mxu0 0
      %1463 = vmatprep.subr.bf16.mxu0 0
      %1464 = vmatpush1.bf16.msra.mxu0 0
      %1465 = vmatprep.subr.bf16.mxu0 0
      %1466 = vmatpush1.bf16.msra.mxu0 0
      %1467 = vmatprep.subr.bf16.mxu0 0
      %1468 = vmatpush1.bf16.msra.mxu0 0
      %1469 = vmatprep.subr.bf16.mxu0 0
      %1470 = vmatpush1.bf16.msra.mxu0 0
      %1471 = vmatprep.mubr.bf16.mxu0 0
      %1472 = vmatmul.mubr.bf16.gmra.mrb[0].mxu0 %v532
      %v1473 = vpop.f32.mrb[0].mxu0
      %v1474 = vadd.f32 0.0, %v1473
      %v1475 = vpop.f32.mrb[0].mxu0
      %v1476 = vpop.f32.mrb[0].mxu0
      %v1477 = vadd.f32 0.0, %v1476
      %v1478 = vpop.f32.mrb[0].mxu0
      %1479 = vmatprep.mubr.bf16.mxu0 0
      %1480 = vmatmul.mubr.bf16.gmra.mrb[0].mxu0 %v533
      %v1481 = vpop.f32.mrb[0].mxu0
      %v1482 = vadd.f32 0.0, %v1481
      %v1483 = vpop.f32.mrb[0].mxu0
      %v1484 = vpop.f32.mrb[0].mxu0
      %v1485 = vadd.f32 0.0, %v1484
      %v1486 = vpop.f32.mrb[0].mxu0
      %1487 = vmatprep.mubr.bf16.mxu0 0
      %1488 = vmatmul.mubr.bf16.gmra.mrb[0].mxu0 %v534
      %v1489 = vpop.f32.mrb[0].mxu0
      %v1490 = vadd.f32 0.0, %v1489
      %v1491 = vpop.f32.mrb[0].mxu0
      %v1492 = vpop.f32.mrb[0].mxu0
      %v1493 = vadd.f32 0.0, %v1492
      %v1494 = vpop.f32.mrb[0].mxu0
      %1495 = vmatprep.mubr.bf16.mxu0 0
      %1496 = vmatmul.mubr.bf16.gmra.mrb[0].mxu0 %v535
      %v1497 = vpop.f32.mrb[0].mxu0
      %v1498 = vadd.f32 0.0, %v1497
      %v1499 = vpop.f32.mrb[0].mxu0
      %v1500 = vpop.f32.mrb[0].mxu0
      %v1501 = vadd.f32 0.0, %v1500
      %v1502 = vpop.f32.mrb[0].mxu0
      %1503 = vmatprep.mubr.bf16.mxu0 0
      %1504 = vmatmul.mubr.bf16.gmra.mrb[0].mxu0 %v536
      %v1505 = vpop.f32.mrb[0].mxu0
      %v1506 = vadd.f32 0.0, %v1505
      %v1507 = vpop.f32.mrb[0].mxu0
      %v1508 = vpop.f32.mrb[0].mxu0
      %v1509 = vadd.f32 0.0, %v1508
      %v1510 = vpop.f32.mrb[0].mxu0
      %1511 = vmatprep.mubr.bf16.mxu0 0
      %1512 = vmatmul.mubr.bf16.gmra.mrb[0].mxu0 %v537
      %v1513 = vpop.f32.mrb[0].mxu0
      %v1514 = vadd.f32 0.0, %v1513
      %v1515 = vpop.f32.mrb[0].mxu0
      %v1516 = vpop.f32.mrb[0].mxu0
      %v1517 = vadd.f32 0.0, %v1516
      %v1518 = vpop.f32.mrb[0].mxu0
      %1519 = vmatprep.mubr.bf16.mxu0 0
      %1520 = vmatmul.mubr.bf16.gmra.mrb[0].mxu0 %v538
      %v1521 = vpop.f32.mrb[0].mxu0
      %v1522 = vadd.f32 0.0, %v1521
      %v1523 = vpop.f32.mrb[0].mxu0
      %v1524 = vpop.f32.mrb[0].mxu0
      %v1525 = vadd.f32 0.0, %v1524
      %v1526 = vpop.f32.mrb[0].mxu0
      %1527 = vmatprep.mubr.bf16.mxu0 0
      %1528 = vmatmul.mubr.bf16.gmra.mrb[0].mxu0 %v1389
      %v1529 = vpop.f32.mrb[0].mxu0
      %v1530 = vadd.f32 0.0, %v1529
      %v1531 = vpop.f32.mrb[0].mxu0
      %v1532 = vpop.f32.mrb[0].mxu0
      %v1533 = vadd.f32 0.0, %v1532
      %v1534 = vpop.f32.mrb[0].mxu0
      %1535 = vdwg.mxu0
      %v1536 = vadd.f32 %v1330, %v1474
      %v1537 = vadd.f32 %v1331, %v1477
      %v1538 = vadd.f32 %v1332, %v1482
      %v1539 = vadd.f32 %v1333, %v1485
      %v1540 = vadd.f32 %v1334, %v1490
      %v1541 = vadd.f32 %v1335, %v1493
      %v1542 = vadd.f32 %v1336, %v1498
      %v1543 = vadd.f32 %v1337, %v1501
      %v1544 = vadd.f32 %v1338, %v1506
      %v1545 = vadd.f32 %v1339, %v1509
      %v1546 = vadd.f32 %v1340, %v1514
      %v1547 = vadd.f32 %v1341, %v1517
      %v1548 = vadd.f32 %v1342, %v1522
      %v1549 = vadd.f32 %v1343, %v1525
      %v1550 = vadd.f32 %v1344, %v1530
      %v1551 = vadd.f32 %v1345, %v1533
      %v1553 = vrot.slane %v281, 5
      %v1554 = vrot.slane %v1553, 4
      %v1555 = vrot.slane %v282, 5
      %v1556 = vsel %vm895, %v1554, %v1555
      %v1557 = vrot.slane %v1555, 4
      %v1558 = vrot.slane %v283, 5
      %v1559 = vsel %vm895, %v1557, %v1558
      %s1560 = scalar_lea.vmem %s1, 320
      %v1561 = vld [vmem:[%s1560] sm:$0xf]
      %v1562 = vld [vmem:[%s1560 + $0x4] sm:$0xf]
      %v1563 = vld [vmem:[%s1560 + $0x8] sm:$0xf]
      %v1564 = vld [vmem:[%s1560 + $0xc] sm:$0xf]
      %v1565 = vld [vmem:[%s1560 + $0x10] sm:$0xf]
      %v1566 = vld [vmem:[%s1560 + $0x14] sm:$0xf]
      %v1567 = vld [vmem:[%s1560 + $0x18] sm:$0xf]
      %v1568 = vld [vmem:[%s1560 + $0x1c] sm:$0xf]
      %v1569 = vld [vmem:[%s1560 + $0x20] sm:$0xf]
      %v1570 = vld [vmem:[%s1560 + $0x24] sm:$0xf]
      %v1571 = vld [vmem:[%s1560 + $0x28] sm:$0xf]
      %v1572 = vld [vmem:[%s1560 + $0x2c] sm:$0xf]
      %v1573 = vld [vmem:[%s1560 + $0x30] sm:$0xf]
      %v1574 = vld [vmem:[%s1560 + $0x34] sm:$0xf]
      %v1575 = vld [vmem:[%s1560 + $0x38] sm:$0xf]
      %v1576 = vld [vmem:[%s1560 + $0x3c] sm:$0xf]
      %v1577 = vunpack.c.l.b16 %v1556
      %v1578 = vunpack.c.l.b16 %v1559
      %v1579 = vpack.c.b16 %v1578, %v1577
      %v1597 = vunpack.c.l.b16 %v1561
      %v1598 = vunpack.c.l.b16 %v1562
      %v1599 = vunpack.c.l.b16 %v1563
      %v1600 = vunpack.c.l.b16 %v1564
      %v1601 = vunpack.c.l.b16 %v1565
      %v1602 = vunpack.c.l.b16 %v1566
      %v1603 = vunpack.c.l.b16 %v1567
      %v1604 = vunpack.c.l.b16 %v1568
      %v1605 = vunpack.c.l.b16 %v1569
      %v1606 = vunpack.c.l.b16 %v1570
      %v1607 = vunpack.c.l.b16 %v1571
      %v1608 = vunpack.c.l.b16 %v1572
      %v1609 = vunpack.c.l.b16 %v1573
      %v1610 = vunpack.c.l.b16 %v1574
      %v1611 = vunpack.c.l.b16 %v1575
      %v1612 = vunpack.c.l.b16 %v1576
      %v1613 = vpack.c.b16 %v1598, %v1597
      %v1614 = vpack.c.b16 %v1600, %v1599
      %v1615 = vpack.c.b16 %v1602, %v1601
      %v1616 = vpack.c.b16 %v1604, %v1603
      %v1617 = vpack.c.b16 %v1606, %v1605
      %v1618 = vpack.c.b16 %v1608, %v1607
      %v1619 = vpack.c.b16 %v1610, %v1609
      %v1620 = vpack.c.b16 %v1612, %v1611
      %1629 = vmatprep.subr.bf16.mxu0 0
      %1630 = vmatpush1.bf16.msra.mxu0 %v1613
      %1631 = vmatprep.subr.bf16.mxu0 0
      %1632 = vmatpush1.bf16.msra.mxu0 %v1614
      %1633 = vmatprep.subr.bf16.mxu0 0
      %1634 = vmatpush1.bf16.msra.mxu0 %v1615
      %1635 = vmatprep.subr.bf16.mxu0 0
      %1636 = vmatpush1.bf16.msra.mxu0 %v1616
      %1637 = vmatprep.subr.bf16.mxu0 0
      %1638 = vmatpush1.bf16.msra.mxu0 %v1617
      %1639 = vmatprep.subr.bf16.mxu0 0
      %1640 = vmatpush1.bf16.msra.mxu0 %v1618
      %1641 = vmatprep.subr.bf16.mxu0 0
      %1642 = vmatpush1.bf16.msra.mxu0 %v1619
      %1643 = vmatprep.subr.bf16.mxu0 0
      %1644 = vmatpush1.bf16.msra.mxu0 %v1620
      %1645 = vmatprep.subr.bf16.mxu0 0
      %1646 = vmatpush1.bf16.msra.mxu0 0
      %1647 = vmatprep.subr.bf16.mxu0 0
      %1648 = vmatpush1.bf16.msra.mxu0 0
      %1649 = vmatprep.subr.bf16.mxu0 0
      %1650 = vmatpush1.bf16.msra.mxu0 0
      %1651 = vmatprep.subr.bf16.mxu0 0
      %1652 = vmatpush1.bf16.msra.mxu0 0
      %1653 = vmatprep.subr.bf16.mxu0 0
      %1654 = vmatpush1.bf16.msra.mxu0 0
      %1655 = vmatprep.subr.bf16.mxu0 0
      %1656 = vmatpush1.bf16.msra.mxu0 0
      %1657 = vmatprep.subr.bf16.mxu0 0
      %1658 = vmatpush1.bf16.msra.mxu0 0
      %1659 = vmatprep.subr.bf16.mxu0 0
      %1660 = vmatpush1.bf16.msra.mxu0 0
      %1661 = vmatprep.mubr.bf16.mxu0 0
      %1662 = vmatmul.mubr.bf16.gmra.mrb[0].mxu0 %v986
      %v1663 = vpop.f32.mrb[0].mxu0
      %v1664 = vadd.f32 0.0, %v1663
      %v1665 = vpop.f32.mrb[0].mxu0
      %v1666 = vpop.f32.mrb[0].mxu0
      %v1667 = vadd.f32 0.0, %v1666
      %v1668 = vpop.f32.mrb[0].mxu0
      %1669 = vmatprep.mubr.bf16.mxu0 0
      %1670 = vmatmul.mubr.bf16.gmra.mrb[0].mxu0 %v987
      %v1671 = vpop.f32.mrb[0].mxu0
      %v1672 = vadd.f32 0.0, %v1671
      %v1673 = vpop.f32.mrb[0].mxu0
      %v1674 = vpop.f32.mrb[0].mxu0
      %v1675 = vadd.f32 0.0, %v1674
      %v1676 = vpop.f32.mrb[0].mxu0
      %1677 = vmatprep.mubr.bf16.mxu0 0
      %1678 = vmatmul.mubr.bf16.gmra.mrb[0].mxu0 %v988
      %v1679 = vpop.f32.mrb[0].mxu0
      %v1680 = vadd.f32 0.0, %v1679
      %v1681 = vpop.f32.mrb[0].mxu0
      %v1682 = vpop.f32.mrb[0].mxu0
      %v1683 = vadd.f32 0.0, %v1682
      %v1684 = vpop.f32.mrb[0].mxu0
      %1685 = vmatprep.mubr.bf16.mxu0 0
      %1686 = vmatmul.mubr.bf16.gmra.mrb[0].mxu0 %v989
      %v1687 = vpop.f32.mrb[0].mxu0
      %v1688 = vadd.f32 0.0, %v1687
      %v1689 = vpop.f32.mrb[0].mxu0
      %v1690 = vpop.f32.mrb[0].mxu0
      %v1691 = vadd.f32 0.0, %v1690
      %v1692 = vpop.f32.mrb[0].mxu0
      %1693 = vmatprep.mubr.bf16.mxu0 0
      %1694 = vmatmul.mubr.bf16.gmra.mrb[0].mxu0 %v990
      %v1695 = vpop.f32.mrb[0].mxu0
      %v1696 = vadd.f32 0.0, %v1695
      %v1697 = vpop.f32.mrb[0].mxu0
      %v1698 = vpop.f32.mrb[0].mxu0
      %v1699 = vadd.f32 0.0, %v1698
      %v1700 = vpop.f32.mrb[0].mxu0
      %1701 = vmatprep.mubr.bf16.mxu0 0
      %1702 = vmatmul.mubr.bf16.gmra.mrb[0].mxu0 %v991
      %v1703 = vpop.f32.mrb[0].mxu0
      %v1704 = vadd.f32 0.0, %v1703
      %v1705 = vpop.f32.mrb[0].mxu0
      %v1706 = vpop.f32.mrb[0].mxu0
      %v1707 = vadd.f32 0.0, %v1706
      %v1708 = vpop.f32.mrb[0].mxu0
      %1709 = vmatprep.mubr.bf16.mxu0 0
      %1710 = vmatmul.mubr.bf16.gmra.mrb[0].mxu0 %v992
      %v1711 = vpop.f32.mrb[0].mxu0
      %v1712 = vadd.f32 0.0, %v1711
      %v1713 = vpop.f32.mrb[0].mxu0
      %v1714 = vpop.f32.mrb[0].mxu0
      %v1715 = vadd.f32 0.0, %v1714
      %v1716 = vpop.f32.mrb[0].mxu0
      %1717 = vmatprep.mubr.bf16.mxu0 0
      %1718 = vmatmul.mubr.bf16.gmra.mrb[0].mxu0 %v1579
      %v1719 = vpop.f32.mrb[0].mxu0
      %v1720 = vadd.f32 0.0, %v1719
      %v1721 = vpop.f32.mrb[0].mxu0
      %v1722 = vpop.f32.mrb[0].mxu0
      %v1723 = vadd.f32 0.0, %v1722
      %v1724 = vpop.f32.mrb[0].mxu0
      %1725 = vdwg.mxu0
      %v1726 = vadd.f32 %v1536, %v1664
      %v1727 = vadd.f32 %v1537, %v1667
      %v1728 = vadd.f32 %v1538, %v1672
      %v1729 = vadd.f32 %v1539, %v1675
      %v1730 = vadd.f32 %v1540, %v1680
      %v1731 = vadd.f32 %v1541, %v1683
      %v1732 = vadd.f32 %v1542, %v1688
      %v1733 = vadd.f32 %v1543, %v1691
      %v1734 = vadd.f32 %v1544, %v1696
      %v1735 = vadd.f32 %v1545, %v1699
      %v1736 = vadd.f32 %v1546, %v1704
      %v1737 = vadd.f32 %v1547, %v1707
      %v1738 = vadd.f32 %v1548, %v1712
      %v1739 = vadd.f32 %v1549, %v1715
      %v1740 = vadd.f32 %v1550, %v1720
      %v1741 = vadd.f32 %v1551, %v1723
      %s1742 = scalar_lea.vmem %s1, 384
      %v1743 = vld [vmem:[%s1742] sm:$0xf]
      %v1744 = vld [vmem:[%s1742 + $0x4] sm:$0xf]
      %v1745 = vld [vmem:[%s1742 + $0x8] sm:$0xf]
      %v1746 = vld [vmem:[%s1742 + $0xc] sm:$0xf]
      %v1747 = vld [vmem:[%s1742 + $0x10] sm:$0xf]
      %v1748 = vld [vmem:[%s1742 + $0x14] sm:$0xf]
      %v1749 = vld [vmem:[%s1742 + $0x18] sm:$0xf]
      %v1750 = vld [vmem:[%s1742 + $0x1c] sm:$0xf]
      %v1751 = vld [vmem:[%s1742 + $0x20] sm:$0xf]
      %v1752 = vld [vmem:[%s1742 + $0x24] sm:$0xf]
      %v1753 = vld [vmem:[%s1742 + $0x28] sm:$0xf]
      %v1754 = vld [vmem:[%s1742 + $0x2c] sm:$0xf]
      %v1755 = vld [vmem:[%s1742 + $0x30] sm:$0xf]
      %v1756 = vld [vmem:[%s1742 + $0x34] sm:$0xf]
      %v1757 = vld [vmem:[%s1742 + $0x38] sm:$0xf]
      %v1758 = vld [vmem:[%s1742 + $0x3c] sm:$0xf]
      %v1761 = vunpack.c.l.b16 %v284
      %v1762 = vunpack.c.l.b16 %v285
      %v1763 = vpack.c.b16 %v1762, %v1761
      %v1781 = vunpack.c.l.b16 %v1743
      %v1782 = vunpack.c.l.b16 %v1744
      %v1783 = vunpack.c.l.b16 %v1745
      %v1784 = vunpack.c.l.b16 %v1746
      %v1785 = vunpack.c.l.b16 %v1747
      %v1786 = vunpack.c.l.b16 %v1748
      %v1787 = vunpack.c.l.b16 %v1749
      %v1788 = vunpack.c.l.b16 %v1750
      %v1789 = vunpack.c.l.b16 %v1751
      %v1790 = vunpack.c.l.b16 %v1752
      %v1791 = vunpack.c.l.b16 %v1753
      %v1792 = vunpack.c.l.b16 %v1754
      %v1793 = vunpack.c.l.b16 %v1755
      %v1794 = vunpack.c.l.b16 %v1756
      %v1795 = vunpack.c.l.b16 %v1757
      %v1796 = vunpack.c.l.b16 %v1758
      %v1797 = vpack.c.b16 %v1782, %v1781
      %v1798 = vpack.c.b16 %v1784, %v1783
      %v1799 = vpack.c.b16 %v1786, %v1785
      %v1800 = vpack.c.b16 %v1788, %v1787
      %v1801 = vpack.c.b16 %v1790, %v1789
      %v1802 = vpack.c.b16 %v1792, %v1791
      %v1803 = vpack.c.b16 %v1794, %v1793
      %v1804 = vpack.c.b16 %v1796, %v1795
      %1813 = vmatprep.subr.bf16.mxu0 0
      %1814 = vmatpush1.bf16.msra.mxu0 %v1797
      %1815 = vmatprep.subr.bf16.mxu0 0
      %1816 = vmatpush1.bf16.msra.mxu0 %v1798
      %1817 = vmatprep.subr.bf16.mxu0 0
      %1818 = vmatpush1.bf16.msra.mxu0 %v1799
      %1819 = vmatprep.subr.bf16.mxu0 0
      %1820 = vmatpush1.bf16.msra.mxu0 %v1800
      %1821 = vmatprep.subr.bf16.mxu0 0
      %1822 = vmatpush1.bf16.msra.mxu0 %v1801
      %1823 = vmatprep.subr.bf16.mxu0 0
      %1824 = vmatpush1.bf16.msra.mxu0 %v1802
      %1825 = vmatprep.subr.bf16.mxu0 0
      %1826 = vmatpush1.bf16.msra.mxu0 %v1803
      %1827 = vmatprep.subr.bf16.mxu0 0
      %1828 = vmatpush1.bf16.msra.mxu0 %v1804
      %1829 = vmatprep.subr.bf16.mxu0 0
      %1830 = vmatpush1.bf16.msra.mxu0 0
      %1831 = vmatprep.subr.bf16.mxu0 0
      %1832 = vmatpush1.bf16.msra.mxu0 0
      %1833 = vmatprep.subr.bf16.mxu0 0
      %1834 = vmatpush1.bf16.msra.mxu0 0
      %1835 = vmatprep.subr.bf16.mxu0 0
      %1836 = vmatpush1.bf16.msra.mxu0 0
      %1837 = vmatprep.subr.bf16.mxu0 0
      %1838 = vmatpush1.bf16.msra.mxu0 0
      %1839 = vmatprep.subr.bf16.mxu0 0
      %1840 = vmatpush1.bf16.msra.mxu0 0
      %1841 = vmatprep.subr.bf16.mxu0 0
      %1842 = vmatpush1.bf16.msra.mxu0 0
      %1843 = vmatprep.subr.bf16.mxu0 0
      %1844 = vmatpush1.bf16.msra.mxu0 0
      %1845 = vmatprep.mubr.bf16.mxu0 0
      %1846 = vmatmul.mubr.bf16.gmra.mrb[0].mxu0 %v726
      %v1847 = vpop.f32.mrb[0].mxu0
      %v1848 = vadd.f32 0.0, %v1847
      %v1849 = vpop.f32.mrb[0].mxu0
      %v1850 = vpop.f32.mrb[0].mxu0
      %v1851 = vadd.f32 0.0, %v1850
      %v1852 = vpop.f32.mrb[0].mxu0
      %1853 = vmatprep.mubr.bf16.mxu0 0
      %1854 = vmatmul.mubr.bf16.gmra.mrb[0].mxu0 %v727
      %v1855 = vpop.f32.mrb[0].mxu0
      %v1856 = vadd.f32 0.0, %v1855
      %v1857 = vpop.f32.mrb[0].mxu0
      %v1858 = vpop.f32.mrb[0].mxu0
      %v1859 = vadd.f32 0.0, %v1858
      %v1860 = vpop.f32.mrb[0].mxu0
      %1861 = vmatprep.mubr.bf16.mxu0 0
      %1862 = vmatmul.mubr.bf16.gmra.mrb[0].mxu0 %v728
      %v1863 = vpop.f32.mrb[0].mxu0
      %v1864 = vadd.f32 0.0, %v1863
      %v1865 = vpop.f32.mrb[0].mxu0
      %v1866 = vpop.f32.mrb[0].mxu0
      %v1867 = vadd.f32 0.0, %v1866
      %v1868 = vpop.f32.mrb[0].mxu0
      %1869 = vmatprep.mubr.bf16.mxu0 0
      %1870 = vmatmul.mubr.bf16.gmra.mrb[0].mxu0 %v729
      %v1871 = vpop.f32.mrb[0].mxu0
      %v1872 = vadd.f32 0.0, %v1871
      %v1873 = vpop.f32.mrb[0].mxu0
      %v1874 = vpop.f32.mrb[0].mxu0
      %v1875 = vadd.f32 0.0, %v1874
      %v1876 = vpop.f32.mrb[0].mxu0
      %1877 = vmatprep.mubr.bf16.mxu0 0
      %1878 = vmatmul.mubr.bf16.gmra.mrb[0].mxu0 %v730
      %v1879 = vpop.f32.mrb[0].mxu0
      %v1880 = vadd.f32 0.0, %v1879
      %v1881 = vpop.f32.mrb[0].mxu0
      %v1882 = vpop.f32.mrb[0].mxu0
      %v1883 = vadd.f32 0.0, %v1882
      %v1884 = vpop.f32.mrb[0].mxu0
      %1885 = vmatprep.mubr.bf16.mxu0 0
      %1886 = vmatmul.mubr.bf16.gmra.mrb[0].mxu0 %v731
      %v1887 = vpop.f32.mrb[0].mxu0
      %v1888 = vadd.f32 0.0, %v1887
      %v1889 = vpop.f32.mrb[0].mxu0
      %v1890 = vpop.f32.mrb[0].mxu0
      %v1891 = vadd.f32 0.0, %v1890
      %v1892 = vpop.f32.mrb[0].mxu0
      %1893 = vmatprep.mubr.bf16.mxu0 0
      %1894 = vmatmul.mubr.bf16.gmra.mrb[0].mxu0 %v1183
      %v1895 = vpop.f32.mrb[0].mxu0
      %v1896 = vadd.f32 0.0, %v1895
      %v1897 = vpop.f32.mrb[0].mxu0
      %v1898 = vpop.f32.mrb[0].mxu0
      %v1899 = vadd.f32 0.0, %v1898
      %v1900 = vpop.f32.mrb[0].mxu0
      %1901 = vmatprep.mubr.bf16.mxu0 0
      %1902 = vmatmul.mubr.bf16.gmra.mrb[0].mxu0 %v1763
      %v1903 = vpop.f32.mrb[0].mxu0
      %v1904 = vadd.f32 0.0, %v1903
      %v1905 = vpop.f32.mrb[0].mxu0
      %v1906 = vpop.f32.mrb[0].mxu0
      %v1907 = vadd.f32 0.0, %v1906
      %v1908 = vpop.f32.mrb[0].mxu0
      %1909 = vdwg.mxu0
      %v1910 = vadd.f32 %v1726, %v1848
      %v1911 = vadd.f32 %v1727, %v1851
      %v1912 = vadd.f32 %v1728, %v1856
      %v1913 = vadd.f32 %v1729, %v1859
      %v1914 = vadd.f32 %v1730, %v1864
      %v1915 = vadd.f32 %v1731, %v1867
      %v1916 = vadd.f32 %v1732, %v1872
      %v1917 = vadd.f32 %v1733, %v1875
      %v1918 = vadd.f32 %v1734, %v1880
      %v1919 = vadd.f32 %v1735, %v1883
      %v1920 = vadd.f32 %v1736, %v1888
      %v1921 = vadd.f32 %v1737, %v1891
      %v1922 = vadd.f32 %v1738, %v1896
      %v1923 = vadd.f32 %v1739, %v1899
      %v1924 = vadd.f32 %v1740, %v1904
      %v1925 = vadd.f32 %v1741, %v1907
      %v1927 = vshrl.u32 %v284, 16
      %v1929 = vrot.slane %v1927, 4
      %v1930 = vshll.u32 %v284, 16
      %v1932 = vrot.slane %v1930, 5
      %v1933 = vor.u32 %v1929, %v1932
      %v1934 = vrot.slane %v1933, 4
      %v1936 = vshll.u32 %v285, 16
      %v1938 = vrot.slane %v1936, 5
      %v1939 = vsel %vm305, %v1934, %v1938
      %v1940 = vshrl.u32 %v285, 16
      %v1942 = vrot.slane %v1940, 4
      %v1943 = vor.u32 %v1942, %v1938
      %v1944 = vrot.slane %v1943, 4
      %v1946 = vshll.u32 %v286, 16
      %v1948 = vrot.slane %v1946, 5
      %v1949 = vsel %vm305, %v1944, %v1948
      %s1950 = scalar_lea.vmem %s1, 448
      %v1951 = vld [vmem:[%s1950] sm:$0xf]
      %v1952 = vld [vmem:[%s1950 + $0x4] sm:$0xf]
      %v1953 = vld [vmem:[%s1950 + $0x8] sm:$0xf]
      %v1954 = vld [vmem:[%s1950 + $0xc] sm:$0xf]
      %v1955 = vld [vmem:[%s1950 + $0x10] sm:$0xf]
      %v1956 = vld [vmem:[%s1950 + $0x14] sm:$0xf]
      %v1957 = vld [vmem:[%s1950 + $0x18] sm:$0xf]
      %v1958 = vld [vmem:[%s1950 + $0x1c] sm:$0xf]
      %v1959 = vld [vmem:[%s1950 + $0x20] sm:$0xf]
      %v1960 = vld [vmem:[%s1950 + $0x24] sm:$0xf]
      %v1961 = vld [vmem:[%s1950 + $0x28] sm:$0xf]
      %v1962 = vld [vmem:[%s1950 + $0x2c] sm:$0xf]
      %v1963 = vld [vmem:[%s1950 + $0x30] sm:$0xf]
      %v1964 = vld [vmem:[%s1950 + $0x34] sm:$0xf]
      %v1965 = vld [vmem:[%s1950 + $0x38] sm:$0xf]
      %v1966 = vld [vmem:[%s1950 + $0x3c] sm:$0xf]
      %v1967 = vunpack.c.l.b16 %v1939
      %v1968 = vunpack.c.l.b16 %v1949
      %v1969 = vpack.c.b16 %v1968, %v1967
      %v1987 = vunpack.c.l.b16 %v1951
      %v1988 = vunpack.c.l.b16 %v1952
      %v1989 = vunpack.c.l.b16 %v1953
      %v1990 = vunpack.c.l.b16 %v1954
      %v1991 = vunpack.c.l.b16 %v1955
      %v1992 = vunpack.c.l.b16 %v1956
      %v1993 = vunpack.c.l.b16 %v1957
      %v1994 = vunpack.c.l.b16 %v1958
      %v1995 = vunpack.c.l.b16 %v1959
      %v1996 = vunpack.c.l.b16 %v1960
      %v1997 = vunpack.c.l.b16 %v1961
      %v1998 = vunpack.c.l.b16 %v1962
      %v1999 = vunpack.c.l.b16 %v1963
      %v2000 = vunpack.c.l.b16 %v1964
      %v2001 = vunpack.c.l.b16 %v1965
      %v2002 = vunpack.c.l.b16 %v1966
      %v2003 = vpack.c.b16 %v1988, %v1987
      %v2004 = vpack.c.b16 %v1990, %v1989
      %v2005 = vpack.c.b16 %v1992, %v1991
      %v2006 = vpack.c.b16 %v1994, %v1993
      %v2007 = vpack.c.b16 %v1996, %v1995
      %v2008 = vpack.c.b16 %v1998, %v1997
      %v2009 = vpack.c.b16 %v2000, %v1999
      %v2010 = vpack.c.b16 %v2002, %v2001
      %2019 = vmatprep.subr.bf16.mxu0 0
      %2020 = vmatpush1.bf16.msra.mxu0 %v2003
      %2021 = vmatprep.subr.bf16.mxu0 0
      %2022 = vmatpush1.bf16.msra.mxu0 %v2004
      %2023 = vmatprep.subr.bf16.mxu0 0
      %2024 = vmatpush1.bf16.msra.mxu0 %v2005
      %2025 = vmatprep.subr.bf16.mxu0 0
      %2026 = vmatpush1.bf16.msra.mxu0 %v2006
      %2027 = vmatprep.subr.bf16.mxu0 0
      %2028 = vmatpush1.bf16.msra.mxu0 %v2007
      %2029 = vmatprep.subr.bf16.mxu0 0
      %2030 = vmatpush1.bf16.msra.mxu0 %v2008
      %2031 = vmatprep.subr.bf16.mxu0 0
      %2032 = vmatpush1.bf16.msra.mxu0 %v2009
      %2033 = vmatprep.subr.bf16.mxu0 0
      %2034 = vmatpush1.bf16.msra.mxu0 %v2010
      %2035 = vmatprep.subr.bf16.mxu0 0
      %2036 = vmatpush1.bf16.msra.mxu0 0
      %2037 = vmatprep.subr.bf16.mxu0 0
      %2038 = vmatpush1.bf16.msra.mxu0 0
      %2039 = vmatprep.subr.bf16.mxu0 0
      %2040 = vmatpush1.bf16.msra.mxu0 0
      %2041 = vmatprep.subr.bf16.mxu0 0
      %2042 = vmatpush1.bf16.msra.mxu0 0
      %2043 = vmatprep.subr.bf16.mxu0 0
      %2044 = vmatpush1.bf16.msra.mxu0 0
      %2045 = vmatprep.subr.bf16.mxu0 0
      %2046 = vmatpush1.bf16.msra.mxu0 0
      %2047 = vmatprep.subr.bf16.mxu0 0
      %2048 = vmatpush1.bf16.msra.mxu0 0
      %2049 = vmatprep.subr.bf16.mxu0 0
      %2050 = vmatpush1.bf16.msra.mxu0 0
      %2051 = vmatprep.mubr.bf16.mxu0 0
      %2052 = vmatmul.mubr.bf16.gmra.mrb[0].mxu0 %v533
      %v2053 = vpop.f32.mrb[0].mxu0
      %v2054 = vadd.f32 0.0, %v2053
      %v2055 = vpop.f32.mrb[0].mxu0
      %v2056 = vpop.f32.mrb[0].mxu0
      %v2057 = vadd.f32 0.0, %v2056
      %v2058 = vpop.f32.mrb[0].mxu0
      %2059 = vmatprep.mubr.bf16.mxu0 0
      %2060 = vmatmul.mubr.bf16.gmra.mrb[0].mxu0 %v534
      %v2061 = vpop.f32.mrb[0].mxu0
      %v2062 = vadd.f32 0.0, %v2061
      %v2063 = vpop.f32.mrb[0].mxu0
      %v2064 = vpop.f32.mrb[0].mxu0
      %v2065 = vadd.f32 0.0, %v2064
      %v2066 = vpop.f32.mrb[0].mxu0
      %2067 = vmatprep.mubr.bf16.mxu0 0
      %2068 = vmatmul.mubr.bf16.gmra.mrb[0].mxu0 %v535
      %v2069 = vpop.f32.mrb[0].mxu0
      %v2070 = vadd.f32 0.0, %v2069
      %v2071 = vpop.f32.mrb[0].mxu0
      %v2072 = vpop.f32.mrb[0].mxu0
      %v2073 = vadd.f32 0.0, %v2072
      %v2074 = vpop.f32.mrb[0].mxu0
      %2075 = vmatprep.mubr.bf16.mxu0 0
      %2076 = vmatmul.mubr.bf16.gmra.mrb[0].mxu0 %v536
      %v2077 = vpop.f32.mrb[0].mxu0
      %v2078 = vadd.f32 0.0, %v2077
      %v2079 = vpop.f32.mrb[0].mxu0
      %v2080 = vpop.f32.mrb[0].mxu0
      %v2081 = vadd.f32 0.0, %v2080
      %v2082 = vpop.f32.mrb[0].mxu0
      %2083 = vmatprep.mubr.bf16.mxu0 0
      %2084 = vmatmul.mubr.bf16.gmra.mrb[0].mxu0 %v537
      %v2085 = vpop.f32.mrb[0].mxu0
      %v2086 = vadd.f32 0.0, %v2085
      %v2087 = vpop.f32.mrb[0].mxu0
      %v2088 = vpop.f32.mrb[0].mxu0
      %v2089 = vadd.f32 0.0, %v2088
      %v2090 = vpop.f32.mrb[0].mxu0
      %2091 = vmatprep.mubr.bf16.mxu0 0
      %2092 = vmatmul.mubr.bf16.gmra.mrb[0].mxu0 %v538
      %v2093 = vpop.f32.mrb[0].mxu0
      %v2094 = vadd.f32 0.0, %v2093
      %v2095 = vpop.f32.mrb[0].mxu0
      %v2096 = vpop.f32.mrb[0].mxu0
      %v2097 = vadd.f32 0.0, %v2096
      %v2098 = vpop.f32.mrb[0].mxu0
      %2099 = vmatprep.mubr.bf16.mxu0 0
      %2100 = vmatmul.mubr.bf16.gmra.mrb[0].mxu0 %v1389
      %v2101 = vpop.f32.mrb[0].mxu0
      %v2102 = vadd.f32 0.0, %v2101
      %v2103 = vpop.f32.mrb[0].mxu0
      %v2104 = vpop.f32.mrb[0].mxu0
      %v2105 = vadd.f32 0.0, %v2104
      %v2106 = vpop.f32.mrb[0].mxu0
      %2107 = vmatprep.mubr.bf16.mxu0 0
      %2108 = vmatmul.mubr.bf16.gmra.mrb[0].mxu0 %v1969
      %v2109 = vpop.f32.mrb[0].mxu0
      %v2110 = vadd.f32 0.0, %v2109
      %v2111 = vpop.f32.mrb[0].mxu0
      %v2112 = vpop.f32.mrb[0].mxu0
      %v2113 = vadd.f32 0.0, %v2112
      %v2114 = vpop.f32.mrb[0].mxu0
      %2115 = vdwg.mxu0
      %v2116 = vadd.f32 %v1910, %v2054
      %v2117 = vadd.f32 %v1911, %v2057
      %v2118 = vadd.f32 %v1912, %v2062
      %v2119 = vadd.f32 %v1913, %v2065
      %v2120 = vadd.f32 %v1914, %v2070
      %v2121 = vadd.f32 %v1915, %v2073
      %v2122 = vadd.f32 %v1916, %v2078
      %v2123 = vadd.f32 %v1917, %v2081
      %v2124 = vadd.f32 %v1918, %v2086
      %v2125 = vadd.f32 %v1919, %v2089
      %v2126 = vadd.f32 %v1920, %v2094
      %v2127 = vadd.f32 %v1921, %v2097
      %v2128 = vadd.f32 %v1922, %v2102
      %v2129 = vadd.f32 %v1923, %v2105
      %v2130 = vadd.f32 %v1924, %v2110
      %v2131 = vadd.f32 %v1925, %v2113
      %v2133 = vrot.slane %v284, 5
      %v2134 = vrot.slane %v2133, 4
      %v2135 = vrot.slane %v285, 5
      %v2136 = vsel %vm895, %v2134, %v2135
      %v2137 = vrot.slane %v2135, 4
      %v2138 = vrot.slane %v286, 5
      %v2139 = vsel %vm895, %v2137, %v2138
      %s2140 = scalar_lea.vmem %s1, 512
      %v2141 = vld [vmem:[%s2140] sm:$0xf]
      %v2142 = vld [vmem:[%s2140 + $0x4] sm:$0xf]
      %v2143 = vld [vmem:[%s2140 + $0x8] sm:$0xf]
      %v2144 = vld [vmem:[%s2140 + $0xc] sm:$0xf]
      %v2145 = vld [vmem:[%s2140 + $0x10] sm:$0xf]
      %v2146 = vld [vmem:[%s2140 + $0x14] sm:$0xf]
      %v2147 = vld [vmem:[%s2140 + $0x18] sm:$0xf]
      %v2148 = vld [vmem:[%s2140 + $0x1c] sm:$0xf]
      %v2149 = vld [vmem:[%s2140 + $0x20] sm:$0xf]
      %v2150 = vld [vmem:[%s2140 + $0x24] sm:$0xf]
      %v2151 = vld [vmem:[%s2140 + $0x28] sm:$0xf]
      %v2152 = vld [vmem:[%s2140 + $0x2c] sm:$0xf]
      %v2153 = vld [vmem:[%s2140 + $0x30] sm:$0xf]
      %v2154 = vld [vmem:[%s2140 + $0x34] sm:$0xf]
      %v2155 = vld [vmem:[%s2140 + $0x38] sm:$0xf]
      %v2156 = vld [vmem:[%s2140 + $0x3c] sm:$0xf]
      %v2157 = vunpack.c.l.b16 %v2136
      %v2158 = vunpack.c.l.b16 %v2139
      %v2159 = vpack.c.b16 %v2158, %v2157
      %v2177 = vunpack.c.l.b16 %v2141
      %v2178 = vunpack.c.l.b16 %v2142
      %v2179 = vunpack.c.l.b16 %v2143
      %v2180 = vunpack.c.l.b16 %v2144
      %v2181 = vunpack.c.l.b16 %v2145
      %v2182 = vunpack.c.l.b16 %v2146
      %v2183 = vunpack.c.l.b16 %v2147
      %v2184 = vunpack.c.l.b16 %v2148
      %v2185 = vunpack.c.l.b16 %v2149
      %v2186 = vunpack.c.l.b16 %v2150
      %v2187 = vunpack.c.l.b16 %v2151
      %v2188 = vunpack.c.l.b16 %v2152
      %v2189 = vunpack.c.l.b16 %v2153
      %v2190 = vunpack.c.l.b16 %v2154
      %v2191 = vunpack.c.l.b16 %v2155
      %v2192 = vunpack.c.l.b16 %v2156
      %v2193 = vpack.c.b16 %v2178, %v2177
      %v2194 = vpack.c.b16 %v2180, %v2179
      %v2195 = vpack.c.b16 %v2182, %v2181
      %v2196 = vpack.c.b16 %v2184, %v2183
      %v2197 = vpack.c.b16 %v2186, %v2185
      %v2198 = vpack.c.b16 %v2188, %v2187
      %v2199 = vpack.c.b16 %v2190, %v2189
      %v2200 = vpack.c.b16 %v2192, %v2191
      %2209 = vmatprep.subr.bf16.mxu0 0
      %2210 = vmatpush1.bf16.msra.mxu0 %v2193
      %2211 = vmatprep.subr.bf16.mxu0 0
      %2212 = vmatpush1.bf16.msra.mxu0 %v2194
      %2213 = vmatprep.subr.bf16.mxu0 0
      %2214 = vmatpush1.bf16.msra.mxu0 %v2195
      %2215 = vmatprep.subr.bf16.mxu0 0
      %2216 = vmatpush1.bf16.msra.mxu0 %v2196
      %2217 = vmatprep.subr.bf16.mxu0 0
      %2218 = vmatpush1.bf16.msra.mxu0 %v2197
      %2219 = vmatprep.subr.bf16.mxu0 0
      %2220 = vmatpush1.bf16.msra.mxu0 %v2198
      %2221 = vmatprep.subr.bf16.mxu0 0
      %2222 = vmatpush1.bf16.msra.mxu0 %v2199
      %2223 = vmatprep.subr.bf16.mxu0 0
      %2224 = vmatpush1.bf16.msra.mxu0 %v2200
      %2225 = vmatprep.subr.bf16.mxu0 0
      %2226 = vmatpush1.bf16.msra.mxu0 0
      %2227 = vmatprep.subr.bf16.mxu0 0
      %2228 = vmatpush1.bf16.msra.mxu0 0
      %2229 = vmatprep.subr.bf16.mxu0 0
      %2230 = vmatpush1.bf16.msra.mxu0 0
      %2231 = vmatprep.subr.bf16.mxu0 0
      %2232 = vmatpush1.bf16.msra.mxu0 0
      %2233 = vmatprep.subr.bf16.mxu0 0
      %2234 = vmatpush1.bf16.msra.mxu0 0
      %2235 = vmatprep.subr.bf16.mxu0 0
      %2236 = vmatpush1.bf16.msra.mxu0 0
      %2237 = vmatprep.subr.bf16.mxu0 0
      %2238 = vmatpush1.bf16.msra.mxu0 0
      %2239 = vmatprep.subr.bf16.mxu0 0
      %2240 = vmatpush1.bf16.msra.mxu0 0
      %2241 = vmatprep.mubr.bf16.mxu0 0
      %2242 = vmatmul.mubr.bf16.gmra.mrb[0].mxu0 %v987
      %v2243 = vpop.f32.mrb[0].mxu0
      %v2244 = vadd.f32 0.0, %v2243
      %v2245 = vpop.f32.mrb[0].mxu0
      %v2246 = vpop.f32.mrb[0].mxu0
      %v2247 = vadd.f32 0.0, %v2246
      %v2248 = vpop.f32.mrb[0].mxu0
      %2249 = vmatprep.mubr.bf16.mxu0 0
      %2250 = vmatmul.mubr.bf16.gmra.mrb[0].mxu0 %v988
      %v2251 = vpop.f32.mrb[0].mxu0
      %v2252 = vadd.f32 0.0, %v2251
      %v2253 = vpop.f32.mrb[0].mxu0
      %v2254 = vpop.f32.mrb[0].mxu0
      %v2255 = vadd.f32 0.0, %v2254
      %v2256 = vpop.f32.mrb[0].mxu0
      %2257 = vmatprep.mubr.bf16.mxu0 0
      %2258 = vmatmul.mubr.bf16.gmra.mrb[0].mxu0 %v989
      %v2259 = vpop.f32.mrb[0].mxu0
      %v2260 = vadd.f32 0.0, %v2259
      %v2261 = vpop.f32.mrb[0].mxu0
      %v2262 = vpop.f32.mrb[0].mxu0
      %v2263 = vadd.f32 0.0, %v2262
      %v2264 = vpop.f32.mrb[0].mxu0
      %2265 = vmatprep.mubr.bf16.mxu0 0
      %2266 = vmatmul.mubr.bf16.gmra.mrb[0].mxu0 %v990
      %v2267 = vpop.f32.mrb[0].mxu0
      %v2268 = vadd.f32 0.0, %v2267
      %v2269 = vpop.f32.mrb[0].mxu0
      %v2270 = vpop.f32.mrb[0].mxu0
      %v2271 = vadd.f32 0.0, %v2270
      %v2272 = vpop.f32.mrb[0].mxu0
      %2273 = vmatprep.mubr.bf16.mxu0 0
      %2274 = vmatmul.mubr.bf16.gmra.mrb[0].mxu0 %v991
      %v2275 = vpop.f32.mrb[0].mxu0
      %v2276 = vadd.f32 0.0, %v2275
      %v2277 = vpop.f32.mrb[0].mxu0
      %v2278 = vpop.f32.mrb[0].mxu0
      %v2279 = vadd.f32 0.0, %v2278
      %v2280 = vpop.f32.mrb[0].mxu0
      %2281 = vmatprep.mubr.bf16.mxu0 0
      %2282 = vmatmul.mubr.bf16.gmra.mrb[0].mxu0 %v992
      %v2283 = vpop.f32.mrb[0].mxu0
      %v2284 = vadd.f32 0.0, %v2283
      %v2285 = vpop.f32.mrb[0].mxu0
      %v2286 = vpop.f32.mrb[0].mxu0
      %v2287 = vadd.f32 0.0, %v2286
      %v2288 = vpop.f32.mrb[0].mxu0
      %2289 = vmatprep.mubr.bf16.mxu0 0
      %2290 = vmatmul.mubr.bf16.gmra.mrb[0].mxu0 %v1579
      %v2291 = vpop.f32.mrb[0].mxu0
      %v2292 = vadd.f32 0.0, %v2291
      %v2293 = vpop.f32.mrb[0].mxu0
      %v2294 = vpop.f32.mrb[0].mxu0
      %v2295 = vadd.f32 0.0, %v2294
      %v2296 = vpop.f32.mrb[0].mxu0
      %2297 = vmatprep.mubr.bf16.mxu0 0
      %2298 = vmatmul.mubr.bf16.gmra.mrb[0].mxu0 %v2159
      %v2299 = vpop.f32.mrb[0].mxu0
      %v2300 = vadd.f32 0.0, %v2299
      %v2301 = vpop.f32.mrb[0].mxu0
      %v2302 = vpop.f32.mrb[0].mxu0
      %v2303 = vadd.f32 0.0, %v2302
      %v2304 = vpop.f32.mrb[0].mxu0
      %2305 = vdwg.mxu0
      %v2306 = vadd.f32 %v2116, %v2244
      %v2307 = vadd.f32 %v2117, %v2247
      %v2308 = vadd.f32 %v2118, %v2252
      %v2309 = vadd.f32 %v2119, %v2255
      %v2310 = vadd.f32 %v2120, %v2260
      %v2311 = vadd.f32 %v2121, %v2263
      %v2312 = vadd.f32 %v2122, %v2268
      %v2313 = vadd.f32 %v2123, %v2271
      %v2314 = vadd.f32 %v2124, %v2276
      %v2315 = vadd.f32 %v2125, %v2279
      %v2316 = vadd.f32 %v2126, %v2284
      %v2317 = vadd.f32 %v2127, %v2287
      %v2318 = vadd.f32 %v2128, %v2292
      %v2319 = vadd.f32 %v2129, %v2295
      %v2320 = vadd.f32 %v2130, %v2300
      %v2321 = vadd.f32 %v2131, %v2303
      %v2322 = vld [vmem:[%s2] sm:$0x1]
      %v2324 = vlaneseq
      %v2325 = vshrl.u32 %v2324, 7
      %v2326 = vsub.s32 0, %v2325
      %v2327 = vrot.slane %v2322, %v2326
      %v2329 = vadd.f32 %v2306, %v2327
      %v2330 = vadd.f32 %v2307, %v2327
      %v2331 = vadd.f32 %v2308, %v2327
      %v2332 = vadd.f32 %v2309, %v2327
      %v2333 = vadd.f32 %v2310, %v2327
      %v2334 = vadd.f32 %v2311, %v2327
      %v2335 = vadd.f32 %v2312, %v2327
      %v2336 = vadd.f32 %v2313, %v2327
      %v2337 = vadd.f32 %v2314, %v2327
      %v2338 = vadd.f32 %v2315, %v2327
      %v2339 = vadd.f32 %v2316, %v2327
      %v2340 = vadd.f32 %v2317, %v2327
      %v2341 = vadd.f32 %v2318, %v2327
      %v2342 = vadd.f32 %v2319, %v2327
      %v2343 = vadd.f32 %v2320, %v2327
      %v2344 = vadd.f32 %v2321, %v2327
      %v2345 = vpack.c.bf16 %v2330, %v2329
      %v2346 = vpack.c.bf16 %v2332, %v2331
      %v2347 = vpack.c.bf16 %v2334, %v2333
      %v2348 = vpack.c.bf16 %v2336, %v2335
      %v2349 = vpack.c.bf16 %v2338, %v2337
      %v2350 = vpack.c.bf16 %v2340, %v2339
      %v2351 = vpack.c.bf16 %v2342, %v2341
      %v2352 = vpack.c.bf16 %v2344, %v2343
      %v2361 = vunpack.c.l.b16 %v2345
      %v2362 = vunpack.c.h.b16 %v2345
      %v2363 = vunpack.c.l.b16 %v2346
      %v2364 = vunpack.c.h.b16 %v2346
      %v2365 = vunpack.c.l.b16 %v2347
      %v2366 = vunpack.c.h.b16 %v2347
      %v2367 = vunpack.c.l.b16 %v2348
      %v2368 = vunpack.c.h.b16 %v2348
      %v2369 = vunpack.c.l.b16 %v2349
      %v2370 = vunpack.c.h.b16 %v2349
      %v2371 = vunpack.c.l.b16 %v2350
      %v2372 = vunpack.c.h.b16 %v2350
      %v2373 = vunpack.c.l.b16 %v2351
      %v2374 = vunpack.c.h.b16 %v2351
      %v2375 = vunpack.c.l.b16 %v2352
      %v2376 = vunpack.c.h.b16 %v2352
      %v2377 = vpack.c.b16 %v2361, %v2361
      %v2378 = vpack.c.b16 %v2362, %v2362
      %v2379 = vpack.c.b16 %v2363, %v2363
      %v2380 = vpack.c.b16 %v2364, %v2364
      %v2381 = vpack.c.b16 %v2365, %v2365
      %v2382 = vpack.c.b16 %v2366, %v2366
      %v2383 = vpack.c.b16 %v2367, %v2367
      %v2384 = vpack.c.b16 %v2368, %v2368
      %v2385 = vpack.c.b16 %v2369, %v2369
      %v2386 = vpack.c.b16 %v2370, %v2370
      %v2387 = vpack.c.b16 %v2371, %v2371
      %v2388 = vpack.c.b16 %v2372, %v2372
      %v2389 = vpack.c.b16 %v2373, %v2373
      %v2390 = vpack.c.b16 %v2374, %v2374
      %v2391 = vpack.c.b16 %v2375, %v2375
      %v2392 = vpack.c.b16 %v2376, %v2376
      %2409 = vst [vmem:[%s246] sm:$0xf] %v2377
      %2410 = vst [vmem:[%s246 + $0x4] sm:$0xf] %v2378
      %2411 = vst [vmem:[%s246 + $0x8] sm:$0xf] %v2379
      %2412 = vst [vmem:[%s246 + $0xc] sm:$0xf] %v2380
      %2413 = vst [vmem:[%s246 + $0x10] sm:$0xf] %v2381
      %2414 = vst [vmem:[%s246 + $0x14] sm:$0xf] %v2382
      %2415 = vst [vmem:[%s246 + $0x18] sm:$0xf] %v2383
      %2416 = vst [vmem:[%s246 + $0x1c] sm:$0xf] %v2384
      %2417 = vst [vmem:[%s246 + $0x20] sm:$0xf] %v2385
      %2418 = vst [vmem:[%s246 + $0x24] sm:$0xf] %v2386
      %2419 = vst [vmem:[%s246 + $0x28] sm:$0xf] %v2387
      %2420 = vst [vmem:[%s246 + $0x2c] sm:$0xf] %v2388
      %2421 = vst [vmem:[%s246 + $0x30] sm:$0xf] %v2389
      %2422 = vst [vmem:[%s246 + $0x34] sm:$0xf] %v2390
      %2423 = vst [vmem:[%s246 + $0x38] sm:$0xf] %v2391
      %2424 = vst [vmem:[%s246 + $0x3c] sm:$0xf] %v2392
      %v2425 = vadd.f32 %v2329, %v2330
      %v2426 = vadd.f32 %v2425, %v2331
      %v2427 = vadd.f32 %v2426, %v2332
      %v2428 = vadd.f32 %v2427, %v2333
      %v2429 = vadd.f32 %v2428, %v2334
      %v2430 = vadd.f32 %v2429, %v2335
      %v2431 = vadd.f32 %v2430, %v2336
      %v2432 = vadd.f32 %v2431, %v2337
      %v2433 = vadd.f32 %v2432, %v2338
      %v2434 = vadd.f32 %v2433, %v2339
      %v2435 = vadd.f32 %v2434, %v2340
      %v2436 = vadd.f32 %v2435, %v2341
      %v2437 = vadd.f32 %v2436, %v2342
      %v2438 = vadd.f32 %v2437, %v2343
      %v2439 = vadd.f32 %v2438, %v2344
      %v2440 = vrot.slane %v2439, 4
      %v2441 = vadd.f32 %v2439, %v2440
      %v2442 = vrot.slane %v2441, 2
      %v2443 = vadd.f32 %v2441, %v2442
      %v2444 = vrot.slane %v2443, 1
      %v2445 = vadd.f32 %v2443, %v2444
      %v2446 = vmul.f32 %v2329, %v2329
      %v2447 = vmul.f32 %v2330, %v2330
      %v2448 = vmul.f32 %v2331, %v2331
      %v2449 = vmul.f32 %v2332, %v2332
      %v2450 = vmul.f32 %v2333, %v2333
      %v2451 = vmul.f32 %v2334, %v2334
      %v2452 = vmul.f32 %v2335, %v2335
      %v2453 = vmul.f32 %v2336, %v2336
      %v2454 = vmul.f32 %v2337, %v2337
      %v2455 = vmul.f32 %v2338, %v2338
      %v2456 = vmul.f32 %v2339, %v2339
      %v2457 = vmul.f32 %v2340, %v2340
      %v2458 = vmul.f32 %v2341, %v2341
      %v2459 = vmul.f32 %v2342, %v2342
      %v2460 = vmul.f32 %v2343, %v2343
      %v2461 = vmul.f32 %v2344, %v2344
      %v2462 = vadd.f32 %v2446, %v2447
      %v2463 = vadd.f32 %v2462, %v2448
      %v2464 = vadd.f32 %v2463, %v2449
      %v2465 = vadd.f32 %v2464, %v2450
      %v2466 = vadd.f32 %v2465, %v2451
      %v2467 = vadd.f32 %v2466, %v2452
      %v2468 = vadd.f32 %v2467, %v2453
      %v2469 = vadd.f32 %v2468, %v2454
      %v2470 = vadd.f32 %v2469, %v2455
      %v2471 = vadd.f32 %v2470, %v2456
      %v2472 = vadd.f32 %v2471, %v2457
      %v2473 = vadd.f32 %v2472, %v2458
      %v2474 = vadd.f32 %v2473, %v2459
      %v2475 = vadd.f32 %v2474, %v2460
      %v2476 = vadd.f32 %v2475, %v2461
      %v2477 = vrot.slane %v2476, 4
      %v2478 = vadd.f32 %v2476, %v2477
      %v2479 = vrot.slane %v2478, 2
      %v2480 = vadd.f32 %v2478, %v2479
      %v2481 = vrot.slane %v2480, 1
      %v2482 = vadd.f32 %v2480, %v2481
      %vm2483 = vcmask 1040384
      %v2484 = vsel %vm2483, %v2445, %v2482
      %2485 = vst [vmem:[%s255] sm:$0x3] %v2484
      %s2486 = smul.u32 16, %s21
      %p2487 = scmp.lt.s32.totalorder %s20, 1
      %s2488 = scalar_select %p2487, %s20, 1
      %p2489 = scmp.lt.s32.totalorder %s2486, 31
      %s2490 = scalar_select %p2489, %s2486, 31
      %s2491 = smul.addr %s2488, 32
      %s2492 = sadd.s32 %s2490, %s2491
      %s2493 = smul.addr %s2492, 4
      %s2494 = scalar_lea.vmem %s3, %s2493
      %p2495 = scmp.lt.s32.totalorder %s20, 1
      %s2496 = scalar_select %p2495, %s20, 1
      %p2497 = scmp.lt.s32.totalorder %s21, 1
      %s2498 = scalar_select %p2497, %s21, 1
      %s2499 = smul.addr %s2496, 2
      %s2500 = sadd.s32 %s2498, %s2499
      %s2501 = smul.addr %s2500, 2
      %s2502 = scalar_lea.vmem %s4, %s2501
      // Predicated region
      $region33: #{_lambda_.3} parent=31 // pred_check
        %p2503 = pneg %p118
      $region34: #{_lambda_.3} parent=31 // pred_check_branch
        %2505 = sbr.rel (%p2503) target = $region36
      $region35: #{_lambda_.3} parent=31 // pred_region
        %s2506 = smul.u32 16, %s21
      $region36: #{_lambda_.3} parent=31 // pred_fallthru
        _
      // Predicated region
      $region37: #{_lambda_.3} parent=31 // pred_check
        %p2507 = pneg %p146
      $region38: #{_lambda_.3} parent=31 // pred_check_branch
        %2509 = sbr.rel (%p2507) target = $region40
      $region39: #{_lambda_.3} parent=31 // pred_region
        _
      $region40: #{_lambda_.3} parent=31 // pred_fallthru
        _
    $region32: #{_lambda_.3} parent=5 // pred_fallthru
      _
    %p2510 = scmp.le.s32.totalorder 2, %s11
    // Predicated region
    $region41: #{_lambda_.3} parent=5 // pred_check
      %p2511 = pneg %p2510
    $region42: #{_lambda_.3} parent=5 // pred_check_branch
      %2513 = sbr.rel (%p2511) target = $region44
    $region43: #{_lambda_.3} parent=5 // pred_region
      %s2514 = ssub.s32 %s11, 2
      // Predicated region
      $region45: #{_lambda_.3} parent=43 // pred_check
        %p2515 = pneg %p124
      $region46: #{_lambda_.3} parent=43 // pred_check_branch
        %2517 = sbr.rel (%p2515) target = $region48
      $region47: #{_lambda_.3} parent=43 // pred_region
        %s2518 = smul.u32 16, %s23
        %p2519 = scmp.lt.s32.totalorder %s22, 1
        %s2520 = scalar_select %p2519, %s22, 1
        %p2521 = scmp.lt.s32.totalorder %s2518, 31
        %s2522 = scalar_select %p2521, %s2518, 31
        %s2523 = smul.addr %s2520, 32
        %s2524 = sadd.s32 %s2522, %s2523
        %s2525 = smul.addr %s2524, 4
        %s2526 = scalar_lea.vmem %s3, %s2525
      $region48: #{_lambda_.3} parent=43 // pred_fallthru
        _
      // Predicated region
      $region49: #{_lambda_.3} parent=43 // pred_check
        %p2527 = pneg %p152
      $region50: #{_lambda_.3} parent=43 // pred_check_branch
        %2529 = sbr.rel (%p2527) target = $region52
      $region51: #{_lambda_.3} parent=43 // pred_region
        %p2530 = scmp.lt.s32.totalorder %s22, 1
        %s2531 = scalar_select %p2530, %s22, 1
        %p2532 = scmp.lt.s32.totalorder %s23, 1
        %s2533 = scalar_select %p2532, %s23, 1
        %s2534 = smul.addr %s2531, 2
        %s2535 = sadd.s32 %s2533, %s2534
        %s2536 = smul.addr %s2535, 2
        %s2537 = scalar_lea.vmem %s4, %s2536
      $region52: #{_lambda_.3} parent=43 // pred_fallthru
        _
    $region44: #{_lambda_.3} parent=5 // pred_fallthru
      _
  $region6: #{_lambda_.3} parent=0 // loop_footer
    %s15 = sadd.s32 1, %s11
  $region7: #{_lambda_.3} parent=0 // loop_footer_branch
    %10 = sbr.rel target = $region3
  $region8: #{_lambda_.3} parent=0 // loop_exit
    _

// kernel: _lambda_.4
$region0: #{_lambda_.4}
  #allocation0 [shape = 'u32[]', space=smem, size = 0x4, offset = 0x4, fixed_abs, tag = 'smem constant byte address 0x4 - core index']
  #allocation1 [shape = 'u32[144,128]{1,0:T(1,128)}', space=vmem, size = 0x12000, scoped, tag = 'internal scratch']
  %s0 = inlined_call_operand.vmem [shape: bf16[2,2,10,18,128], index: 0, kind: input, shape index: {}]
  %s1 = inlined_call_operand.vmem [shape: bf16[3,3,128,128], index: 1, kind: input, shape index: {}]
  %s2 = inlined_call_operand.vmem [shape: f32[1,128], index: 2, kind: input, shape index: {}]
  %s3 = inlined_call_operand.vmem [shape: f32[2,1,128], index: 3, kind: input, shape index: {}]
  %s4 = inlined_call_operand.vmem [shape: f32[2,1,128], index: 4, kind: input, shape index: {}]
  %s5 = inlined_call_operand.vmem [shape: bf16[2,256,128], index: 5, kind: output, shape index: {0}]
  %s6 = inlined_call_operand.vmem [shape: f32[2,2,2,128], index: 6, kind: output, shape index: {1}]
  %7 = xla_tuple %s5, %s6
  %s8 = sld [smem:[#allocation0]]
  $region61: #{_lambda_.4} parent=0
    _
  %s10 = ssub.s32 1, %s8
  %s11 = scalar_select 0, %s10, %s8
  loop: start=0, step=1, limit=6
  $region2: #{_lambda_.4} parent=0 // loop_pre_header
    _
  $region3: #{_lambda_.4} parent=0 // loop_header
    %s13 = sphi 0, %s17
    %p14 = scmp.ge.s32.totalorder %s13, 6
    %s20 = sphi 0, %s32
    %s21 = sphi 0, %s28
    %s22 = sphi 0, %s20
    %s23 = sphi 0, %s21
    %s24 = sphi 0, %s22
    %s25 = sphi 0, %s23
    %s37 = sphi 0, %s39
    %s40 = sphi 0, %s37
    %s41 = sphi 0, %s40
    %s57 = sphi 0, %s41
    %s61 = sphi 0, %s61
    %s63 = sphi 0, %s61
    %s64 = sphi 0, %s63
    %s78 = sphi 0, %s64
    %s82 = sphi 0, %s82
    %s84 = sphi 0, %s82
    %s85 = sphi 0, %s84
    %s99 = sphi 0, %s85
    %s105 = sphi 0, %s107
    %s108 = sphi 0, %s105
    %s109 = sphi 0, %s108
    %s125 = sphi 0, %s109
    %s131 = sphi 0, %s133
    %s134 = sphi 0, %s131
    %s135 = sphi 0, %s134
    %s151 = sphi 0, %s135
    %s159 = sphi 0, %s161
    %s162 = sphi 0, %s159
    %s163 = sphi 0, %s162
    %s179 = sphi 0, %s163
    %s187 = sphi 0, %s189
    %s190 = sphi 0, %s187
    %s191 = sphi 0, %s190
    %s207 = sphi 0, %s191
  $region4: #{_lambda_.4} parent=0 // loop_header_branch
    %16 = sbr.rel (%p14) target = $region8
  $region5: #{_lambda_.4} parent=0 // loop_body
    %s18 = ssub.s32 %s13, 1
    %s19 = ssub.s32 %s13, 2
    %s26 = sadd.s32 1, %s21
    %p27 = scmp.ge.s32.totalorder %s26, 2
    %s28 = scalar_select %p27, 0, %s26
    %s29 = sadd.s32 1, %s20
    %s30 = scalar_select %p27, %s29, %s20
    %p31 = scmp.ge.s32.totalorder %s30, 2
    %s32 = scalar_select %p31, 0, %s30
    %s33 = ssub.s32 %s20, %s32
    %s34 = ssub.s32 %s21, %s28
    %s35 = sor.u32 %s33, %s34
    %p36 = scmp.eq.s32.totalorder %s35, 0
    %s38 = sadd.s32 %s37, 1
    %s39 = scalar_select %p36, %s37, %s38
    %p42 = pneg %p36
    %p43 = scmp.eq.s32.totalorder %s13, 3
    %p44 = por %p42, %p43
    %p45 = scmp.ne.s32.totalorder %s37, %s40
    %p46 = scmp.eq.s32.totalorder %s13, 0
    %p47 = por %p45, %p46
    %p48 = scmp.ne.s32.totalorder %s37, %s40
    %p49 = scmp.eq.s32.totalorder %s18, 3
    %p50 = por %p48, %p49
    %p51 = scmp.ne.s32.totalorder %s40, %s41
    %p52 = scmp.eq.s32.totalorder %s18, 0
    %p53 = por %p51, %p52
    %p54 = scmp.ne.s32.totalorder %s40, %s41
    %p55 = scmp.eq.s32.totalorder %s19, 3
    %p56 = por %p54, %p55
    %p58 = scmp.ne.s32.totalorder %s41, %s57
    %p59 = scmp.eq.s32.totalorder %s19, 0
    %p60 = por %p58, %p59
    %s62 = sadd.s32 %s61, 1
    %p65 = scmp.eq.s32.totalorder %s13, 3
    %p66 = scmp.ne.s32.totalorder %s61, %s63
    %p67 = scmp.eq.s32.totalorder %s13, 0
    %p68 = por %p66, %p67
    %p69 = scmp.ne.s32.totalorder %s61, %s63
    %p70 = scmp.eq.s32.totalorder %s18, 3
    %p71 = por %p69, %p70
    %p72 = scmp.ne.s32.totalorder %s63, %s64
    %p73 = scmp.eq.s32.totalorder %s18, 0
    %p74 = por %p72, %p73
    %p75 = scmp.ne.s32.totalorder %s63, %s64
    %p76 = scmp.eq.s32.totalorder %s19, 3
    %p77 = por %p75, %p76
    %p79 = scmp.ne.s32.totalorder %s64, %s78
    %p80 = scmp.eq.s32.totalorder %s19, 0
    %p81 = por %p79, %p80
    %s83 = sadd.s32 %s82, 1
    %p86 = scmp.eq.s32.totalorder %s13, 3
    %p87 = scmp.ne.s32.totalorder %s82, %s84
    %p88 = scmp.eq.s32.totalorder %s13, 0
    %p89 = por %p87, %p88
    %p90 = scmp.ne.s32.totalorder %s82, %s84
    %p91 = scmp.eq.s32.totalorder %s18, 3
    %p92 = por %p90, %p91
    %p93 = scmp.ne.s32.totalorder %s84, %s85
    %p94 = scmp.eq.s32.totalorder %s18, 0
    %p95 = por %p93, %p94
    %p96 = scmp.ne.s32.totalorder %s84, %s85
    %p97 = scmp.eq.s32.totalorder %s19, 3
    %p98 = por %p96, %p97
    %p100 = scmp.ne.s32.totalorder %s85, %s99
    %p101 = scmp.eq.s32.totalorder %s19, 0
    %p102 = por %p100, %p101
    %s103 = ssub.s32 %s20, %s32
    %p104 = scmp.eq.s32.totalorder %s103, 0
    %s106 = sadd.s32 %s105, 1
    %s107 = scalar_select %p104, %s105, %s106
    %p110 = pneg %p104
    %p111 = scmp.eq.s32.totalorder %s13, 3
    %p112 = por %p110, %p111
    %p113 = scmp.ne.s32.totalorder %s105, %s108
    %p114 = scmp.eq.s32.totalorder %s13, 0
    %p115 = por %p113, %p114
    %p116 = scmp.ne.s32.totalorder %s105, %s108
    %p117 = scmp.eq.s32.totalorder %s18, 3
    %p118 = por %p116, %p117
    %p119 = scmp.ne.s32.totalorder %s108, %s109
    %p120 = scmp.eq.s32.totalorder %s18, 0
    %p121 = por %p119, %p120
    %p122 = scmp.ne.s32.totalorder %s108, %s109
    %p123 = scmp.eq.s32.totalorder %s19, 3
    %p124 = por %p122, %p123
    %p126 = scmp.ne.s32.totalorder %s109, %s125
    %p127 = scmp.eq.s32.totalorder %s19, 0
    %p128 = por %p126, %p127
    %s129 = ssub.s32 %s20, %s32
    %p130 = scmp.eq.s32.totalorder %s129, 0
    %s132 = sadd.s32 %s131, 1
    %s133 = scalar_select %p130, %s131, %s132
    %p136 = pneg %p130
    %p137 = scmp.eq.s32.totalorder %s13, 3
    %p138 = por %p136, %p137
    %p139 = scmp.ne.s32.totalorder %s131, %s134
    %p140 = scmp.eq.s32.totalorder %s13, 0
    %p141 = por %p139, %p140
    %p142 = scmp.ne.s32.totalorder %s131, %s134
    %p143 = scmp.eq.s32.totalorder %s18, 3
    %p144 = por %p142, %p143
    %p145 = scmp.ne.s32.totalorder %s134, %s135
    %p146 = scmp.eq.s32.totalorder %s18, 0
    %p147 = por %p145, %p146
    %p148 = scmp.ne.s32.totalorder %s134, %s135
    %p149 = scmp.eq.s32.totalorder %s19, 3
    %p150 = por %p148, %p149
    %p152 = scmp.ne.s32.totalorder %s135, %s151
    %p153 = scmp.eq.s32.totalorder %s19, 0
    %p154 = por %p152, %p153
    %s155 = ssub.s32 %s20, %s32
    %s156 = ssub.s32 %s21, %s28
    %s157 = sor.u32 %s155, %s156
    %p158 = scmp.eq.s32.totalorder %s157, 0
    %s160 = sadd.s32 %s159, 1
    %s161 = scalar_select %p158, %s159, %s160
    %p164 = pneg %p158
    %p165 = scmp.eq.s32.totalorder %s13, 3
    %p166 = por %p164, %p165
    %p167 = scmp.ne.s32.totalorder %s159, %s162
    %p168 = scmp.eq.s32.totalorder %s13, 0
    %p169 = por %p167, %p168
    %p170 = scmp.ne.s32.totalorder %s159, %s162
    %p171 = scmp.eq.s32.totalorder %s18, 3
    %p172 = por %p170, %p171
    %p173 = scmp.ne.s32.totalorder %s162, %s163
    %p174 = scmp.eq.s32.totalorder %s18, 0
    %p175 = por %p173, %p174
    %p176 = scmp.ne.s32.totalorder %s162, %s163
    %p177 = scmp.eq.s32.totalorder %s19, 3
    %p178 = por %p176, %p177
    %p180 = scmp.ne.s32.totalorder %s163, %s179
    %p181 = scmp.eq.s32.totalorder %s19, 0
    %p182 = por %p180, %p181
    %s183 = ssub.s32 %s20, %s32
    %s184 = ssub.s32 %s21, %s28
    %s185 = sor.u32 %s183, %s184
    %p186 = scmp.eq.s32.totalorder %s185, 0
    %s188 = sadd.s32 %s187, 1
    %s189 = scalar_select %p186, %s187, %s188
    %p192 = pneg %p186
    %p193 = scmp.eq.s32.totalorder %s13, 3
    %p194 = por %p192, %p193
    %p195 = scmp.ne.s32.totalorder %s187, %s190
    %p196 = scmp.eq.s32.totalorder %s13, 0
    %p197 = por %p195, %p196
    %p198 = scmp.ne.s32.totalorder %s187, %s190
    %p199 = scmp.eq.s32.totalorder %s18, 3
    %p200 = por %p198, %p199
    %p201 = scmp.ne.s32.totalorder %s190, %s191
    %p202 = scmp.eq.s32.totalorder %s18, 0
    %p203 = por %p201, %p202
    %p204 = scmp.ne.s32.totalorder %s190, %s191
    %p205 = scmp.eq.s32.totalorder %s19, 3
    %p206 = por %p204, %p205
    %p208 = scmp.ne.s32.totalorder %s191, %s207
    %p209 = scmp.eq.s32.totalorder %s19, 0
    %p210 = por %p208, %p209
    %p211 = scmp.le.s32.totalorder 1, %s13
    %p212 = scmp.lt.s32.totalorder %s13, 5
    %p213 = pnand %p211, %p212
    %p214 = pneg %p213
    // Predicated region
    $region9: #{_lambda_.4} parent=5 // pred_check
      _
    $region10: #{_lambda_.4} parent=5 // pred_check_branch
      %216 = sbr.rel (%p213) target = $region12
    $region11: #{_lambda_.4} parent=5 // pred_region
      %s217 = ssub.s32 %s13, 1
      // Predicated region
      $region13: #{_lambda_.4} parent=11 // pred_check
        %p218 = pneg %p74
      $region14: #{_lambda_.4} parent=11 // pred_check_branch
        %220 = sbr.rel (%p218) target = $region16
      $region15: #{_lambda_.4} parent=11 // pred_region
        _
      $region16: #{_lambda_.4} parent=11 // pred_fallthru
        _
      // Predicated region
      $region17: #{_lambda_.4} parent=11 // pred_check
        %p221 = pneg %p95
      $region18: #{_lambda_.4} parent=11 // pred_check_branch
        %223 = sbr.rel (%p221) target = $region20
      $region19: #{_lambda_.4} parent=11 // pred_region
        _
      $region20: #{_lambda_.4} parent=11 // pred_fallthru
        _
    $region12: #{_lambda_.4} parent=5 // pred_fallthru
      _
    %p224 = scmp.lt.s32.totalorder %s13, 4
    // Predicated region
    $region21: #{_lambda_.4} parent=5 // pred_check
      %p225 = pneg %p224
    $region22: #{_lambda_.4} parent=5 // pred_check_branch
      %227 = sbr.rel (%p225) target = $region24
    $region23: #{_lambda_.4} parent=5 // pred_region
      // Predicated region
      $region25: #{_lambda_.4} parent=23 // pred_check
        %p228 = pneg %p47
      $region26: #{_lambda_.4} parent=23 // pred_check_branch
        %230 = sbr.rel (%p228) target = $region28
      $region27: #{_lambda_.4} parent=23 // pred_region
        %p231 = scmp.lt.s32.totalorder %s20, 1
        %s232 = scalar_select %p231, %s20, 1
        %p233 = scmp.lt.s32.totalorder %s21, 1
        %s234 = scalar_select %p233, %s21, 1
        %s235 = smul.addr %s234, 30
        %s236 = smul.addr %s232, 60
        %s237 = sadd.s32 %s235, %s236
        %s238 = smul.addr %s237, 4
        %s239 = scalar_lea.vmem %s0, %s238
      $region28: #{_lambda_.4} parent=23 // pred_fallthru
        _
      // Predicated region
      $region29: #{_lambda_.4} parent=23 // pred_check
        %p240 = pneg %p115
      $region30: #{_lambda_.4} parent=23 // pred_check_branch
        %242 = sbr.rel (%p240) target = $region32
      $region31: #{_lambda_.4} parent=23 // pred_region
        %p243 = scmp.lt.s32.totalorder %s20, 1
        %s244 = scalar_select %p243, %s20, 1
        %s245 = scalar_lea.vmem %s3, %s244
      $region32: #{_lambda_.4} parent=23 // pred_fallthru
        _
      // Predicated region
      $region33: #{_lambda_.4} parent=23 // pred_check
        %p246 = pneg %p141
      $region34: #{_lambda_.4} parent=23 // pred_check_branch
        %248 = sbr.rel (%p246) target = $region36
      $region35: #{_lambda_.4} parent=23 // pred_region
        %p249 = scmp.lt.s32.totalorder %s20, 1
        %s250 = scalar_select %p249, %s20, 1
        %s251 = scalar_lea.vmem %s4, %s250
      $region36: #{_lambda_.4} parent=23 // pred_fallthru
        _
    $region24: #{_lambda_.4} parent=5 // pred_fallthru
      _
    %p252 = scmp.le.s32.totalorder 1, %s13
    %p253 = scmp.lt.s32.totalorder %s13, 5
    %p254 = pnand %p252, %p253
    %p255 = pneg %p254
    // Predicated region
    $region37: #{_lambda_.4} parent=5 // pred_check
      _
    $region38: #{_lambda_.4} parent=5 // pred_check_branch
      %257 = sbr.rel (%p254) target = $region40
    $region39: #{_lambda_.4} parent=5 // pred_region
      %s258 = ssub.s32 %s13, 1
      %p259 = scmp.lt.s32.totalorder %s22, 1
      %s260 = scalar_select %p259, %s22, 1
      %p261 = scmp.lt.s32.totalorder %s23, 1
      %s262 = scalar_select %p261, %s23, 1
      %s263 = smul.addr %s262, 30
      %s264 = smul.addr %s260, 60
      %s265 = sadd.s32 %s263, %s264
      %s266 = smul.addr %s265, 4
      %s267 = scalar_lea.vmem %s0, %s266
      %p268 = pneg %p53
      %p269 = pneg %p50
      %p270 = pneg %p74
      %p271 = pneg %p71
      %p272 = pneg %p95
      %p273 = pneg %p92
      %p274 = scmp.lt.s32.totalorder %s22, 1
      %s275 = scalar_select %p274, %s22, 1
      %s276 = scalar_lea.vmem %s3, %s275
      %p277 = pneg %p121
      %p278 = pneg %p118
      %p279 = scmp.lt.s32.totalorder %s22, 1
      %s280 = scalar_select %p279, %s22, 1
      %s281 = scalar_lea.vmem %s4, %s280
      %p282 = pneg %p147
      %p283 = pneg %p144
      %p284 = pneg %p175
      %p285 = pneg %p172
      %s286 = smul.u32 16, %s23
      %p287 = scmp.lt.s32.totalorder %s22, 1
      %s288 = scalar_select %p287, %s22, 1
      %p289 = scmp.lt.s32.totalorder %s286, 31
      %s290 = scalar_select %p289, %s286, 31
      %s291 = smul.addr %s288, 32
      %s292 = sadd.s32 %s290, %s291
      %s293 = smul.addr %s292, 4
      %s294 = scalar_lea.vmem %s5, %s293
      %p295 = pneg %p203
      %p296 = pneg %p200
      %p297 = scmp.lt.s32.totalorder %s22, 1
      %s298 = scalar_select %p297, %s22, 1
      %p299 = scmp.lt.s32.totalorder %s23, 1
      %s300 = scalar_select %p299, %s23, 1
      %s301 = smul.addr %s298, 2
      %s302 = sadd.s32 %s300, %s301
      %s303 = smul.addr %s302, 2
      %s304 = scalar_lea.vmem %s6, %s303
      %p305 = scmp.lt.s32.totalorder %s22, 1
      %s306 = scalar_select %p305, %s22, 1
      %p307 = scmp.lt.s32.totalorder %s23, 1
      %s308 = scalar_select %p307, %s23, 1
      %s309 = smul.addr %s308, 30
      %s310 = smul.addr %s306, 60
      %s311 = sadd.s32 %s309, %s310
      %s312 = smul.addr %s311, 4
      %s313 = scalar_lea.vmem %s0, %s312
      %p314 = scmp.lt.s32.totalorder %s22, 1
      %s315 = scalar_select %p314, %s22, 1
      %s316 = scalar_lea.vmem %s3, %s315
      %p317 = scmp.lt.s32.totalorder %s22, 1
      %s318 = scalar_select %p317, %s22, 1
      %s319 = scalar_lea.vmem %s4, %s318
      %s320 = smul.u32 16, %s23
      %p321 = scmp.lt.s32.totalorder %s22, 1
      %s322 = scalar_select %p321, %s22, 1
      %p323 = scmp.lt.s32.totalorder %s320, 31
      %s324 = scalar_select %p323, %s320, 31
      %s325 = smul.addr %s322, 32
      %s326 = sadd.s32 %s324, %s325
      %s327 = smul.addr %s326, 4
      %s328 = scalar_lea.vmem %s5, %s327
      %s329 = smul.u32 16, %s23
      %p330 = scmp.lt.s32.totalorder %s22, 1
      %s331 = scalar_select %p330, %s22, 1
      %p332 = scmp.lt.s32.totalorder %s23, 1
      %s333 = scalar_select %p332, %s23, 1
      %s334 = smul.addr %s331, 2
      %s335 = sadd.s32 %s333, %s334
      %s336 = smul.addr %s335, 2
      %s337 = scalar_lea.vmem %s6, %s336
      %v339 = vld [vmem:[%s313] sm:$0xf]
      %v340 = vld [vmem:[%s313 + $0x4] sm:$0xf]
      %v341 = vld [vmem:[%s313 + $0x8] sm:$0x1]
      %v342 = vld [vmem:[%s313 + $0xc] sm:$0xf]
      %v343 = vld [vmem:[%s313 + $0x10] sm:$0xf]
      %v344 = vld [vmem:[%s313 + $0x14] sm:$0x1]
      %v345 = vld [vmem:[%s313 + $0x18] sm:$0xf]
      %v346 = vld [vmem:[%s313 + $0x1c] sm:$0xf]
      %v347 = vld [vmem:[%s313 + $0x20] sm:$0x1]
      %v348 = vld [vmem:[%s313 + $0x24] sm:$0xf]
      %v349 = vld [vmem:[%s313 + $0x28] sm:$0xf]
      %v350 = vld [vmem:[%s313 + $0x2c] sm:$0x1]
      %v351 = vld [vmem:[%s313 + $0x30] sm:$0xf]
      %v352 = vld [vmem:[%s313 + $0x34] sm:$0xf]
      %v353 = vld [vmem:[%s313 + $0x38] sm:$0x1]
      %v354 = vld [vmem:[%s313 + $0x3c] sm:$0xf]
      %v355 = vld [vmem:[%s313 + $0x40] sm:$0xf]
      %v356 = vld [vmem:[%s313 + $0x44] sm:$0x1]
      %v357 = vld [vmem:[%s313 + $0x48] sm:$0xf]
      %v358 = vld [vmem:[%s313 + $0x4c] sm:$0xf]
      %v359 = vld [vmem:[%s313 + $0x50] sm:$0x1]
      %v360 = vld [vmem:[%s313 + $0x54] sm:$0xf]
      %v361 = vld [vmem:[%s313 + $0x58] sm:$0xf]
      %v362 = vld [vmem:[%s313 + $0x5c] sm:$0x1]
      %v363 = vld [vmem:[%s313 + $0x60] sm:$0xf]
      %v364 = vld [vmem:[%s313 + $0x64] sm:$0xf]
      %v365 = vld [vmem:[%s313 + $0x68] sm:$0x1]
      %v366 = vld [vmem:[%s313 + $0x6c] sm:$0xf]
      %v367 = vld [vmem:[%s313 + $0x70] sm:$0xf]
      %v368 = vld [vmem:[%s313 + $0x74] sm:$0x1]
      %v369 = vunpack.c.l.bf16 %v339
      %v370 = vunpack.c.l.bf16 %v340
      %v371 = vunpack.c.l.bf16 %v341
      %v372 = vunpack.c.l.bf16 %v342
      %v373 = vunpack.c.l.bf16 %v343
      %v374 = vunpack.c.l.bf16 %v344
      %v375 = vunpack.c.l.bf16 %v345
      %v376 = vunpack.c.l.bf16 %v346
      %v377 = vunpack.c.l.bf16 %v347
      %v378 = vunpack.c.l.bf16 %v348
      %v379 = vunpack.c.l.bf16 %v349
      %v380 = vunpack.c.l.bf16 %v350
      %v381 = vunpack.c.l.bf16 %v351
      %v382 = vunpack.c.l.bf16 %v352
      %v383 = vunpack.c.l.bf16 %v353
      %v384 = vunpack.c.l.bf16 %v354
      %v385 = vunpack.c.l.bf16 %v355
      %v386 = vunpack.c.l.bf16 %v356
      %v387 = vunpack.c.l.bf16 %v357
      %v388 = vunpack.c.l.bf16 %v358
      %v389 = vunpack.c.l.bf16 %v359
      %v390 = vunpack.c.l.bf16 %v360
      %v391 = vunpack.c.l.bf16 %v361
      %v392 = vunpack.c.l.bf16 %v362
      %v393 = vunpack.c.l.bf16 %v363
      %v394 = vunpack.c.l.bf16 %v364
      %v395 = vunpack.c.l.bf16 %v365
      %v396 = vunpack.c.l.bf16 %v366
      %v397 = vunpack.c.l.bf16 %v367
      %v398 = vunpack.c.l.bf16 %v368
      %v399 = vld [vmem:[%s316] sm:$0x1]
      %v401 = vlaneseq
      %v402 = vshrl.u32 %v401, 7
      %v403 = vsub.s32 0, %v402
      %v404 = vrot.slane %v399, %v403
      %v406 = vsub.f32 %v369, %v404
      %v407 = vsub.f32 %v370, %v404
      %v408 = vsub.f32 %v371, %v404
      %v409 = vsub.f32 %v372, %v404
      %v410 = vsub.f32 %v373, %v404
      %v411 = vsub.f32 %v374, %v404
      %v412 = vsub.f32 %v375, %v404
      %v413 = vsub.f32 %v376, %v404
      %v414 = vsub.f32 %v377, %v404
      %v415 = vsub.f32 %v378, %v404
      %v416 = vsub.f32 %v379, %v404
      %v417 = vsub.f32 %v380, %v404
      %v418 = vsub.f32 %v381, %v404
      %v419 = vsub.f32 %v382, %v404
      %v420 = vsub.f32 %v383, %v404
      %v421 = vsub.f32 %v384, %v404
      %v422 = vsub.f32 %v385, %v404
      %v423 = vsub.f32 %v386, %v404
      %v424 = vsub.f32 %v387, %v404
      %v425 = vsub.f32 %v388, %v404
      %v426 = vsub.f32 %v389, %v404
      %v427 = vsub.f32 %v390, %v404
      %v428 = vsub.f32 %v391, %v404
      %v429 = vsub.f32 %v392, %v404
      %v430 = vsub.f32 %v393, %v404
      %v431 = vsub.f32 %v394, %v404
      %v432 = vsub.f32 %v395, %v404
      %v433 = vsub.f32 %v396, %v404
      %v434 = vsub.f32 %v397, %v404
      %v435 = vsub.f32 %v398, %v404
      %v436 = vld [vmem:[%s319] sm:$0x1]
      %v438 = vlaneseq
      %v439 = vshrl.u32 %v438, 7
      %v440 = vsub.s32 0, %v439
      %v441 = vrot.slane %v436, %v440
      %v443 = vmul.f32 %v406, %v441
      %v444 = vmul.f32 %v407, %v441
      %v445 = vmul.f32 %v408, %v441
      %v446 = vmul.f32 %v409, %v441
      %v447 = vmul.f32 %v410, %v441
      %v448 = vmul.f32 %v411, %v441
      %v449 = vmul.f32 %v412, %v441
      %v450 = vmul.f32 %v413, %v441
      %v451 = vmul.f32 %v414, %v441
      %v452 = vmul.f32 %v415, %v441
      %v453 = vmul.f32 %v416, %v441
      %v454 = vmul.f32 %v417, %v441
      %v455 = vmul.f32 %v418, %v441
      %v456 = vmul.f32 %v419, %v441
      %v457 = vmul.f32 %v420, %v441
      %v458 = vmul.f32 %v421, %v441
      %v459 = vmul.f32 %v422, %v441
      %v460 = vmul.f32 %v423, %v441
      %v461 = vmul.f32 %v424, %v441
      %v462 = vmul.f32 %v425, %v441
      %v463 = vmul.f32 %v426, %v441
      %v464 = vmul.f32 %v427, %v441
      %v465 = vmul.f32 %v428, %v441
      %v466 = vmul.f32 %v429, %v441
      %v467 = vmul.f32 %v430, %v441
      %v468 = vmul.f32 %v431, %v441
      %v469 = vmul.f32 %v432, %v441
      %v470 = vmul.f32 %v433, %v441
      %v471 = vmul.f32 %v434, %v441
      %v472 = vmul.f32 %v435, %v441
      %v473 = vmax.f32 %v443, 0.0
      %v474 = vmax.f32 %v444, 0.0
      %v475 = vmax.f32 %v445, 0.0
      %v476 = vmax.f32 %v446, 0.0
      %v477 = vmax.f32 %v447, 0.0
      %v478 = vmax.f32 %v448, 0.0
      %v479 = vmax.f32 %v449, 0.0
      %v480 = vmax.f32 %v450, 0.0
      %v481 = vmax.f32 %v451, 0.0
      %v482 = vmax.f32 %v452, 0.0
      %v483 = vmax.f32 %v453, 0.0
      %v484 = vmax.f32 %v454, 0.0
      %v485 = vmax.f32 %v455, 0.0
      %v486 = vmax.f32 %v456, 0.0
      %v487 = vmax.f32 %v457, 0.0
      %v488 = vmax.f32 %v458, 0.0
      %v489 = vmax.f32 %v459, 0.0
      %v490 = vmax.f32 %v460, 0.0
      %v491 = vmax.f32 %v461, 0.0
      %v492 = vmax.f32 %v462, 0.0
      %v493 = vmax.f32 %v463, 0.0
      %v494 = vmax.f32 %v464, 0.0
      %v495 = vmax.f32 %v465, 0.0
      %v496 = vmax.f32 %v466, 0.0
      %v497 = vmax.f32 %v467, 0.0
      %v498 = vmax.f32 %v468, 0.0
      %v499 = vmax.f32 %v469, 0.0
      %v500 = vmax.f32 %v470, 0.0
      %v501 = vmax.f32 %v471, 0.0
      %v502 = vmax.f32 %v472, 0.0
      %v503 = vpack.c.bf16 %v474, %v473
      %v504 = vpack.c.bf16 %v475, %v475
      %v505 = vpack.c.bf16 %v477, %v476
      %v506 = vpack.c.bf16 %v478, %v478
      %v507 = vpack.c.bf16 %v480, %v479
      %v508 = vpack.c.bf16 %v481, %v481
      %v509 = vpack.c.bf16 %v483, %v482
      %v510 = vpack.c.bf16 %v484, %v484
      %v511 = vpack.c.bf16 %v486, %v485
      %v512 = vpack.c.bf16 %v487, %v487
      %v513 = vpack.c.bf16 %v489, %v488
      %v514 = vpack.c.bf16 %v490, %v490
      %v515 = vpack.c.bf16 %v492, %v491
      %v516 = vpack.c.bf16 %v493, %v493
      %v517 = vpack.c.bf16 %v495, %v494
      %v518 = vpack.c.bf16 %v496, %v496
      %v519 = vpack.c.bf16 %v498, %v497
      %v520 = vpack.c.bf16 %v499, %v499
      %v521 = vpack.c.bf16 %v501, %v500
      %v522 = vpack.c.bf16 %v502, %v502
      %v523 = vld [vmem:[%s1] sm:$0xf]
      %v524 = vld [vmem:[%s1 + $0x4] sm:$0xf]
      %v525 = vld [vmem:[%s1 + $0x8] sm:$0xf]
      %v526 = vld [vmem:[%s1 + $0xc] sm:$0xf]
      %v527 = vld [vmem:[%s1 + $0x10] sm:$0xf]
      %v528 = vld [vmem:[%s1 + $0x14] sm:$0xf]
      %v529 = vld [vmem:[%s1 + $0x18] sm:$0xf]
      %v530 = vld [vmem:[%s1 + $0x1c] sm:$0xf]
      %v531 = vld [vmem:[%s1 + $0x20] sm:$0xf]
      %v532 = vld [vmem:[%s1 + $0x24] sm:$0xf]
      %v533 = vld [vmem:[%s1 + $0x28] sm:$0xf]
      %v534 = vld [vmem:[%s1 + $0x2c] sm:$0xf]
      %v535 = vld [vmem:[%s1 + $0x30] sm:$0xf]
      %v536 = vld [vmem:[%s1 + $0x34] sm:$0xf]
      %v537 = vld [vmem:[%s1 + $0x38] sm:$0xf]
      %v538 = vld [vmem:[%s1 + $0x3c] sm:$0xf]
      %vm539 = vsmask.f32 7424
      %v541 = vshrl.u32 %v503, 16
      %v543 = vshll.u32 %v503, 16
      %v545 = vrot.slane %v543, 1
      %v546 = vor.u32 %v541, %v545
      %v548 = vshll.u32 %v504, 16
      %v550 = vrot.slane %v548, 1
      %v551 = vsel %vm539, %v546, %v550
      %v553 = vshrl.u32 %v505, 16
      %v555 = vshll.u32 %v505, 16
      %v557 = vrot.slane %v555, 1
      %v558 = vor.u32 %v553, %v557
      %v560 = vshll.u32 %v506, 16
      %v562 = vrot.slane %v560, 1
      %v563 = vsel %vm539, %v558, %v562
      %v565 = vshrl.u32 %v507, 16
      %v567 = vshll.u32 %v507, 16
      %v569 = vrot.slane %v567, 1
      %v570 = vor.u32 %v565, %v569
      %v572 = vshll.u32 %v508, 16
      %v574 = vrot.slane %v572, 1
      %v575 = vsel %vm539, %v570, %v574
      %v577 = vshrl.u32 %v509, 16
      %v579 = vshll.u32 %v509, 16
      %v581 = vrot.slane %v579, 1
      %v582 = vor.u32 %v577, %v581
      %v584 = vshll.u32 %v510, 16
      %v586 = vrot.slane %v584, 1
      %v587 = vsel %vm539, %v582, %v586
      %v589 = vshrl.u32 %v511, 16
      %v591 = vshll.u32 %v511, 16
      %v593 = vrot.slane %v591, 1
      %v594 = vor.u32 %v589, %v593
      %v596 = vshll.u32 %v512, 16
      %v598 = vrot.slane %v596, 1
      %v599 = vsel %vm539, %v594, %v598
      %v601 = vshrl.u32 %v513, 16
      %v603 = vshll.u32 %v513, 16
      %v605 = vrot.slane %v603, 1
      %v606 = vor.u32 %v601, %v605
      %v608 = vshll.u32 %v514, 16
      %v610 = vrot.slane %v608, 1
      %v611 = vsel %vm539, %v606, %v610
      %v613 = vshrl.u32 %v515, 16
      %v615 = vshll.u32 %v515, 16
      %v617 = vrot.slane %v615, 1
      %v618 = vor.u32 %v613, %v617
      %v620 = vshll.u32 %v516, 16
      %v622 = vrot.slane %v620, 1
      %v623 = vsel %vm539, %v618, %v622
      %v625 = vshrl.u32 %v517, 16
      %v627 = vshll.u32 %v517, 16
      %v629 = vrot.slane %v627, 1
      %v630 = vor.u32 %v625, %v629
      %v632 = vshll.u32 %v518, 16
      %v634 = vrot.slane %v632, 1
      %v635 = vsel %vm539, %v630, %v634
      %s644 = scalar_lea.vmem %s1, 64
      %v645 = vld [vmem:[%s644] sm:$0xf]
      %v646 = vld [vmem:[%s644 + $0x4] sm:$0xf]
      %v647 = vld [vmem:[%s644 + $0x8] sm:$0xf]
      %v648 = vld [vmem:[%s644 + $0xc] sm:$0xf]
      %v649 = vld [vmem:[%s644 + $0x10] sm:$0xf]
      %v650 = vld [vmem:[%s644 + $0x14] sm:$0xf]
      %v651 = vld [vmem:[%s644 + $0x18] sm:$0xf]
      %v652 = vld [vmem:[%s644 + $0x1c] sm:$0xf]
      %v653 = vld [vmem:[%s644 + $0x20] sm:$0xf]
      %v654 = vld [vmem:[%s644 + $0x24] sm:$0xf]
      %v655 = vld [vmem:[%s644 + $0x28] sm:$0xf]
      %v656 = vld [vmem:[%s644 + $0x2c] sm:$0xf]
      %v657 = vld [vmem:[%s644 + $0x30] sm:$0xf]
      %v658 = vld [vmem:[%s644 + $0x34] sm:$0xf]
      %v659 = vld [vmem:[%s644 + $0x38] sm:$0xf]
      %v660 = vld [vmem:[%s644 + $0x3c] sm:$0xf]
      %v677 = vunpack.c.l.b16 %v645
      %v678 = vunpack.c.l.b16 %v646
      %v679 = vunpack.c.l.b16 %v647
      %v680 = vunpack.c.l.b16 %v648
      %v681 = vunpack.c.l.b16 %v649
      %v682 = vunpack.c.l.b16 %v650
      %v683 = vunpack.c.l.b16 %v651
      %v684 = vunpack.c.l.b16 %v652
      %v685 = vunpack.c.l.b16 %v653
      %v686 = vunpack.c.l.b16 %v654
      %v687 = vunpack.c.l.b16 %v655
      %v688 = vunpack.c.l.b16 %v656
      %v689 = vunpack.c.l.b16 %v657
      %v690 = vunpack.c.l.b16 %v658
      %v691 = vunpack.c.l.b16 %v659
      %v692 = vunpack.c.l.b16 %v660
      %v693 = vpack.c.b16 %v678, %v677
      %v694 = vpack.c.b16 %v680, %v679
      %v695 = vpack.c.b16 %v682, %v681
      %v696 = vpack.c.b16 %v684, %v683
      %v697 = vpack.c.b16 %v686, %v685
      %v698 = vpack.c.b16 %v688, %v687
      %v699 = vpack.c.b16 %v690, %v689
      %v700 = vpack.c.b16 %v692, %v691
      %709 = vmatprep.subr.bf16.mxu0 0
      %710 = vmatpush1.bf16.msra.mxu0 %v693
      %711 = vmatprep.subr.bf16.mxu0 0
      %712 = vmatpush1.bf16.msra.mxu0 %v694
      %713 = vmatprep.subr.bf16.mxu0 0
      %714 = vmatpush1.bf16.msra.mxu0 %v695
      %715 = vmatprep.subr.bf16.mxu0 0
      %716 = vmatpush1.bf16.msra.mxu0 %v696
      %717 = vmatprep.subr.bf16.mxu0 0
      %718 = vmatpush1.bf16.msra.mxu0 %v697
      %719 = vmatprep.subr.bf16.mxu0 0
      %720 = vmatpush1.bf16.msra.mxu0 %v698
      %721 = vmatprep.subr.bf16.mxu0 0
      %722 = vmatpush1.bf16.msra.mxu0 %v699
      %723 = vmatprep.subr.bf16.mxu0 0
      %724 = vmatpush1.bf16.msra.mxu0 %v700
      %725 = vmatprep.subr.bf16.mxu0 0
      %726 = vmatpush1.bf16.msra.mxu0 0
      %727 = vmatprep.subr.bf16.mxu0 0
      %728 = vmatpush1.bf16.msra.mxu0 0
      %729 = vmatprep.subr.bf16.mxu0 0
      %730 = vmatpush1.bf16.msra.mxu0 0
      %731 = vmatprep.subr.bf16.mxu0 0
      %732 = vmatpush1.bf16.msra.mxu0 0
      %733 = vmatprep.subr.bf16.mxu0 0
      %734 = vmatpush1.bf16.msra.mxu0 0
      %735 = vmatprep.subr.bf16.mxu0 0
      %736 = vmatpush1.bf16.msra.mxu0 0
      %737 = vmatprep.subr.bf16.mxu0 0
      %738 = vmatpush1.bf16.msra.mxu0 0
      %739 = vmatprep.subr.bf16.mxu0 0
      %740 = vmatpush1.bf16.msra.mxu0 0
      %741 = vmatprep.mubr.bf16.mxu0 0
      %742 = vmatmul.mubr.bf16.gmra.mrb[0].mxu0 %v551
      %v743 = vpop.f32.mrb[0].mxu0
      %v744 = vadd.f32 0.0, %v743
      %v745 = vpop.f32.mrb[0].mxu0
      %v746 = vpop.f32.mrb[0].mxu0
      %v747 = vadd.f32 0.0, %v746
      %v748 = vpop.f32.mrb[0].mxu0
      %749 = vmatprep.mubr.bf16.mxu0 0
      %750 = vmatmul.mubr.bf16.gmra.mrb[0].mxu0 %v563
      %v751 = vpop.f32.mrb[0].mxu0
      %v752 = vadd.f32 0.0, %v751
      %v753 = vpop.f32.mrb[0].mxu0
      %v754 = vpop.f32.mrb[0].mxu0
      %v755 = vadd.f32 0.0, %v754
      %v756 = vpop.f32.mrb[0].mxu0
      %757 = vmatprep.mubr.bf16.mxu0 0
      %758 = vmatmul.mubr.bf16.gmra.mrb[0].mxu0 %v575
      %v759 = vpop.f32.mrb[0].mxu0
      %v760 = vadd.f32 0.0, %v759
      %v761 = vpop.f32.mrb[0].mxu0
      %v762 = vpop.f32.mrb[0].mxu0
      %v763 = vadd.f32 0.0, %v762
      %v764 = vpop.f32.mrb[0].mxu0
      %765 = vmatprep.mubr.bf16.mxu0 0
      %766 = vmatmul.mubr.bf16.gmra.mrb[0].mxu0 %v587
      %v767 = vpop.f32.mrb[0].mxu0
      %v768 = vadd.f32 0.0, %v767
      %v769 = vpop.f32.mrb[0].mxu0
      %v770 = vpop.f32.mrb[0].mxu0
      %v771 = vadd.f32 0.0, %v770
      %v772 = vpop.f32.mrb[0].mxu0
      %773 = vmatprep.mubr.bf16.mxu0 0
      %774 = vmatmul.mubr.bf16.gmra.mrb[0].mxu0 %v599
      %v775 = vpop.f32.mrb[0].mxu0
      %v776 = vadd.f32 0.0, %v775
      %v777 = vpop.f32.mrb[0].mxu0
      %v778 = vpop.f32.mrb[0].mxu0
      %v779 = vadd.f32 0.0, %v778
      %v780 = vpop.f32.mrb[0].mxu0
      %781 = vmatprep.mubr.bf16.mxu0 0
      %782 = vmatmul.mubr.bf16.gmra.mrb[0].mxu0 %v611
      %v783 = vpop.f32.mrb[0].mxu0
      %v784 = vadd.f32 0.0, %v783
      %v785 = vpop.f32.mrb[0].mxu0
      %v786 = vpop.f32.mrb[0].mxu0
      %v787 = vadd.f32 0.0, %v786
      %v788 = vpop.f32.mrb[0].mxu0
      %789 = vmatprep.mubr.bf16.mxu0 0
      %790 = vmatmul.mubr.bf16.gmra.mrb[0].mxu0 %v623
      %v791 = vpop.f32.mrb[0].mxu0
      %v792 = vadd.f32 0.0, %v791
      %v793 = vpop.f32.mrb[0].mxu0
      %v794 = vpop.f32.mrb[0].mxu0
      %v795 = vadd.f32 0.0, %v794
      %v796 = vpop.f32.mrb[0].mxu0
      %797 = vmatprep.mubr.bf16.mxu0 0
      %798 = vmatmul.mubr.bf16.gmra.mrb[0].mxu0 %v635
      %v799 = vpop.f32.mrb[0].mxu0
      %v800 = vadd.f32 0.0, %v799
      %v801 = vpop.f32.mrb[0].mxu0
      %v802 = vpop.f32.mrb[0].mxu0
      %v803 = vadd.f32 0.0, %v802
      %v804 = vpop.f32.mrb[0].mxu0
      %805 = vdwg.mxu0
      %v822 = vunpack.c.l.b16 %v523
      %v823 = vunpack.c.l.b16 %v524
      %v824 = vunpack.c.l.b16 %v525
      %v825 = vunpack.c.l.b16 %v526
      %v826 = vunpack.c.l.b16 %v527
      %v827 = vunpack.c.l.b16 %v528
      %v828 = vunpack.c.l.b16 %v529
      %v829 = vunpack.c.l.b16 %v530
      %v830 = vunpack.c.l.b16 %v531
      %v831 = vunpack.c.l.b16 %v532
      %v832 = vunpack.c.l.b16 %v533
      %v833 = vunpack.c.l.b16 %v534
      %v834 = vunpack.c.l.b16 %v535
      %v835 = vunpack.c.l.b16 %v536
      %v836 = vunpack.c.l.b16 %v537
      %v837 = vunpack.c.l.b16 %v538
      %v838 = vpack.c.b16 %v823, %v822
      %v839 = vpack.c.b16 %v825, %v824
      %v840 = vpack.c.b16 %v827, %v826
      %v841 = vpack.c.b16 %v829, %v828
      %v842 = vpack.c.b16 %v831, %v830
      %v843 = vpack.c.b16 %v833, %v832
      %v844 = vpack.c.b16 %v835, %v834
      %v845 = vpack.c.b16 %v837, %v836
      %854 = vmatprep.subr.bf16.mxu0 0
      %855 = vmatpush1.bf16.msra.mxu0 %v838
      %856 = vmatprep.subr.bf16.mxu0 0
      %857 = vmatpush1.bf16.msra.mxu0 %v839
      %858 = vmatprep.subr.bf16.mxu0 0
      %859 = vmatpush1.bf16.msra.mxu0 %v840
      %860 = vmatprep.subr.bf16.mxu0 0
      %861 = vmatpush1.bf16.msra.mxu0 %v841
      %862 = vmatprep.subr.bf16.mxu0 0
      %863 = vmatpush1.bf16.msra.mxu0 %v842
      %864 = vmatprep.subr.bf16.mxu0 0
      %865 = vmatpush1.bf16.msra.mxu0 %v843
      %866 = vmatprep.subr.bf16.mxu0 0
      %867 = vmatpush1.bf16.msra.mxu0 %v844
      %868 = vmatprep.subr.bf16.mxu0 0
      %869 = vmatpush1.bf16.msra.mxu0 %v845
      %870 = vmatprep.subr.bf16.mxu0 0
      %871 = vmatpush1.bf16.msra.mxu0 0
      %872 = vmatprep.subr.bf16.mxu0 0
      %873 = vmatpush1.bf16.msra.mxu0 0
      %874 = vmatprep.subr.bf16.mxu0 0
      %875 = vmatpush1.bf16.msra.mxu0 0
      %876 = vmatprep.subr.bf16.mxu0 0
      %877 = vmatpush1.bf16.msra.mxu0 0
      %878 = vmatprep.subr.bf16.mxu0 0
      %879 = vmatpush1.bf16.msra.mxu0 0
      %880 = vmatprep.subr.bf16.mxu0 0
      %881 = vmatpush1.bf16.msra.mxu0 0
      %882 = vmatprep.subr.bf16.mxu0 0
      %883 = vmatpush1.bf16.msra.mxu0 0
      %884 = vmatprep.subr.bf16.mxu0 0
      %885 = vmatpush1.bf16.msra.mxu0 0
      %886 = vmatprep.mubr.bf16.mxu0 0
      %887 = vmatmul.mubr.bf16.gmra.mrb[0].mxu0 %v503
      %v888 = vpop.f32.mrb[0].mxu0
      %v889 = vadd.f32 %v744, %v888
      %v890 = vpop.f32.mrb[0].mxu0
      %v891 = vpop.f32.mrb[0].mxu0
      %v892 = vadd.f32 %v747, %v891
      %v893 = vpop.f32.mrb[0].mxu0
      %894 = vmatprep.mubr.bf16.mxu0 0
      %895 = vmatmul.mubr.bf16.gmra.mrb[0].mxu0 %v505
      %v896 = vpop.f32.mrb[0].mxu0
      %v897 = vadd.f32 %v752, %v896
      %v898 = vpop.f32.mrb[0].mxu0
      %v899 = vpop.f32.mrb[0].mxu0
      %v900 = vadd.f32 %v755, %v899
      %v901 = vpop.f32.mrb[0].mxu0
      %902 = vmatprep.mubr.bf16.mxu0 0
      %903 = vmatmul.mubr.bf16.gmra.mrb[0].mxu0 %v507
      %v904 = vpop.f32.mrb[0].mxu0
      %v905 = vadd.f32 %v760, %v904
      %v906 = vpop.f32.mrb[0].mxu0
      %v907 = vpop.f32.mrb[0].mxu0
      %v908 = vadd.f32 %v763, %v907
      %v909 = vpop.f32.mrb[0].mxu0
      %910 = vmatprep.mubr.bf16.mxu0 0
      %911 = vmatmul.mubr.bf16.gmra.mrb[0].mxu0 %v509
      %v912 = vpop.f32.mrb[0].mxu0
      %v913 = vadd.f32 %v768, %v912
      %v914 = vpop.f32.mrb[0].mxu0
      %v915 = vpop.f32.mrb[0].mxu0
      %v916 = vadd.f32 %v771, %v915
      %v917 = vpop.f32.mrb[0].mxu0
      %918 = vmatprep.mubr.bf16.mxu0 0
      %919 = vmatmul.mubr.bf16.gmra.mrb[0].mxu0 %v511
      %v920 = vpop.f32.mrb[0].mxu0
      %v921 = vadd.f32 %v776, %v920
      %v922 = vpop.f32.mrb[0].mxu0
      %v923 = vpop.f32.mrb[0].mxu0
      %v924 = vadd.f32 %v779, %v923
      %v925 = vpop.f32.mrb[0].mxu0
      %926 = vmatprep.mubr.bf16.mxu0 0
      %927 = vmatmul.mubr.bf16.gmra.mrb[0].mxu0 %v513
      %v928 = vpop.f32.mrb[0].mxu0
      %v929 = vadd.f32 %v784, %v928
      %v930 = vpop.f32.mrb[0].mxu0
      %v931 = vpop.f32.mrb[0].mxu0
      %v932 = vadd.f32 %v787, %v931
      %v933 = vpop.f32.mrb[0].mxu0
      %934 = vmatprep.mubr.bf16.mxu0 0
      %935 = vmatmul.mubr.bf16.gmra.mrb[0].mxu0 %v515
      %v936 = vpop.f32.mrb[0].mxu0
      %v937 = vadd.f32 %v792, %v936
      %v938 = vpop.f32.mrb[0].mxu0
      %v939 = vpop.f32.mrb[0].mxu0
      %v940 = vadd.f32 %v795, %v939
      %v941 = vpop.f32.mrb[0].mxu0
      %942 = vmatprep.mubr.bf16.mxu0 0
      %943 = vmatmul.mubr.bf16.gmra.mrb[0].mxu0 %v517
      %v944 = vpop.f32.mrb[0].mxu0
      %v945 = vadd.f32 %v800, %v944
      %v946 = vpop.f32.mrb[0].mxu0
      %v947 = vpop.f32.mrb[0].mxu0
      %v948 = vadd.f32 %v803, %v947
      %v949 = vpop.f32.mrb[0].mxu0
      %950 = vdwg.mxu0
      %vm967 = vcmask 1046528
      %v968 = vrot.slane %v503, 1
      %v969 = vrot.slane %v504, 1
      %v970 = vsel %vm967, %v968, %v969
      %v971 = vrot.slane %v505, 1
      %v972 = vrot.slane %v506, 1
      %v973 = vsel %vm967, %v971, %v972
      %v974 = vrot.slane %v507, 1
      %v975 = vrot.slane %v508, 1
      %v976 = vsel %vm967, %v974, %v975
      %v977 = vrot.slane %v509, 1
      %v978 = vrot.slane %v510, 1
      %v979 = vsel %vm967, %v977, %v978
      %v980 = vrot.slane %v511, 1
      %v981 = vrot.slane %v512, 1
      %v982 = vsel %vm967, %v980, %v981
      %v983 = vrot.slane %v513, 1
      %v984 = vrot.slane %v514, 1
      %v985 = vsel %vm967, %v983, %v984
      %v986 = vrot.slane %v515, 1
      %v987 = vrot.slane %v516, 1
      %v988 = vsel %vm967, %v986, %v987
      %v989 = vrot.slane %v517, 1
      %v990 = vrot.slane %v518, 1
      %v991 = vsel %vm967, %v989, %v990
      %s1000 = scalar_lea.vmem %s1, 128
      %v1001 = vld [vmem:[%s1000] sm:$0xf]
      %v1002 = vld [vmem:[%s1000 + $0x4] sm:$0xf]
      %v1003 = vld [vmem:[%s1000 + $0x8] sm:$0xf]
      %v1004 = vld [vmem:[%s1000 + $0xc] sm:$0xf]
      %v1005 = vld [vmem:[%s1000 + $0x10] sm:$0xf]
      %v1006 = vld [vmem:[%s1000 + $0x14] sm:$0xf]
      %v1007 = vld [vmem:[%s1000 + $0x18] sm:$0xf]
      %v1008 = vld [vmem:[%s1000 + $0x1c] sm:$0xf]
      %v1009 = vld [vmem:[%s1000 + $0x20] sm:$0xf]
      %v1010 = vld [vmem:[%s1000 + $0x24] sm:$0xf]
      %v1011 = vld [vmem:[%s1000 + $0x28] sm:$0xf]
      %v1012 = vld [vmem:[%s1000 + $0x2c] sm:$0xf]
      %v1013 = vld [vmem:[%s1000 + $0x30] sm:$0xf]
      %v1014 = vld [vmem:[%s1000 + $0x34] sm:$0xf]
      %v1015 = vld [vmem:[%s1000 + $0x38] sm:$0xf]
      %v1016 = vld [vmem:[%s1000 + $0x3c] sm:$0xf]
      %v1033 = vunpack.c.l.b16 %v1001
      %v1034 = vunpack.c.l.b16 %v1002
      %v1035 = vunpack.c.l.b16 %v1003
      %v1036 = vunpack.c.l.b16 %v1004
      %v1037 = vunpack.c.l.b16 %v1005
      %v1038 = vunpack.c.l.b16 %v1006
      %v1039 = vunpack.c.l.b16 %v1007
      %v1040 = vunpack.c.l.b16 %v1008
      %v1041 = vunpack.c.l.b16 %v1009
      %v1042 = vunpack.c.l.b16 %v1010
      %v1043 = vunpack.c.l.b16 %v1011
      %v1044 = vunpack.c.l.b16 %v1012
      %v1045 = vunpack.c.l.b16 %v1013
      %v1046 = vunpack.c.l.b16 %v1014
      %v1047 = vunpack.c.l.b16 %v1015
      %v1048 = vunpack.c.l.b16 %v1016
      %v1049 = vpack.c.b16 %v1034, %v1033
      %v1050 = vpack.c.b16 %v1036, %v1035
      %v1051 = vpack.c.b16 %v1038, %v1037
      %v1052 = vpack.c.b16 %v1040, %v1039
      %v1053 = vpack.c.b16 %v1042, %v1041
      %v1054 = vpack.c.b16 %v1044, %v1043
      %v1055 = vpack.c.b16 %v1046, %v1045
      %v1056 = vpack.c.b16 %v1048, %v1047
      %1065 = vmatprep.subr.bf16.mxu0 0
      %1066 = vmatpush1.bf16.msra.mxu0 %v1049
      %1067 = vmatprep.subr.bf16.mxu0 0
      %1068 = vmatpush1.bf16.msra.mxu0 %v1050
      %1069 = vmatprep.subr.bf16.mxu0 0
      %1070 = vmatpush1.bf16.msra.mxu0 %v1051
      %1071 = vmatprep.subr.bf16.mxu0 0
      %1072 = vmatpush1.bf16.msra.mxu0 %v1052
      %1073 = vmatprep.subr.bf16.mxu0 0
      %1074 = vmatpush1.bf16.msra.mxu0 %v1053
      %1075 = vmatprep.subr.bf16.mxu0 0
      %1076 = vmatpush1.bf16.msra.mxu0 %v1054
      %1077 = vmatprep.subr.bf16.mxu0 0
      %1078 = vmatpush1.bf16.msra.mxu0 %v1055
      %1079 = vmatprep.subr.bf16.mxu0 0
      %1080 = vmatpush1.bf16.msra.mxu0 %v1056
      %1081 = vmatprep.subr.bf16.mxu0 0
      %1082 = vmatpush1.bf16.msra.mxu0 0
      %1083 = vmatprep.subr.bf16.mxu0 0
      %1084 = vmatpush1.bf16.msra.mxu0 0
      %1085 = vmatprep.subr.bf16.mxu0 0
      %1086 = vmatpush1.bf16.msra.mxu0 0
      %1087 = vmatprep.subr.bf16.mxu0 0
      %1088 = vmatpush1.bf16.msra.mxu0 0
      %1089 = vmatprep.subr.bf16.mxu0 0
      %1090 = vmatpush1.bf16.msra.mxu0 0
      %1091 = vmatprep.subr.bf16.mxu0 0
      %1092 = vmatpush1.bf16.msra.mxu0 0
      %1093 = vmatprep.subr.bf16.mxu0 0
      %1094 = vmatpush1.bf16.msra.mxu0 0
      %1095 = vmatprep.subr.bf16.mxu0 0
      %1096 = vmatpush1.bf16.msra.mxu0 0
      %1097 = vmatprep.mubr.bf16.mxu0 0
      %1098 = vmatmul.mubr.bf16.gmra.mrb[0].mxu0 %v970
      %v1099 = vpop.f32.mrb[0].mxu0
      %v1100 = vadd.f32 0.0, %v1099
      %v1101 = vpop.f32.mrb[0].mxu0
      %v1102 = vpop.f32.mrb[0].mxu0
      %v1103 = vadd.f32 0.0, %v1102
      %v1104 = vpop.f32.mrb[0].mxu0
      %1105 = vmatprep.mubr.bf16.mxu0 0
      %1106 = vmatmul.mubr.bf16.gmra.mrb[0].mxu0 %v973
      %v1107 = vpop.f32.mrb[0].mxu0
      %v1108 = vadd.f32 0.0, %v1107
      %v1109 = vpop.f32.mrb[0].mxu0
      %v1110 = vpop.f32.mrb[0].mxu0
      %v1111 = vadd.f32 0.0, %v1110
      %v1112 = vpop.f32.mrb[0].mxu0
      %1113 = vmatprep.mubr.bf16.mxu0 0
      %1114 = vmatmul.mubr.bf16.gmra.mrb[0].mxu0 %v976
      %v1115 = vpop.f32.mrb[0].mxu0
      %v1116 = vadd.f32 0.0, %v1115
      %v1117 = vpop.f32.mrb[0].mxu0
      %v1118 = vpop.f32.mrb[0].mxu0
      %v1119 = vadd.f32 0.0, %v1118
      %v1120 = vpop.f32.mrb[0].mxu0
      %1121 = vmatprep.mubr.bf16.mxu0 0
      %1122 = vmatmul.mubr.bf16.gmra.mrb[0].mxu0 %v979
      %v1123 = vpop.f32.mrb[0].mxu0
      %v1124 = vadd.f32 0.0, %v1123
      %v1125 = vpop.f32.mrb[0].mxu0
      %v1126 = vpop.f32.mrb[0].mxu0
      %v1127 = vadd.f32 0.0, %v1126
      %v1128 = vpop.f32.mrb[0].mxu0
      %1129 = vmatprep.mubr.bf16.mxu0 0
      %1130 = vmatmul.mubr.bf16.gmra.mrb[0].mxu0 %v982
      %v1131 = vpop.f32.mrb[0].mxu0
      %v1132 = vadd.f32 0.0, %v1131
      %v1133 = vpop.f32.mrb[0].mxu0
      %v1134 = vpop.f32.mrb[0].mxu0
      %v1135 = vadd.f32 0.0, %v1134
      %v1136 = vpop.f32.mrb[0].mxu0
      %1137 = vmatprep.mubr.bf16.mxu0 0
      %1138 = vmatmul.mubr.bf16.gmra.mrb[0].mxu0 %v985
      %v1139 = vpop.f32.mrb[0].mxu0
      %v1140 = vadd.f32 0.0, %v1139
      %v1141 = vpop.f32.mrb[0].mxu0
      %v1142 = vpop.f32.mrb[0].mxu0
      %v1143 = vadd.f32 0.0, %v1142
      %v1144 = vpop.f32.mrb[0].mxu0
      %1145 = vmatprep.mubr.bf16.mxu0 0
      %1146 = vmatmul.mubr.bf16.gmra.mrb[0].mxu0 %v988
      %v1147 = vpop.f32.mrb[0].mxu0
      %v1148 = vadd.f32 0.0, %v1147
      %v1149 = vpop.f32.mrb[0].mxu0
      %v1150 = vpop.f32.mrb[0].mxu0
      %v1151 = vadd.f32 0.0, %v1150
      %v1152 = vpop.f32.mrb[0].mxu0
      %1153 = vmatprep.mubr.bf16.mxu0 0
      %1154 = vmatmul.mubr.bf16.gmra.mrb[0].mxu0 %v991
      %v1155 = vpop.f32.mrb[0].mxu0
      %v1156 = vadd.f32 0.0, %v1155
      %v1157 = vpop.f32.mrb[0].mxu0
      %v1158 = vpop.f32.mrb[0].mxu0
      %v1159 = vadd.f32 0.0, %v1158
      %v1160 = vpop.f32.mrb[0].mxu0
      %1161 = vdwg.mxu0
      %v1162 = vadd.f32 %v889, %v1100
      %v1163 = vadd.f32 %v892, %v1103
      %v1164 = vadd.f32 %v897, %v1108
      %v1165 = vadd.f32 %v900, %v1111
      %v1166 = vadd.f32 %v905, %v1116
      %v1167 = vadd.f32 %v908, %v1119
      %v1168 = vadd.f32 %v913, %v1124
      %v1169 = vadd.f32 %v916, %v1127
      %v1170 = vadd.f32 %v921, %v1132
      %v1171 = vadd.f32 %v924, %v1135
      %v1172 = vadd.f32 %v929, %v1140
      %v1173 = vadd.f32 %v932, %v1143
      %v1174 = vadd.f32 %v937, %v1148
      %v1175 = vadd.f32 %v940, %v1151
      %v1176 = vadd.f32 %v945, %v1156
      %v1177 = vadd.f32 %v948, %v1159
      %s1178 = scalar_lea.vmem %s1, 192
      %v1179 = vld [vmem:[%s1178] sm:$0xf]
      %v1180 = vld [vmem:[%s1178 + $0x4] sm:$0xf]
      %v1181 = vld [vmem:[%s1178 + $0x8] sm:$0xf]
      %v1182 = vld [vmem:[%s1178 + $0xc] sm:$0xf]
      %v1183 = vld [vmem:[%s1178 + $0x10] sm:$0xf]
      %v1184 = vld [vmem:[%s1178 + $0x14] sm:$0xf]
      %v1185 = vld [vmem:[%s1178 + $0x18] sm:$0xf]
      %v1186 = vld [vmem:[%s1178 + $0x1c] sm:$0xf]
      %v1187 = vld [vmem:[%s1178 + $0x20] sm:$0xf]
      %v1188 = vld [vmem:[%s1178 + $0x24] sm:$0xf]
      %v1189 = vld [vmem:[%s1178 + $0x28] sm:$0xf]
      %v1190 = vld [vmem:[%s1178 + $0x2c] sm:$0xf]
      %v1191 = vld [vmem:[%s1178 + $0x30] sm:$0xf]
      %v1192 = vld [vmem:[%s1178 + $0x34] sm:$0xf]
      %v1193 = vld [vmem:[%s1178 + $0x38] sm:$0xf]
      %v1194 = vld [vmem:[%s1178 + $0x3c] sm:$0xf]
      %v1211 = vunpack.c.l.b16 %v1179
      %v1212 = vunpack.c.l.b16 %v1180
      %v1213 = vunpack.c.l.b16 %v1181
      %v1214 = vunpack.c.l.b16 %v1182
      %v1215 = vunpack.c.l.b16 %v1183
      %v1216 = vunpack.c.l.b16 %v1184
      %v1217 = vunpack.c.l.b16 %v1185
      %v1218 = vunpack.c.l.b16 %v1186
      %v1219 = vunpack.c.l.b16 %v1187
      %v1220 = vunpack.c.l.b16 %v1188
      %v1221 = vunpack.c.l.b16 %v1189
      %v1222 = vunpack.c.l.b16 %v1190
      %v1223 = vunpack.c.l.b16 %v1191
      %v1224 = vunpack.c.l.b16 %v1192
      %v1225 = vunpack.c.l.b16 %v1193
      %v1226 = vunpack.c.l.b16 %v1194
      %v1227 = vpack.c.b16 %v1212, %v1211
      %v1228 = vpack.c.b16 %v1214, %v1213
      %v1229 = vpack.c.b16 %v1216, %v1215
      %v1230 = vpack.c.b16 %v1218, %v1217
      %v1231 = vpack.c.b16 %v1220, %v1219
      %v1232 = vpack.c.b16 %v1222, %v1221
      %v1233 = vpack.c.b16 %v1224, %v1223
      %v1234 = vpack.c.b16 %v1226, %v1225
      %1243 = vmatprep.subr.bf16.mxu0 0
      %1244 = vmatpush1.bf16.msra.mxu0 %v1227
      %1245 = vmatprep.subr.bf16.mxu0 0
      %1246 = vmatpush1.bf16.msra.mxu0 %v1228
      %1247 = vmatprep.subr.bf16.mxu0 0
      %1248 = vmatpush1.bf16.msra.mxu0 %v1229
      %1249 = vmatprep.subr.bf16.mxu0 0
      %1250 = vmatpush1.bf16.msra.mxu0 %v1230
      %1251 = vmatprep.subr.bf16.mxu0 0
      %1252 = vmatpush1.bf16.msra.mxu0 %v1231
      %1253 = vmatprep.subr.bf16.mxu0 0
      %1254 = vmatpush1.bf16.msra.mxu0 %v1232
      %1255 = vmatprep.subr.bf16.mxu0 0
      %1256 = vmatpush1.bf16.msra.mxu0 %v1233
      %1257 = vmatprep.subr.bf16.mxu0 0
      %1258 = vmatpush1.bf16.msra.mxu0 %v1234
      %1259 = vmatprep.subr.bf16.mxu0 0
      %1260 = vmatpush1.bf16.msra.mxu0 0
      %1261 = vmatprep.subr.bf16.mxu0 0
      %1262 = vmatpush1.bf16.msra.mxu0 0
      %1263 = vmatprep.subr.bf16.mxu0 0
      %1264 = vmatpush1.bf16.msra.mxu0 0
      %1265 = vmatprep.subr.bf16.mxu0 0
      %1266 = vmatpush1.bf16.msra.mxu0 0
      %1267 = vmatprep.subr.bf16.mxu0 0
      %1268 = vmatpush1.bf16.msra.mxu0 0
      %1269 = vmatprep.subr.bf16.mxu0 0
      %1270 = vmatpush1.bf16.msra.mxu0 0
      %1271 = vmatprep.subr.bf16.mxu0 0
      %1272 = vmatpush1.bf16.msra.mxu0 0
      %1273 = vmatprep.subr.bf16.mxu0 0
      %1274 = vmatpush1.bf16.msra.mxu0 0
      %1275 = vmatprep.mubr.bf16.mxu0 0
      %1276 = vmatmul.mubr.bf16.gmra.mrb[0].mxu0 %v505
      %v1277 = vpop.f32.mrb[0].mxu0
      %v1278 = vadd.f32 0.0, %v1277
      %v1279 = vpop.f32.mrb[0].mxu0
      %v1280 = vpop.f32.mrb[0].mxu0
      %v1281 = vadd.f32 0.0, %v1280
      %v1282 = vpop.f32.mrb[0].mxu0
      %1283 = vmatprep.mubr.bf16.mxu0 0
      %1284 = vmatmul.mubr.bf16.gmra.mrb[0].mxu0 %v507
      %v1285 = vpop.f32.mrb[0].mxu0
      %v1286 = vadd.f32 0.0, %v1285
      %v1287 = vpop.f32.mrb[0].mxu0
      %v1288 = vpop.f32.mrb[0].mxu0
      %v1289 = vadd.f32 0.0, %v1288
      %v1290 = vpop.f32.mrb[0].mxu0
      %1291 = vmatprep.mubr.bf16.mxu0 0
      %1292 = vmatmul.mubr.bf16.gmra.mrb[0].mxu0 %v509
      %v1293 = vpop.f32.mrb[0].mxu0
      %v1294 = vadd.f32 0.0, %v1293
      %v1295 = vpop.f32.mrb[0].mxu0
      %v1296 = vpop.f32.mrb[0].mxu0
      %v1297 = vadd.f32 0.0, %v1296
      %v1298 = vpop.f32.mrb[0].mxu0
      %1299 = vmatprep.mubr.bf16.mxu0 0
      %1300 = vmatmul.mubr.bf16.gmra.mrb[0].mxu0 %v511
      %v1301 = vpop.f32.mrb[0].mxu0
      %v1302 = vadd.f32 0.0, %v1301
      %v1303 = vpop.f32.mrb[0].mxu0
      %v1304 = vpop.f32.mrb[0].mxu0
      %v1305 = vadd.f32 0.0, %v1304
      %v1306 = vpop.f32.mrb[0].mxu0
      %1307 = vmatprep.mubr.bf16.mxu0 0
      %1308 = vmatmul.mubr.bf16.gmra.mrb[0].mxu0 %v513
      %v1309 = vpop.f32.mrb[0].mxu0
      %v1310 = vadd.f32 0.0, %v1309
      %v1311 = vpop.f32.mrb[0].mxu0
      %v1312 = vpop.f32.mrb[0].mxu0
      %v1313 = vadd.f32 0.0, %v1312
      %v1314 = vpop.f32.mrb[0].mxu0
      %1315 = vmatprep.mubr.bf16.mxu0 0
      %1316 = vmatmul.mubr.bf16.gmra.mrb[0].mxu0 %v515
      %v1317 = vpop.f32.mrb[0].mxu0
      %v1318 = vadd.f32 0.0, %v1317
      %v1319 = vpop.f32.mrb[0].mxu0
      %v1320 = vpop.f32.mrb[0].mxu0
      %v1321 = vadd.f32 0.0, %v1320
      %v1322 = vpop.f32.mrb[0].mxu0
      %1323 = vmatprep.mubr.bf16.mxu0 0
      %1324 = vmatmul.mubr.bf16.gmra.mrb[0].mxu0 %v517
      %v1325 = vpop.f32.mrb[0].mxu0
      %v1326 = vadd.f32 0.0, %v1325
      %v1327 = vpop.f32.mrb[0].mxu0
      %v1328 = vpop.f32.mrb[0].mxu0
      %v1329 = vadd.f32 0.0, %v1328
      %v1330 = vpop.f32.mrb[0].mxu0
      %1331 = vmatprep.mubr.bf16.mxu0 0
      %1332 = vmatmul.mubr.bf16.gmra.mrb[0].mxu0 %v519
      %v1333 = vpop.f32.mrb[0].mxu0
      %v1334 = vadd.f32 0.0, %v1333
      %v1335 = vpop.f32.mrb[0].mxu0
      %v1336 = vpop.f32.mrb[0].mxu0
      %v1337 = vadd.f32 0.0, %v1336
      %v1338 = vpop.f32.mrb[0].mxu0
      %1339 = vdwg.mxu0
      %v1340 = vadd.f32 %v1162, %v1278
      %v1341 = vadd.f32 %v1163, %v1281
      %v1342 = vadd.f32 %v1164, %v1286
      %v1343 = vadd.f32 %v1165, %v1289
      %v1344 = vadd.f32 %v1166, %v1294
      %v1345 = vadd.f32 %v1167, %v1297
      %v1346 = vadd.f32 %v1168, %v1302
      %v1347 = vadd.f32 %v1169, %v1305
      %v1348 = vadd.f32 %v1170, %v1310
      %v1349 = vadd.f32 %v1171, %v1313
      %v1350 = vadd.f32 %v1172, %v1318
      %v1351 = vadd.f32 %v1173, %v1321
      %v1352 = vadd.f32 %v1174, %v1326
      %v1353 = vadd.f32 %v1175, %v1329
      %v1354 = vadd.f32 %v1176, %v1334
      %v1355 = vadd.f32 %v1177, %v1337
      %v1357 = vshrl.u32 %v519, 16
      %v1359 = vshll.u32 %v519, 16
      %v1361 = vrot.slane %v1359, 1
      %v1362 = vor.u32 %v1357, %v1361
      %v1364 = vshll.u32 %v520, 16
      %v1366 = vrot.slane %v1364, 1
      %v1367 = vsel %vm539, %v1362, %v1366
      %s1369 = scalar_lea.vmem %s1, 256
      %v1370 = vld [vmem:[%s1369] sm:$0xf]
      %v1371 = vld [vmem:[%s1369 + $0x4] sm:$0xf]
      %v1372 = vld [vmem:[%s1369 + $0x8] sm:$0xf]
      %v1373 = vld [vmem:[%s1369 + $0xc] sm:$0xf]
      %v1374 = vld [vmem:[%s1369 + $0x10] sm:$0xf]
      %v1375 = vld [vmem:[%s1369 + $0x14] sm:$0xf]
      %v1376 = vld [vmem:[%s1369 + $0x18] sm:$0xf]
      %v1377 = vld [vmem:[%s1369 + $0x1c] sm:$0xf]
      %v1378 = vld [vmem:[%s1369 + $0x20] sm:$0xf]
      %v1379 = vld [vmem:[%s1369 + $0x24] sm:$0xf]
      %v1380 = vld [vmem:[%s1369 + $0x28] sm:$0xf]
      %v1381 = vld [vmem:[%s1369 + $0x2c] sm:$0xf]
      %v1382 = vld [vmem:[%s1369 + $0x30] sm:$0xf]
      %v1383 = vld [vmem:[%s1369 + $0x34] sm:$0xf]
      %v1384 = vld [vmem:[%s1369 + $0x38] sm:$0xf]
      %v1385 = vld [vmem:[%s1369 + $0x3c] sm:$0xf]
      %v1402 = vunpack.c.l.b16 %v1370
      %v1403 = vunpack.c.l.b16 %v1371
      %v1404 = vunpack.c.l.b16 %v1372
      %v1405 = vunpack.c.l.b16 %v1373
      %v1406 = vunpack.c.l.b16 %v1374
      %v1407 = vunpack.c.l.b16 %v1375
      %v1408 = vunpack.c.l.b16 %v1376
      %v1409 = vunpack.c.l.b16 %v1377
      %v1410 = vunpack.c.l.b16 %v1378
      %v1411 = vunpack.c.l.b16 %v1379
      %v1412 = vunpack.c.l.b16 %v1380
      %v1413 = vunpack.c.l.b16 %v1381
      %v1414 = vunpack.c.l.b16 %v1382
      %v1415 = vunpack.c.l.b16 %v1383
      %v1416 = vunpack.c.l.b16 %v1384
      %v1417 = vunpack.c.l.b16 %v1385
      %v1418 = vpack.c.b16 %v1403, %v1402
      %v1419 = vpack.c.b16 %v1405, %v1404
      %v1420 = vpack.c.b16 %v1407, %v1406
      %v1421 = vpack.c.b16 %v1409, %v1408
      %v1422 = vpack.c.b16 %v1411, %v1410
      %v1423 = vpack.c.b16 %v1413, %v1412
      %v1424 = vpack.c.b16 %v1415, %v1414
      %v1425 = vpack.c.b16 %v1417, %v1416
      %1434 = vmatprep.subr.bf16.mxu0 0
      %1435 = vmatpush1.bf16.msra.mxu0 %v1418
      %1436 = vmatprep.subr.bf16.mxu0 0
      %1437 = vmatpush1.bf16.msra.mxu0 %v1419
      %1438 = vmatprep.subr.bf16.mxu0 0
      %1439 = vmatpush1.bf16.msra.mxu0 %v1420
      %1440 = vmatprep.subr.bf16.mxu0 0
      %1441 = vmatpush1.bf16.msra.mxu0 %v1421
      %1442 = vmatprep.subr.bf16.mxu0 0
      %1443 = vmatpush1.bf16.msra.mxu0 %v1422
      %1444 = vmatprep.subr.bf16.mxu0 0
      %1445 = vmatpush1.bf16.msra.mxu0 %v1423
      %1446 = vmatprep.subr.bf16.mxu0 0
      %1447 = vmatpush1.bf16.msra.mxu0 %v1424
      %1448 = vmatprep.subr.bf16.mxu0 0
      %1449 = vmatpush1.bf16.msra.mxu0 %v1425
      %1450 = vmatprep.subr.bf16.mxu0 0
      %1451 = vmatpush1.bf16.msra.mxu0 0
      %1452 = vmatprep.subr.bf16.mxu0 0
      %1453 = vmatpush1.bf16.msra.mxu0 0
      %1454 = vmatprep.subr.bf16.mxu0 0
      %1455 = vmatpush1.bf16.msra.mxu0 0
      %1456 = vmatprep.subr.bf16.mxu0 0
      %1457 = vmatpush1.bf16.msra.mxu0 0
      %1458 = vmatprep.subr.bf16.mxu0 0
      %1459 = vmatpush1.bf16.msra.mxu0 0
      %1460 = vmatprep.subr.bf16.mxu0 0
      %1461 = vmatpush1.bf16.msra.mxu0 0
      %1462 = vmatprep.subr.bf16.mxu0 0
      %1463 = vmatpush1.bf16.msra.mxu0 0
      %1464 = vmatprep.subr.bf16.mxu0 0
      %1465 = vmatpush1.bf16.msra.mxu0 0
      %1466 = vmatprep.mubr.bf16.mxu0 0
      %1467 = vmatmul.mubr.bf16.gmra.mrb[0].mxu0 %v563
      %v1468 = vpop.f32.mrb[0].mxu0
      %v1469 = vadd.f32 0.0, %v1468
      %v1470 = vpop.f32.mrb[0].mxu0
      %v1471 = vpop.f32.mrb[0].mxu0
      %v1472 = vadd.f32 0.0, %v1471
      %v1473 = vpop.f32.mrb[0].mxu0
      %1474 = vmatprep.mubr.bf16.mxu0 0
      %1475 = vmatmul.mubr.bf16.gmra.mrb[0].mxu0 %v575
      %v1476 = vpop.f32.mrb[0].mxu0
      %v1477 = vadd.f32 0.0, %v1476
      %v1478 = vpop.f32.mrb[0].mxu0
      %v1479 = vpop.f32.mrb[0].mxu0
      %v1480 = vadd.f32 0.0, %v1479
      %v1481 = vpop.f32.mrb[0].mxu0
      %1482 = vmatprep.mubr.bf16.mxu0 0
      %1483 = vmatmul.mubr.bf16.gmra.mrb[0].mxu0 %v587
      %v1484 = vpop.f32.mrb[0].mxu0
      %v1485 = vadd.f32 0.0, %v1484
      %v1486 = vpop.f32.mrb[0].mxu0
      %v1487 = vpop.f32.mrb[0].mxu0
      %v1488 = vadd.f32 0.0, %v1487
      %v1489 = vpop.f32.mrb[0].mxu0
      %1490 = vmatprep.mubr.bf16.mxu0 0
      %1491 = vmatmul.mubr.bf16.gmra.mrb[0].mxu0 %v599
      %v1492 = vpop.f32.mrb[0].mxu0
      %v1493 = vadd.f32 0.0, %v1492
      %v1494 = vpop.f32.mrb[0].mxu0
      %v1495 = vpop.f32.mrb[0].mxu0
      %v1496 = vadd.f32 0.0, %v1495
      %v1497 = vpop.f32.mrb[0].mxu0
      %1498 = vmatprep.mubr.bf16.mxu0 0
      %1499 = vmatmul.mubr.bf16.gmra.mrb[0].mxu0 %v611
      %v1500 = vpop.f32.mrb[0].mxu0
      %v1501 = vadd.f32 0.0, %v1500
      %v1502 = vpop.f32.mrb[0].mxu0
      %v1503 = vpop.f32.mrb[0].mxu0
      %v1504 = vadd.f32 0.0, %v1503
      %v1505 = vpop.f32.mrb[0].mxu0
      %1506 = vmatprep.mubr.bf16.mxu0 0
      %1507 = vmatmul.mubr.bf16.gmra.mrb[0].mxu0 %v623
      %v1508 = vpop.f32.mrb[0].mxu0
      %v1509 = vadd.f32 0.0, %v1508
      %v1510 = vpop.f32.mrb[0].mxu0
      %v1511 = vpop.f32.mrb[0].mxu0
      %v1512 = vadd.f32 0.0, %v1511
      %v1513 = vpop.f32.mrb[0].mxu0
      %1514 = vmatprep.mubr.bf16.mxu0 0
      %1515 = vmatmul.mubr.bf16.gmra.mrb[0].mxu0 %v635
      %v1516 = vpop.f32.mrb[0].mxu0
      %v1517 = vadd.f32 0.0, %v1516
      %v1518 = vpop.f32.mrb[0].mxu0
      %v1519 = vpop.f32.mrb[0].mxu0
      %v1520 = vadd.f32 0.0, %v1519
      %v1521 = vpop.f32.mrb[0].mxu0
      %1522 = vmatprep.mubr.bf16.mxu0 0
      %1523 = vmatmul.mubr.bf16.gmra.mrb[0].mxu0 %v1367
      %v1524 = vpop.f32.mrb[0].mxu0
      %v1525 = vadd.f32 0.0, %v1524
      %v1526 = vpop.f32.mrb[0].mxu0
      %v1527 = vpop.f32.mrb[0].mxu0
      %v1528 = vadd.f32 0.0, %v1527
      %v1529 = vpop.f32.mrb[0].mxu0
      %1530 = vdwg.mxu0
      %v1531 = vadd.f32 %v1340, %v1469
      %v1532 = vadd.f32 %v1341, %v1472
      %v1533 = vadd.f32 %v1342, %v1477
      %v1534 = vadd.f32 %v1343, %v1480
      %v1535 = vadd.f32 %v1344, %v1485
      %v1536 = vadd.f32 %v1345, %v1488
      %v1537 = vadd.f32 %v1346, %v1493
      %v1538 = vadd.f32 %v1347, %v1496
      %v1539 = vadd.f32 %v1348, %v1501
      %v1540 = vadd.f32 %v1349, %v1504
      %v1541 = vadd.f32 %v1350, %v1509
      %v1542 = vadd.f32 %v1351, %v1512
      %v1543 = vadd.f32 %v1352, %v1517
      %v1544 = vadd.f32 %v1353, %v1520
      %v1545 = vadd.f32 %v1354, %v1525
      %v1546 = vadd.f32 %v1355, %v1528
      %v1549 = vrot.slane %v519, 1
      %v1550 = vrot.slane %v520, 1
      %v1551 = vsel %vm967, %v1549, %v1550
      %s1553 = scalar_lea.vmem %s1, 320
      %v1554 = vld [vmem:[%s1553] sm:$0xf]
      %v1555 = vld [vmem:[%s1553 + $0x4] sm:$0xf]
      %v1556 = vld [vmem:[%s1553 + $0x8] sm:$0xf]
      %v1557 = vld [vmem:[%s1553 + $0xc] sm:$0xf]
      %v1558 = vld [vmem:[%s1553 + $0x10] sm:$0xf]
      %v1559 = vld [vmem:[%s1553 + $0x14] sm:$0xf]
      %v1560 = vld [vmem:[%s1553 + $0x18] sm:$0xf]
      %v1561 = vld [vmem:[%s1553 + $0x1c] sm:$0xf]
      %v1562 = vld [vmem:[%s1553 + $0x20] sm:$0xf]
      %v1563 = vld [vmem:[%s1553 + $0x24] sm:$0xf]
      %v1564 = vld [vmem:[%s1553 + $0x28] sm:$0xf]
      %v1565 = vld [vmem:[%s1553 + $0x2c] sm:$0xf]
      %v1566 = vld [vmem:[%s1553 + $0x30] sm:$0xf]
      %v1567 = vld [vmem:[%s1553 + $0x34] sm:$0xf]
      %v1568 = vld [vmem:[%s1553 + $0x38] sm:$0xf]
      %v1569 = vld [vmem:[%s1553 + $0x3c] sm:$0xf]
      %v1586 = vunpack.c.l.b16 %v1554
      %v1587 = vunpack.c.l.b16 %v1555
      %v1588 = vunpack.c.l.b16 %v1556
      %v1589 = vunpack.c.l.b16 %v1557
      %v1590 = vunpack.c.l.b16 %v1558
      %v1591 = vunpack.c.l.b16 %v1559
      %v1592 = vunpack.c.l.b16 %v1560
      %v1593 = vunpack.c.l.b16 %v1561
      %v1594 = vunpack.c.l.b16 %v1562
      %v1595 = vunpack.c.l.b16 %v1563
      %v1596 = vunpack.c.l.b16 %v1564
      %v1597 = vunpack.c.l.b16 %v1565
      %v1598 = vunpack.c.l.b16 %v1566
      %v1599 = vunpack.c.l.b16 %v1567
      %v1600 = vunpack.c.l.b16 %v1568
      %v1601 = vunpack.c.l.b16 %v1569
      %v1602 = vpack.c.b16 %v1587, %v1586
      %v1603 = vpack.c.b16 %v1589, %v1588
      %v1604 = vpack.c.b16 %v1591, %v1590
      %v1605 = vpack.c.b16 %v1593, %v1592
      %v1606 = vpack.c.b16 %v1595, %v1594
      %v1607 = vpack.c.b16 %v1597, %v1596
      %v1608 = vpack.c.b16 %v1599, %v1598
      %v1609 = vpack.c.b16 %v1601, %v1600
      %1618 = vmatprep.subr.bf16.mxu0 0
      %1619 = vmatpush1.bf16.msra.mxu0 %v1602
      %1620 = vmatprep.subr.bf16.mxu0 0
      %1621 = vmatpush1.bf16.msra.mxu0 %v1603
      %1622 = vmatprep.subr.bf16.mxu0 0
      %1623 = vmatpush1.bf16.msra.mxu0 %v1604
      %1624 = vmatprep.subr.bf16.mxu0 0
      %1625 = vmatpush1.bf16.msra.mxu0 %v1605
      %1626 = vmatprep.subr.bf16.mxu0 0
      %1627 = vmatpush1.bf16.msra.mxu0 %v1606
      %1628 = vmatprep.subr.bf16.mxu0 0
      %1629 = vmatpush1.bf16.msra.mxu0 %v1607
      %1630 = vmatprep.subr.bf16.mxu0 0
      %1631 = vmatpush1.bf16.msra.mxu0 %v1608
      %1632 = vmatprep.subr.bf16.mxu0 0
      %1633 = vmatpush1.bf16.msra.mxu0 %v1609
      %1634 = vmatprep.subr.bf16.mxu0 0
      %1635 = vmatpush1.bf16.msra.mxu0 0
      %1636 = vmatprep.subr.bf16.mxu0 0
      %1637 = vmatpush1.bf16.msra.mxu0 0
      %1638 = vmatprep.subr.bf16.mxu0 0
      %1639 = vmatpush1.bf16.msra.mxu0 0
      %1640 = vmatprep.subr.bf16.mxu0 0
      %1641 = vmatpush1.bf16.msra.mxu0 0
      %1642 = vmatprep.subr.bf16.mxu0 0
      %1643 = vmatpush1.bf16.msra.mxu0 0
      %1644 = vmatprep.subr.bf16.mxu0 0
      %1645 = vmatpush1.bf16.msra.mxu0 0
      %1646 = vmatprep.subr.bf16.mxu0 0
      %1647 = vmatpush1.bf16.msra.mxu0 0
      %1648 = vmatprep.subr.bf16.mxu0 0
      %1649 = vmatpush1.bf16.msra.mxu0 0
      %1650 = vmatprep.mubr.bf16.mxu0 0
      %1651 = vmatmul.mubr.bf16.gmra.mrb[0].mxu0 %v973
      %v1652 = vpop.f32.mrb[0].mxu0
      %v1653 = vadd.f32 0.0, %v1652
      %v1654 = vpop.f32.mrb[0].mxu0
      %v1655 = vpop.f32.mrb[0].mxu0
      %v1656 = vadd.f32 0.0, %v1655
      %v1657 = vpop.f32.mrb[0].mxu0
      %1658 = vmatprep.mubr.bf16.mxu0 0
      %1659 = vmatmul.mubr.bf16.gmra.mrb[0].mxu0 %v976
      %v1660 = vpop.f32.mrb[0].mxu0
      %v1661 = vadd.f32 0.0, %v1660
      %v1662 = vpop.f32.mrb[0].mxu0
      %v1663 = vpop.f32.mrb[0].mxu0
      %v1664 = vadd.f32 0.0, %v1663
      %v1665 = vpop.f32.mrb[0].mxu0
      %1666 = vmatprep.mubr.bf16.mxu0 0
      %1667 = vmatmul.mubr.bf16.gmra.mrb[0].mxu0 %v979
      %v1668 = vpop.f32.mrb[0].mxu0
      %v1669 = vadd.f32 0.0, %v1668
      %v1670 = vpop.f32.mrb[0].mxu0
      %v1671 = vpop.f32.mrb[0].mxu0
      %v1672 = vadd.f32 0.0, %v1671
      %v1673 = vpop.f32.mrb[0].mxu0
      %1674 = vmatprep.mubr.bf16.mxu0 0
      %1675 = vmatmul.mubr.bf16.gmra.mrb[0].mxu0 %v982
      %v1676 = vpop.f32.mrb[0].mxu0
      %v1677 = vadd.f32 0.0, %v1676
      %v1678 = vpop.f32.mrb[0].mxu0
      %v1679 = vpop.f32.mrb[0].mxu0
      %v1680 = vadd.f32 0.0, %v1679
      %v1681 = vpop.f32.mrb[0].mxu0
      %1682 = vmatprep.mubr.bf16.mxu0 0
      %1683 = vmatmul.mubr.bf16.gmra.mrb[0].mxu0 %v985
      %v1684 = vpop.f32.mrb[0].mxu0
      %v1685 = vadd.f32 0.0, %v1684
      %v1686 = vpop.f32.mrb[0].mxu0
      %v1687 = vpop.f32.mrb[0].mxu0
      %v1688 = vadd.f32 0.0, %v1687
      %v1689 = vpop.f32.mrb[0].mxu0
      %1690 = vmatprep.mubr.bf16.mxu0 0
      %1691 = vmatmul.mubr.bf16.gmra.mrb[0].mxu0 %v988
      %v1692 = vpop.f32.mrb[0].mxu0
      %v1693 = vadd.f32 0.0, %v1692
      %v1694 = vpop.f32.mrb[0].mxu0
      %v1695 = vpop.f32.mrb[0].mxu0
      %v1696 = vadd.f32 0.0, %v1695
      %v1697 = vpop.f32.mrb[0].mxu0
      %1698 = vmatprep.mubr.bf16.mxu0 0
      %1699 = vmatmul.mubr.bf16.gmra.mrb[0].mxu0 %v991
      %v1700 = vpop.f32.mrb[0].mxu0
      %v1701 = vadd.f32 0.0, %v1700
      %v1702 = vpop.f32.mrb[0].mxu0
      %v1703 = vpop.f32.mrb[0].mxu0
      %v1704 = vadd.f32 0.0, %v1703
      %v1705 = vpop.f32.mrb[0].mxu0
      %1706 = vmatprep.mubr.bf16.mxu0 0
      %1707 = vmatmul.mubr.bf16.gmra.mrb[0].mxu0 %v1551
      %v1708 = vpop.f32.mrb[0].mxu0
      %v1709 = vadd.f32 0.0, %v1708
      %v1710 = vpop.f32.mrb[0].mxu0
      %v1711 = vpop.f32.mrb[0].mxu0
      %v1712 = vadd.f32 0.0, %v1711
      %v1713 = vpop.f32.mrb[0].mxu0
      %1714 = vdwg.mxu0
      %v1715 = vadd.f32 %v1531, %v1653
      %v1716 = vadd.f32 %v1532, %v1656
      %v1717 = vadd.f32 %v1533, %v1661
      %v1718 = vadd.f32 %v1534, %v1664
      %v1719 = vadd.f32 %v1535, %v1669
      %v1720 = vadd.f32 %v1536, %v1672
      %v1721 = vadd.f32 %v1537, %v1677
      %v1722 = vadd.f32 %v1538, %v1680
      %v1723 = vadd.f32 %v1539, %v1685
      %v1724 = vadd.f32 %v1540, %v1688
      %v1725 = vadd.f32 %v1541, %v1693
      %v1726 = vadd.f32 %v1542, %v1696
      %v1727 = vadd.f32 %v1543, %v1701
      %v1728 = vadd.f32 %v1544, %v1704
      %v1729 = vadd.f32 %v1545, %v1709
      %v1730 = vadd.f32 %v1546, %v1712
      %s1731 = scalar_lea.vmem %s1, 384
      %v1732 = vld [vmem:[%s1731] sm:$0xf]
      %v1733 = vld [vmem:[%s1731 + $0x4] sm:$0xf]
      %v1734 = vld [vmem:[%s1731 + $0x8] sm:$0xf]
      %v1735 = vld [vmem:[%s1731 + $0xc] sm:$0xf]
      %v1736 = vld [vmem:[%s1731 + $0x10] sm:$0xf]
      %v1737 = vld [vmem:[%s1731 + $0x14] sm:$0xf]
      %v1738 = vld [vmem:[%s1731 + $0x18] sm:$0xf]
      %v1739 = vld [vmem:[%s1731 + $0x1c] sm:$0xf]
      %v1740 = vld [vmem:[%s1731 + $0x20] sm:$0xf]
      %v1741 = vld [vmem:[%s1731 + $0x24] sm:$0xf]
      %v1742 = vld [vmem:[%s1731 + $0x28] sm:$0xf]
      %v1743 = vld [vmem:[%s1731 + $0x2c] sm:$0xf]
      %v1744 = vld [vmem:[%s1731 + $0x30] sm:$0xf]
      %v1745 = vld [vmem:[%s1731 + $0x34] sm:$0xf]
      %v1746 = vld [vmem:[%s1731 + $0x38] sm:$0xf]
      %v1747 = vld [vmem:[%s1731 + $0x3c] sm:$0xf]
      %v1764 = vunpack.c.l.b16 %v1732
      %v1765 = vunpack.c.l.b16 %v1733
      %v1766 = vunpack.c.l.b16 %v1734
      %v1767 = vunpack.c.l.b16 %v1735
      %v1768 = vunpack.c.l.b16 %v1736
      %v1769 = vunpack.c.l.b16 %v1737
      %v1770 = vunpack.c.l.b16 %v1738
      %v1771 = vunpack.c.l.b16 %v1739
      %v1772 = vunpack.c.l.b16 %v1740
      %v1773 = vunpack.c.l.b16 %v1741
      %v1774 = vunpack.c.l.b16 %v1742
      %v1775 = vunpack.c.l.b16 %v1743
      %v1776 = vunpack.c.l.b16 %v1744
      %v1777 = vunpack.c.l.b16 %v1745
      %v1778 = vunpack.c.l.b16 %v1746
      %v1779 = vunpack.c.l.b16 %v1747
      %v1780 = vpack.c.b16 %v1765, %v1764
      %v1781 = vpack.c.b16 %v1767, %v1766
      %v1782 = vpack.c.b16 %v1769, %v1768
      %v1783 = vpack.c.b16 %v1771, %v1770
      %v1784 = vpack.c.b16 %v1773, %v1772
      %v1785 = vpack.c.b16 %v1775, %v1774
      %v1786 = vpack.c.b16 %v1777, %v1776
      %v1787 = vpack.c.b16 %v1779, %v1778
      %1796 = vmatprep.subr.bf16.mxu0 0
      %1797 = vmatpush1.bf16.msra.mxu0 %v1780
      %1798 = vmatprep.subr.bf16.mxu0 0
      %1799 = vmatpush1.bf16.msra.mxu0 %v1781
      %1800 = vmatprep.subr.bf16.mxu0 0
      %1801 = vmatpush1.bf16.msra.mxu0 %v1782
      %1802 = vmatprep.subr.bf16.mxu0 0
      %1803 = vmatpush1.bf16.msra.mxu0 %v1783
      %1804 = vmatprep.subr.bf16.mxu0 0
      %1805 = vmatpush1.bf16.msra.mxu0 %v1784
      %1806 = vmatprep.subr.bf16.mxu0 0
      %1807 = vmatpush1.bf16.msra.mxu0 %v1785
      %1808 = vmatprep.subr.bf16.mxu0 0
      %1809 = vmatpush1.bf16.msra.mxu0 %v1786
      %1810 = vmatprep.subr.bf16.mxu0 0
      %1811 = vmatpush1.bf16.msra.mxu0 %v1787
      %1812 = vmatprep.subr.bf16.mxu0 0
      %1813 = vmatpush1.bf16.msra.mxu0 0
      %1814 = vmatprep.subr.bf16.mxu0 0
      %1815 = vmatpush1.bf16.msra.mxu0 0
      %1816 = vmatprep.subr.bf16.mxu0 0
      %1817 = vmatpush1.bf16.msra.mxu0 0
      %1818 = vmatprep.subr.bf16.mxu0 0
      %1819 = vmatpush1.bf16.msra.mxu0 0
      %1820 = vmatprep.subr.bf16.mxu0 0
      %1821 = vmatpush1.bf16.msra.mxu0 0
      %1822 = vmatprep.subr.bf16.mxu0 0
      %1823 = vmatpush1.bf16.msra.mxu0 0
      %1824 = vmatprep.subr.bf16.mxu0 0
      %1825 = vmatpush1.bf16.msra.mxu0 0
      %1826 = vmatprep.subr.bf16.mxu0 0
      %1827 = vmatpush1.bf16.msra.mxu0 0
      %1828 = vmatprep.mubr.bf16.mxu0 0
      %1829 = vmatmul.mubr.bf16.gmra.mrb[0].mxu0 %v507
      %v1830 = vpop.f32.mrb[0].mxu0
      %v1831 = vadd.f32 0.0, %v1830
      %v1832 = vpop.f32.mrb[0].mxu0
      %v1833 = vpop.f32.mrb[0].mxu0
      %v1834 = vadd.f32 0.0, %v1833
      %v1835 = vpop.f32.mrb[0].mxu0
      %1836 = vmatprep.mubr.bf16.mxu0 0
      %1837 = vmatmul.mubr.bf16.gmra.mrb[0].mxu0 %v509
      %v1838 = vpop.f32.mrb[0].mxu0
      %v1839 = vadd.f32 0.0, %v1838
      %v1840 = vpop.f32.mrb[0].mxu0
      %v1841 = vpop.f32.mrb[0].mxu0
      %v1842 = vadd.f32 0.0, %v1841
      %v1843 = vpop.f32.mrb[0].mxu0
      %1844 = vmatprep.mubr.bf16.mxu0 0
      %1845 = vmatmul.mubr.bf16.gmra.mrb[0].mxu0 %v511
      %v1846 = vpop.f32.mrb[0].mxu0
      %v1847 = vadd.f32 0.0, %v1846
      %v1848 = vpop.f32.mrb[0].mxu0
      %v1849 = vpop.f32.mrb[0].mxu0
      %v1850 = vadd.f32 0.0, %v1849
      %v1851 = vpop.f32.mrb[0].mxu0
      %1852 = vmatprep.mubr.bf16.mxu0 0
      %1853 = vmatmul.mubr.bf16.gmra.mrb[0].mxu0 %v513
      %v1854 = vpop.f32.mrb[0].mxu0
      %v1855 = vadd.f32 0.0, %v1854
      %v1856 = vpop.f32.mrb[0].mxu0
      %v1857 = vpop.f32.mrb[0].mxu0
      %v1858 = vadd.f32 0.0, %v1857
      %v1859 = vpop.f32.mrb[0].mxu0
      %1860 = vmatprep.mubr.bf16.mxu0 0
      %1861 = vmatmul.mubr.bf16.gmra.mrb[0].mxu0 %v515
      %v1862 = vpop.f32.mrb[0].mxu0
      %v1863 = vadd.f32 0.0, %v1862
      %v1864 = vpop.f32.mrb[0].mxu0
      %v1865 = vpop.f32.mrb[0].mxu0
      %v1866 = vadd.f32 0.0, %v1865
      %v1867 = vpop.f32.mrb[0].mxu0
      %1868 = vmatprep.mubr.bf16.mxu0 0
      %1869 = vmatmul.mubr.bf16.gmra.mrb[0].mxu0 %v517
      %v1870 = vpop.f32.mrb[0].mxu0
      %v1871 = vadd.f32 0.0, %v1870
      %v1872 = vpop.f32.mrb[0].mxu0
      %v1873 = vpop.f32.mrb[0].mxu0
      %v1874 = vadd.f32 0.0, %v1873
      %v1875 = vpop.f32.mrb[0].mxu0
      %1876 = vmatprep.mubr.bf16.mxu0 0
      %1877 = vmatmul.mubr.bf16.gmra.mrb[0].mxu0 %v519
      %v1878 = vpop.f32.mrb[0].mxu0
      %v1879 = vadd.f32 0.0, %v1878
      %v1880 = vpop.f32.mrb[0].mxu0
      %v1881 = vpop.f32.mrb[0].mxu0
      %v1882 = vadd.f32 0.0, %v1881
      %v1883 = vpop.f32.mrb[0].mxu0
      %1884 = vmatprep.mubr.bf16.mxu0 0
      %1885 = vmatmul.mubr.bf16.gmra.mrb[0].mxu0 %v521
      %v1886 = vpop.f32.mrb[0].mxu0
      %v1887 = vadd.f32 0.0, %v1886
      %v1888 = vpop.f32.mrb[0].mxu0
      %v1889 = vpop.f32.mrb[0].mxu0
      %v1890 = vadd.f32 0.0, %v1889
      %v1891 = vpop.f32.mrb[0].mxu0
      %1892 = vdwg.mxu0
      %v1893 = vadd.f32 %v1715, %v1831
      %v1894 = vadd.f32 %v1716, %v1834
      %v1895 = vadd.f32 %v1717, %v1839
      %v1896 = vadd.f32 %v1718, %v1842
      %v1897 = vadd.f32 %v1719, %v1847
      %v1898 = vadd.f32 %v1720, %v1850
      %v1899 = vadd.f32 %v1721, %v1855
      %v1900 = vadd.f32 %v1722, %v1858
      %v1901 = vadd.f32 %v1723, %v1863
      %v1902 = vadd.f32 %v1724, %v1866
      %v1903 = vadd.f32 %v1725, %v1871
      %v1904 = vadd.f32 %v1726, %v1874
      %v1905 = vadd.f32 %v1727, %v1879
      %v1906 = vadd.f32 %v1728, %v1882
      %v1907 = vadd.f32 %v1729, %v1887
      %v1908 = vadd.f32 %v1730, %v1890
      %v1910 = vshrl.u32 %v521, 16
      %v1912 = vshll.u32 %v521, 16
      %v1914 = vrot.slane %v1912, 1
      %v1915 = vor.u32 %v1910, %v1914
      %v1917 = vshll.u32 %v522, 16
      %v1919 = vrot.slane %v1917, 1
      %v1920 = vsel %vm539, %v1915, %v1919
      %s1922 = scalar_lea.vmem %s1, 448
      %v1923 = vld [vmem:[%s1922] sm:$0xf]
      %v1924 = vld [vmem:[%s1922 + $0x4] sm:$0xf]
      %v1925 = vld [vmem:[%s1922 + $0x8] sm:$0xf]
      %v1926 = vld [vmem:[%s1922 + $0xc] sm:$0xf]
      %v1927 = vld [vmem:[%s1922 + $0x10] sm:$0xf]
      %v1928 = vld [vmem:[%s1922 + $0x14] sm:$0xf]
      %v1929 = vld [vmem:[%s1922 + $0x18] sm:$0xf]
      %v1930 = vld [vmem:[%s1922 + $0x1c] sm:$0xf]
      %v1931 = vld [vmem:[%s1922 + $0x20] sm:$0xf]
      %v1932 = vld [vmem:[%s1922 + $0x24] sm:$0xf]
      %v1933 = vld [vmem:[%s1922 + $0x28] sm:$0xf]
      %v1934 = vld [vmem:[%s1922 + $0x2c] sm:$0xf]
      %v1935 = vld [vmem:[%s1922 + $0x30] sm:$0xf]
      %v1936 = vld [vmem:[%s1922 + $0x34] sm:$0xf]
      %v1937 = vld [vmem:[%s1922 + $0x38] sm:$0xf]
      %v1938 = vld [vmem:[%s1922 + $0x3c] sm:$0xf]
      %v1955 = vunpack.c.l.b16 %v1923
      %v1956 = vunpack.c.l.b16 %v1924
      %v1957 = vunpack.c.l.b16 %v1925
      %v1958 = vunpack.c.l.b16 %v1926
      %v1959 = vunpack.c.l.b16 %v1927
      %v1960 = vunpack.c.l.b16 %v1928
      %v1961 = vunpack.c.l.b16 %v1929
      %v1962 = vunpack.c.l.b16 %v1930
      %v1963 = vunpack.c.l.b16 %v1931
      %v1964 = vunpack.c.l.b16 %v1932
      %v1965 = vunpack.c.l.b16 %v1933
      %v1966 = vunpack.c.l.b16 %v1934
      %v1967 = vunpack.c.l.b16 %v1935
      %v1968 = vunpack.c.l.b16 %v1936
      %v1969 = vunpack.c.l.b16 %v1937
      %v1970 = vunpack.c.l.b16 %v1938
      %v1971 = vpack.c.b16 %v1956, %v1955
      %v1972 = vpack.c.b16 %v1958, %v1957
      %v1973 = vpack.c.b16 %v1960, %v1959
      %v1974 = vpack.c.b16 %v1962, %v1961
      %v1975 = vpack.c.b16 %v1964, %v1963
      %v1976 = vpack.c.b16 %v1966, %v1965
      %v1977 = vpack.c.b16 %v1968, %v1967
      %v1978 = vpack.c.b16 %v1970, %v1969
      %1987 = vmatprep.subr.bf16.mxu0 0
      %1988 = vmatpush1.bf16.msra.mxu0 %v1971
      %1989 = vmatprep.subr.bf16.mxu0 0
      %1990 = vmatpush1.bf16.msra.mxu0 %v1972
      %1991 = vmatprep.subr.bf16.mxu0 0
      %1992 = vmatpush1.bf16.msra.mxu0 %v1973
      %1993 = vmatprep.subr.bf16.mxu0 0
      %1994 = vmatpush1.bf16.msra.mxu0 %v1974
      %1995 = vmatprep.subr.bf16.mxu0 0
      %1996 = vmatpush1.bf16.msra.mxu0 %v1975
      %1997 = vmatprep.subr.bf16.mxu0 0
      %1998 = vmatpush1.bf16.msra.mxu0 %v1976
      %1999 = vmatprep.subr.bf16.mxu0 0
      %2000 = vmatpush1.bf16.msra.mxu0 %v1977
      %2001 = vmatprep.subr.bf16.mxu0 0
      %2002 = vmatpush1.bf16.msra.mxu0 %v1978
      %2003 = vmatprep.subr.bf16.mxu0 0
      %2004 = vmatpush1.bf16.msra.mxu0 0
      %2005 = vmatprep.subr.bf16.mxu0 0
      %2006 = vmatpush1.bf16.msra.mxu0 0
      %2007 = vmatprep.subr.bf16.mxu0 0
      %2008 = vmatpush1.bf16.msra.mxu0 0
      %2009 = vmatprep.subr.bf16.mxu0 0
      %2010 = vmatpush1.bf16.msra.mxu0 0
      %2011 = vmatprep.subr.bf16.mxu0 0
      %2012 = vmatpush1.bf16.msra.mxu0 0
      %2013 = vmatprep.subr.bf16.mxu0 0
      %2014 = vmatpush1.bf16.msra.mxu0 0
      %2015 = vmatprep.subr.bf16.mxu0 0
      %2016 = vmatpush1.bf16.msra.mxu0 0
      %2017 = vmatprep.subr.bf16.mxu0 0
      %2018 = vmatpush1.bf16.msra.mxu0 0
      %2019 = vmatprep.mubr.bf16.mxu0 0
      %2020 = vmatmul.mubr.bf16.gmra.mrb[0].mxu0 %v575
      %v2021 = vpop.f32.mrb[0].mxu0
      %v2022 = vadd.f32 0.0, %v2021
      %v2023 = vpop.f32.mrb[0].mxu0
      %v2024 = vpop.f32.mrb[0].mxu0
      %v2025 = vadd.f32 0.0, %v2024
      %v2026 = vpop.f32.mrb[0].mxu0
      %2027 = vmatprep.mubr.bf16.mxu0 0
      %2028 = vmatmul.mubr.bf16.gmra.mrb[0].mxu0 %v587
      %v2029 = vpop.f32.mrb[0].mxu0
      %v2030 = vadd.f32 0.0, %v2029
      %v2031 = vpop.f32.mrb[0].mxu0
      %v2032 = vpop.f32.mrb[0].mxu0
      %v2033 = vadd.f32 0.0, %v2032
      %v2034 = vpop.f32.mrb[0].mxu0
      %2035 = vmatprep.mubr.bf16.mxu0 0
      %2036 = vmatmul.mubr.bf16.gmra.mrb[0].mxu0 %v599
      %v2037 = vpop.f32.mrb[0].mxu0
      %v2038 = vadd.f32 0.0, %v2037
      %v2039 = vpop.f32.mrb[0].mxu0
      %v2040 = vpop.f32.mrb[0].mxu0
      %v2041 = vadd.f32 0.0, %v2040
      %v2042 = vpop.f32.mrb[0].mxu0
      %2043 = vmatprep.mubr.bf16.mxu0 0
      %2044 = vmatmul.mubr.bf16.gmra.mrb[0].mxu0 %v611
      %v2045 = vpop.f32.mrb[0].mxu0
      %v2046 = vadd.f32 0.0, %v2045
      %v2047 = vpop.f32.mrb[0].mxu0
      %v2048 = vpop.f32.mrb[0].mxu0
      %v2049 = vadd.f32 0.0, %v2048
      %v2050 = vpop.f32.mrb[0].mxu0
      %2051 = vmatprep.mubr.bf16.mxu0 0
      %2052 = vmatmul.mubr.bf16.gmra.mrb[0].mxu0 %v623
      %v2053 = vpop.f32.mrb[0].mxu0
      %v2054 = vadd.f32 0.0, %v2053
      %v2055 = vpop.f32.mrb[0].mxu0
      %v2056 = vpop.f32.mrb[0].mxu0
      %v2057 = vadd.f32 0.0, %v2056
      %v2058 = vpop.f32.mrb[0].mxu0
      %2059 = vmatprep.mubr.bf16.mxu0 0
      %2060 = vmatmul.mubr.bf16.gmra.mrb[0].mxu0 %v635
      %v2061 = vpop.f32.mrb[0].mxu0
      %v2062 = vadd.f32 0.0, %v2061
      %v2063 = vpop.f32.mrb[0].mxu0
      %v2064 = vpop.f32.mrb[0].mxu0
      %v2065 = vadd.f32 0.0, %v2064
      %v2066 = vpop.f32.mrb[0].mxu0
      %2067 = vmatprep.mubr.bf16.mxu0 0
      %2068 = vmatmul.mubr.bf16.gmra.mrb[0].mxu0 %v1367
      %v2069 = vpop.f32.mrb[0].mxu0
      %v2070 = vadd.f32 0.0, %v2069
      %v2071 = vpop.f32.mrb[0].mxu0
      %v2072 = vpop.f32.mrb[0].mxu0
      %v2073 = vadd.f32 0.0, %v2072
      %v2074 = vpop.f32.mrb[0].mxu0
      %2075 = vmatprep.mubr.bf16.mxu0 0
      %2076 = vmatmul.mubr.bf16.gmra.mrb[0].mxu0 %v1920
      %v2077 = vpop.f32.mrb[0].mxu0
      %v2078 = vadd.f32 0.0, %v2077
      %v2079 = vpop.f32.mrb[0].mxu0
      %v2080 = vpop.f32.mrb[0].mxu0
      %v2081 = vadd.f32 0.0, %v2080
      %v2082 = vpop.f32.mrb[0].mxu0
      %2083 = vdwg.mxu0
      %v2084 = vadd.f32 %v1893, %v2022
      %v2085 = vadd.f32 %v1894, %v2025
      %v2086 = vadd.f32 %v1895, %v2030
      %v2087 = vadd.f32 %v1896, %v2033
      %v2088 = vadd.f32 %v1897, %v2038
      %v2089 = vadd.f32 %v1898, %v2041
      %v2090 = vadd.f32 %v1899, %v2046
      %v2091 = vadd.f32 %v1900, %v2049
      %v2092 = vadd.f32 %v1901, %v2054
      %v2093 = vadd.f32 %v1902, %v2057
      %v2094 = vadd.f32 %v1903, %v2062
      %v2095 = vadd.f32 %v1904, %v2065
      %v2096 = vadd.f32 %v1905, %v2070
      %v2097 = vadd.f32 %v1906, %v2073
      %v2098 = vadd.f32 %v1907, %v2078
      %v2099 = vadd.f32 %v1908, %v2081
      %v2102 = vrot.slane %v521, 1
      %v2103 = vrot.slane %v522, 1
      %v2104 = vsel %vm967, %v2102, %v2103
      %s2106 = scalar_lea.vmem %s1, 512
      %v2107 = vld [vmem:[%s2106] sm:$0xf]
      %v2108 = vld [vmem:[%s2106 + $0x4] sm:$0xf]
      %v2109 = vld [vmem:[%s2106 + $0x8] sm:$0xf]
      %v2110 = vld [vmem:[%s2106 + $0xc] sm:$0xf]
      %v2111 = vld [vmem:[%s2106 + $0x10] sm:$0xf]
      %v2112 = vld [vmem:[%s2106 + $0x14] sm:$0xf]
      %v2113 = vld [vmem:[%s2106 + $0x18] sm:$0xf]
      %v2114 = vld [vmem:[%s2106 + $0x1c] sm:$0xf]
      %v2115 = vld [vmem:[%s2106 + $0x20] sm:$0xf]
      %v2116 = vld [vmem:[%s2106 + $0x24] sm:$0xf]
      %v2117 = vld [vmem:[%s2106 + $0x28] sm:$0xf]
      %v2118 = vld [vmem:[%s2106 + $0x2c] sm:$0xf]
      %v2119 = vld [vmem:[%s2106 + $0x30] sm:$0xf]
      %v2120 = vld [vmem:[%s2106 + $0x34] sm:$0xf]
      %v2121 = vld [vmem:[%s2106 + $0x38] sm:$0xf]
      %v2122 = vld [vmem:[%s2106 + $0x3c] sm:$0xf]
      %v2139 = vunpack.c.l.b16 %v2107
      %v2140 = vunpack.c.l.b16 %v2108
      %v2141 = vunpack.c.l.b16 %v2109
      %v2142 = vunpack.c.l.b16 %v2110
      %v2143 = vunpack.c.l.b16 %v2111
      %v2144 = vunpack.c.l.b16 %v2112
      %v2145 = vunpack.c.l.b16 %v2113
      %v2146 = vunpack.c.l.b16 %v2114
      %v2147 = vunpack.c.l.b16 %v2115
      %v2148 = vunpack.c.l.b16 %v2116
      %v2149 = vunpack.c.l.b16 %v2117
      %v2150 = vunpack.c.l.b16 %v2118
      %v2151 = vunpack.c.l.b16 %v2119
      %v2152 = vunpack.c.l.b16 %v2120
      %v2153 = vunpack.c.l.b16 %v2121
      %v2154 = vunpack.c.l.b16 %v2122
      %v2155 = vpack.c.b16 %v2140, %v2139
      %v2156 = vpack.c.b16 %v2142, %v2141
      %v2157 = vpack.c.b16 %v2144, %v2143
      %v2158 = vpack.c.b16 %v2146, %v2145
      %v2159 = vpack.c.b16 %v2148, %v2147
      %v2160 = vpack.c.b16 %v2150, %v2149
      %v2161 = vpack.c.b16 %v2152, %v2151
      %v2162 = vpack.c.b16 %v2154, %v2153
      %2171 = vmatprep.subr.bf16.mxu0 0
      %2172 = vmatpush1.bf16.msra.mxu0 %v2155
      %2173 = vmatprep.subr.bf16.mxu0 0
      %2174 = vmatpush1.bf16.msra.mxu0 %v2156
      %2175 = vmatprep.subr.bf16.mxu0 0
      %2176 = vmatpush1.bf16.msra.mxu0 %v2157
      %2177 = vmatprep.subr.bf16.mxu0 0
      %2178 = vmatpush1.bf16.msra.mxu0 %v2158
      %2179 = vmatprep.subr.bf16.mxu0 0
      %2180 = vmatpush1.bf16.msra.mxu0 %v2159
      %2181 = vmatprep.subr.bf16.mxu0 0
      %2182 = vmatpush1.bf16.msra.mxu0 %v2160
      %2183 = vmatprep.subr.bf16.mxu0 0
      %2184 = vmatpush1.bf16.msra.mxu0 %v2161
      %2185 = vmatprep.subr.bf16.mxu0 0
      %2186 = vmatpush1.bf16.msra.mxu0 %v2162
      %2187 = vmatprep.subr.bf16.mxu0 0
      %2188 = vmatpush1.bf16.msra.mxu0 0
      %2189 = vmatprep.subr.bf16.mxu0 0
      %2190 = vmatpush1.bf16.msra.mxu0 0
      %2191 = vmatprep.subr.bf16.mxu0 0
      %2192 = vmatpush1.bf16.msra.mxu0 0
      %2193 = vmatprep.subr.bf16.mxu0 0
      %2194 = vmatpush1.bf16.msra.mxu0 0
      %2195 = vmatprep.subr.bf16.mxu0 0
      %2196 = vmatpush1.bf16.msra.mxu0 0
      %2197 = vmatprep.subr.bf16.mxu0 0
      %2198 = vmatpush1.bf16.msra.mxu0 0
      %2199 = vmatprep.subr.bf16.mxu0 0
      %2200 = vmatpush1.bf16.msra.mxu0 0
      %2201 = vmatprep.subr.bf16.mxu0 0
      %2202 = vmatpush1.bf16.msra.mxu0 0
      %2203 = vmatprep.mubr.bf16.mxu0 0
      %2204 = vmatmul.mubr.bf16.gmra.mrb[0].mxu0 %v976
      %v2205 = vpop.f32.mrb[0].mxu0
      %v2206 = vadd.f32 0.0, %v2205
      %v2207 = vpop.f32.mrb[0].mxu0
      %v2208 = vpop.f32.mrb[0].mxu0
      %v2209 = vadd.f32 0.0, %v2208
      %v2210 = vpop.f32.mrb[0].mxu0
      %2211 = vmatprep.mubr.bf16.mxu0 0
      %2212 = vmatmul.mubr.bf16.gmra.mrb[0].mxu0 %v979
      %v2213 = vpop.f32.mrb[0].mxu0
      %v2214 = vadd.f32 0.0, %v2213
      %v2215 = vpop.f32.mrb[0].mxu0
      %v2216 = vpop.f32.mrb[0].mxu0
      %v2217 = vadd.f32 0.0, %v2216
      %v2218 = vpop.f32.mrb[0].mxu0
      %2219 = vmatprep.mubr.bf16.mxu0 0
      %2220 = vmatmul.mubr.bf16.gmra.mrb[0].mxu0 %v982
      %v2221 = vpop.f32.mrb[0].mxu0
      %v2222 = vadd.f32 0.0, %v2221
      %v2223 = vpop.f32.mrb[0].mxu0
      %v2224 = vpop.f32.mrb[0].mxu0
      %v2225 = vadd.f32 0.0, %v2224
      %v2226 = vpop.f32.mrb[0].mxu0
      %2227 = vmatprep.mubr.bf16.mxu0 0
      %2228 = vmatmul.mubr.bf16.gmra.mrb[0].mxu0 %v985
      %v2229 = vpop.f32.mrb[0].mxu0
      %v2230 = vadd.f32 0.0, %v2229
      %v2231 = vpop.f32.mrb[0].mxu0
      %v2232 = vpop.f32.mrb[0].mxu0
      %v2233 = vadd.f32 0.0, %v2232
      %v2234 = vpop.f32.mrb[0].mxu0
      %2235 = vmatprep.mubr.bf16.mxu0 0
      %2236 = vmatmul.mubr.bf16.gmra.mrb[0].mxu0 %v988
      %v2237 = vpop.f32.mrb[0].mxu0
      %v2238 = vadd.f32 0.0, %v2237
      %v2239 = vpop.f32.mrb[0].mxu0
      %v2240 = vpop.f32.mrb[0].mxu0
      %v2241 = vadd.f32 0.0, %v2240
      %v2242 = vpop.f32.mrb[0].mxu0
      %2243 = vmatprep.mubr.bf16.mxu0 0
      %2244 = vmatmul.mubr.bf16.gmra.mrb[0].mxu0 %v991
      %v2245 = vpop.f32.mrb[0].mxu0
      %v2246 = vadd.f32 0.0, %v2245
      %v2247 = vpop.f32.mrb[0].mxu0
      %v2248 = vpop.f32.mrb[0].mxu0
      %v2249 = vadd.f32 0.0, %v2248
      %v2250 = vpop.f32.mrb[0].mxu0
      %2251 = vmatprep.mubr.bf16.mxu0 0
      %2252 = vmatmul.mubr.bf16.gmra.mrb[0].mxu0 %v1551
      %v2253 = vpop.f32.mrb[0].mxu0
      %v2254 = vadd.f32 0.0, %v2253
      %v2255 = vpop.f32.mrb[0].mxu0
      %v2256 = vpop.f32.mrb[0].mxu0
      %v2257 = vadd.f32 0.0, %v2256
      %v2258 = vpop.f32.mrb[0].mxu0
      %2259 = vmatprep.mubr.bf16.mxu0 0
      %2260 = vmatmul.mubr.bf16.gmra.mrb[0].mxu0 %v2104
      %v2261 = vpop.f32.mrb[0].mxu0
      %v2262 = vadd.f32 0.0, %v2261
      %v2263 = vpop.f32.mrb[0].mxu0
      %v2264 = vpop.f32.mrb[0].mxu0
      %v2265 = vadd.f32 0.0, %v2264
      %v2266 = vpop.f32.mrb[0].mxu0
      %2267 = vdwg.mxu0
      %v2268 = vadd.f32 %v2084, %v2206
      %v2269 = vadd.f32 %v2085, %v2209
      %v2270 = vadd.f32 %v2086, %v2214
      %v2271 = vadd.f32 %v2087, %v2217
      %v2272 = vadd.f32 %v2088, %v2222
      %v2273 = vadd.f32 %v2089, %v2225
      %v2274 = vadd.f32 %v2090, %v2230
      %v2275 = vadd.f32 %v2091, %v2233
      %v2276 = vadd.f32 %v2092, %v2238
      %v2277 = vadd.f32 %v2093, %v2241
      %v2278 = vadd.f32 %v2094, %v2246
      %v2279 = vadd.f32 %v2095, %v2249
      %v2280 = vadd.f32 %v2096, %v2254
      %v2281 = vadd.f32 %v2097, %v2257
      %v2282 = vadd.f32 %v2098, %v2262
      %v2283 = vadd.f32 %v2099, %v2265
      %v2284 = vld [vmem:[%s2] sm:$0x1]
      %v2286 = vlaneseq
      %v2287 = vshrl.u32 %v2286, 7
      %v2288 = vsub.s32 0, %v2287
      %v2289 = vrot.slane %v2284, %v2288
      %v2291 = vadd.f32 %v2268, %v2289
      %v2292 = vadd.f32 %v2269, %v2289
      %v2293 = vadd.f32 %v2270, %v2289
      %v2294 = vadd.f32 %v2271, %v2289
      %v2295 = vadd.f32 %v2272, %v2289
      %v2296 = vadd.f32 %v2273, %v2289
      %v2297 = vadd.f32 %v2274, %v2289
      %v2298 = vadd.f32 %v2275, %v2289
      %v2299 = vadd.f32 %v2276, %v2289
      %v2300 = vadd.f32 %v2277, %v2289
      %v2301 = vadd.f32 %v2278, %v2289
      %v2302 = vadd.f32 %v2279, %v2289
      %v2303 = vadd.f32 %v2280, %v2289
      %v2304 = vadd.f32 %v2281, %v2289
      %v2305 = vadd.f32 %v2282, %v2289
      %v2306 = vadd.f32 %v2283, %v2289
      %v2307 = vpack.c.bf16 %v2292, %v2291
      %v2308 = vpack.c.bf16 %v2294, %v2293
      %v2309 = vpack.c.bf16 %v2296, %v2295
      %v2310 = vpack.c.bf16 %v2298, %v2297
      %v2311 = vpack.c.bf16 %v2300, %v2299
      %v2312 = vpack.c.bf16 %v2302, %v2301
      %v2313 = vpack.c.bf16 %v2304, %v2303
      %v2314 = vpack.c.bf16 %v2306, %v2305
      %v2323 = vunpack.c.l.b16 %v2307
      %v2324 = vunpack.c.h.b16 %v2307
      %v2325 = vunpack.c.l.b16 %v2308
      %v2326 = vunpack.c.h.b16 %v2308
      %v2327 = vunpack.c.l.b16 %v2309
      %v2328 = vunpack.c.h.b16 %v2309
      %v2329 = vunpack.c.l.b16 %v2310
      %v2330 = vunpack.c.h.b16 %v2310
      %v2331 = vunpack.c.l.b16 %v2311
      %v2332 = vunpack.c.h.b16 %v2311
      %v2333 = vunpack.c.l.b16 %v2312
      %v2334 = vunpack.c.h.b16 %v2312
      %v2335 = vunpack.c.l.b16 %v2313
      %v2336 = vunpack.c.h.b16 %v2313
      %v2337 = vunpack.c.l.b16 %v2314
      %v2338 = vunpack.c.h.b16 %v2314
      %v2339 = vpack.c.b16 %v2323, %v2323
      %v2340 = vpack.c.b16 %v2324, %v2324
      %v2341 = vpack.c.b16 %v2325, %v2325
      %v2342 = vpack.c.b16 %v2326, %v2326
      %v2343 = vpack.c.b16 %v2327, %v2327
      %v2344 = vpack.c.b16 %v2328, %v2328
      %v2345 = vpack.c.b16 %v2329, %v2329
      %v2346 = vpack.c.b16 %v2330, %v2330
      %v2347 = vpack.c.b16 %v2331, %v2331
      %v2348 = vpack.c.b16 %v2332, %v2332
      %v2349 = vpack.c.b16 %v2333, %v2333
      %v2350 = vpack.c.b16 %v2334, %v2334
      %v2351 = vpack.c.b16 %v2335, %v2335
      %v2352 = vpack.c.b16 %v2336, %v2336
      %v2353 = vpack.c.b16 %v2337, %v2337
      %v2354 = vpack.c.b16 %v2338, %v2338
      %2371 = vst [vmem:[%s328] sm:$0xf] %v2339
      %2372 = vst [vmem:[%s328 + $0x4] sm:$0xf] %v2340
      %2373 = vst [vmem:[%s328 + $0x8] sm:$0xf] %v2341
      %2374 = vst [vmem:[%s328 + $0xc] sm:$0xf] %v2342
      %2375 = vst [vmem:[%s328 + $0x10] sm:$0xf] %v2343
      %2376 = vst [vmem:[%s328 + $0x14] sm:$0xf] %v2344
      %2377 = vst [vmem:[%s328 + $0x18] sm:$0xf] %v2345
      %2378 = vst [vmem:[%s328 + $0x1c] sm:$0xf] %v2346
      %2379 = vst [vmem:[%s328 + $0x20] sm:$0xf] %v2347
      %2380 = vst [vmem:[%s328 + $0x24] sm:$0xf] %v2348
      %2381 = vst [vmem:[%s328 + $0x28] sm:$0xf] %v2349
      %2382 = vst [vmem:[%s328 + $0x2c] sm:$0xf] %v2350
      %2383 = vst [vmem:[%s328 + $0x30] sm:$0xf] %v2351
      %2384 = vst [vmem:[%s328 + $0x34] sm:$0xf] %v2352
      %2385 = vst [vmem:[%s328 + $0x38] sm:$0xf] %v2353
      %2386 = vst [vmem:[%s328 + $0x3c] sm:$0xf] %v2354
      %v2387 = vadd.f32 %v2291, %v2292
      %v2388 = vadd.f32 %v2387, %v2293
      %v2389 = vadd.f32 %v2388, %v2294
      %v2390 = vadd.f32 %v2389, %v2295
      %v2391 = vadd.f32 %v2390, %v2296
      %v2392 = vadd.f32 %v2391, %v2297
      %v2393 = vadd.f32 %v2392, %v2298
      %v2394 = vadd.f32 %v2393, %v2299
      %v2395 = vadd.f32 %v2394, %v2300
      %v2396 = vadd.f32 %v2395, %v2301
      %v2397 = vadd.f32 %v2396, %v2302
      %v2398 = vadd.f32 %v2397, %v2303
      %v2399 = vadd.f32 %v2398, %v2304
      %v2400 = vadd.f32 %v2399, %v2305
      %v2401 = vadd.f32 %v2400, %v2306
      %v2402 = vrot.slane %v2401, 4
      %v2403 = vadd.f32 %v2401, %v2402
      %v2404 = vrot.slane %v2403, 2
      %v2405 = vadd.f32 %v2403, %v2404
      %v2406 = vrot.slane %v2405, 1
      %v2407 = vadd.f32 %v2405, %v2406
      %v2408 = vmul.f32 %v2291, %v2291
      %v2409 = vmul.f32 %v2292, %v2292
      %v2410 = vmul.f32 %v2293, %v2293
      %v2411 = vmul.f32 %v2294, %v2294
      %v2412 = vmul.f32 %v2295, %v2295
      %v2413 = vmul.f32 %v2296, %v2296
      %v2414 = vmul.f32 %v2297, %v2297
      %v2415 = vmul.f32 %v2298, %v2298
      %v2416 = vmul.f32 %v2299, %v2299
      %v2417 = vmul.f32 %v2300, %v2300
      %v2418 = vmul.f32 %v2301, %v2301
      %v2419 = vmul.f32 %v2302, %v2302
      %v2420 = vmul.f32 %v2303, %v2303
      %v2421 = vmul.f32 %v2304, %v2304
      %v2422 = vmul.f32 %v2305, %v2305
      %v2423 = vmul.f32 %v2306, %v2306
      %v2424 = vadd.f32 %v2408, %v2409
      %v2425 = vadd.f32 %v2424, %v2410
      %v2426 = vadd.f32 %v2425, %v2411
      %v2427 = vadd.f32 %v2426, %v2412
      %v2428 = vadd.f32 %v2427, %v2413
      %v2429 = vadd.f32 %v2428, %v2414
      %v2430 = vadd.f32 %v2429, %v2415
      %v2431 = vadd.f32 %v2430, %v2416
      %v2432 = vadd.f32 %v2431, %v2417
      %v2433 = vadd.f32 %v2432, %v2418
      %v2434 = vadd.f32 %v2433, %v2419
      %v2435 = vadd.f32 %v2434, %v2420
      %v2436 = vadd.f32 %v2435, %v2421
      %v2437 = vadd.f32 %v2436, %v2422
      %v2438 = vadd.f32 %v2437, %v2423
      %v2439 = vrot.slane %v2438, 4
      %v2440 = vadd.f32 %v2438, %v2439
      %v2441 = vrot.slane %v2440, 2
      %v2442 = vadd.f32 %v2440, %v2441
      %v2443 = vrot.slane %v2442, 1
      %v2444 = vadd.f32 %v2442, %v2443
      %vm2445 = vcmask 1040384
      %v2446 = vsel %vm2445, %v2407, %v2444
      %2447 = vst [vmem:[%s337] sm:$0x3] %v2446
      %s2448 = smul.u32 16, %s23
      %p2449 = scmp.lt.s32.totalorder %s22, 1
      %s2450 = scalar_select %p2449, %s22, 1
      %p2451 = scmp.lt.s32.totalorder %s2448, 31
      %s2452 = scalar_select %p2451, %s2448, 31
      %s2453 = smul.addr %s2450, 32
      %s2454 = sadd.s32 %s2452, %s2453
      %s2455 = smul.addr %s2454, 4
      %s2456 = scalar_lea.vmem %s5, %s2455
      %p2457 = scmp.lt.s32.totalorder %s22, 1
      %s2458 = scalar_select %p2457, %s22, 1
      %p2459 = scmp.lt.s32.totalorder %s23, 1
      %s2460 = scalar_select %p2459, %s23, 1
      %s2461 = smul.addr %s2458, 2
      %s2462 = sadd.s32 %s2460, %s2461
      %s2463 = smul.addr %s2462, 2
      %s2464 = scalar_lea.vmem %s6, %s2463
      // Predicated region
      $region41: #{_lambda_.4} parent=39 // pred_check
        %p2465 = pneg %p172
      $region42: #{_lambda_.4} parent=39 // pred_check_branch
        %2467 = sbr.rel (%p2465) target = $region44
      $region43: #{_lambda_.4} parent=39 // pred_region
        %s2468 = smul.u32 16, %s23
      $region44: #{_lambda_.4} parent=39 // pred_fallthru
        _
      // Predicated region
      $region45: #{_lambda_.4} parent=39 // pred_check
        %p2469 = pneg %p200
      $region46: #{_lambda_.4} parent=39 // pred_check_branch
        %2471 = sbr.rel (%p2469) target = $region48
      $region47: #{_lambda_.4} parent=39 // pred_region
        _
      $region48: #{_lambda_.4} parent=39 // pred_fallthru
        _
    $region40: #{_lambda_.4} parent=5 // pred_fallthru
      _
    %p2472 = scmp.le.s32.totalorder 2, %s13
    // Predicated region
    $region49: #{_lambda_.4} parent=5 // pred_check
      %p2473 = pneg %p2472
    $region50: #{_lambda_.4} parent=5 // pred_check_branch
      %2475 = sbr.rel (%p2473) target = $region52
    $region51: #{_lambda_.4} parent=5 // pred_region
      %s2476 = ssub.s32 %s13, 2
      // Predicated region
      $region53: #{_lambda_.4} parent=51 // pred_check
        %p2477 = pneg %p178
      $region54: #{_lambda_.4} parent=51 // pred_check_branch
        %2479 = sbr.rel (%p2477) target = $region56
      $region55: #{_lambda_.4} parent=51 // pred_region
        %s2480 = smul.u32 16, %s25
        %p2481 = scmp.lt.s32.totalorder %s24, 1
        %s2482 = scalar_select %p2481, %s24, 1
        %p2483 = scmp.lt.s32.totalorder %s2480, 31
        %s2484 = scalar_select %p2483, %s2480, 31
        %s2485 = smul.addr %s2482, 32
        %s2486 = sadd.s32 %s2484, %s2485
        %s2487 = smul.addr %s2486, 4
        %s2488 = scalar_lea.vmem %s5, %s2487
      $region56: #{_lambda_.4} parent=51 // pred_fallthru
        _
      // Predicated region
      $region57: #{_lambda_.4} parent=51 // pred_check
        %p2489 = pneg %p206
      $region58: #{_lambda_.4} parent=51 // pred_check_branch
        %2491 = sbr.rel (%p2489) target = $region60
      $region59: #{_lambda_.4} parent=51 // pred_region
        %p2492 = scmp.lt.s32.totalorder %s24, 1
        %s2493 = scalar_select %p2492, %s24, 1
        %p2494 = scmp.lt.s32.totalorder %s25, 1
        %s2495 = scalar_select %p2494, %s25, 1
        %s2496 = smul.addr %s2493, 2
        %s2497 = sadd.s32 %s2495, %s2496
        %s2498 = smul.addr %s2497, 2
        %s2499 = scalar_lea.vmem %s6, %s2498
      $region60: #{_lambda_.4} parent=51 // pred_fallthru
        _
    $region52: #{_lambda_.4} parent=5 // pred_fallthru
      _
  $region6: #{_lambda_.4} parent=0 // loop_footer
    %s17 = sadd.s32 1, %s13
  $region7: #{_lambda_.4} parent=0 // loop_footer_branch
    %12 = sbr.rel target = $region3
  $region8: #{_lambda_.4} parent=0 // loop_exit
    _

</llo_original>
